<compile_context>
chip_gen: v7x
topology: tpu7x:2x2x1
jax: 0.10.0
libtpu: 0.0.40
codegen_flags: <defaults>
</compile_context>

<pallas_src>
import functools

import numpy as np
import jax
import jax.numpy as jnp
from jax.experimental import pallas as pl
from jax.experimental.pallas import tpu as pltpu

OUTPUT_SHAPE = (13, 2, 11)


def _round_up(x, m):
    return (x + m - 1) // m * m


def _pool_matrix(n_in, n_out):
    """Exact PyTorch AdaptiveAvgPool averaging operator for one axis."""
    m = np.zeros((n_out, n_in), dtype=np.float32)
    for i in range(n_out):
        s = (i * n_in) // n_out
        e = -((-(i + 1) * n_in) // n_out)          # ceil((i+1)*n_in/n_out)
        m[i, s:e] = 1.0 / (e - s)
    return m


# ---------------------------------------------------------------------------
# Fused Pallas kernel: conv stack + final 1x1x1 conv + adaptive avg pool
# ---------------------------------------------------------------------------
def _fused_tcn_kernel(x_ref, *refs, ksize, dilations, canvas, n_pad):
    """One batch element per grid step; everything stays in VMEM.

    x_ref        : (1, Cp0, n_pad)         input embedded in the zero canvas
    per layer    : w_ref (Coutp, K^3*Cinp) packed conv weights
                   b_ref (Coutp, 1)        bias
                   m_ref (1, n_pad)        valid-output mask (inner layers only)
    then         : wf_ref (CpL, 1)         final 1x1x1 conv weights (column)
                   bf_ref (1, 1)           final conv bias
                   p_ref  (n_pad, out_pad) canvas-indexed adaptive-pool matrix
    output       : o_ref  (1, 1, out_pad)
    scratch      : patches (K^3*max_Cinp, n_pad) reused tap buffer
    """
    num_layers = len(dilations)
    n_layer_refs = 3 * (num_layers - 1) + 2
    wf_ref, bf_ref, p_ref, o_ref, patches = refs[n_layer_refs:]
    _, hc, wc = canvas

    act = x_ref[0]                                        # (Cp, n_pad) f32
    idx = 0
    for layer in range(num_layers):
        is_last = layer == num_layers - 1
        w_ref = refs[idx]
        b_ref = refs[idx + 1]
        m_ref = None if is_last else refs[idx + 2]
        idx += 2 if is_last else 3

        d = dilations[layer]
        cin_p = act.shape[0]
        # Build the K^3 dilated taps as static XLU lane rotates of the canvas
        # and stash them in the shared VMEM scratch -> one big MXU GEMM.
        # (Wrapped lanes [0, s) only pollute canvas positions before the
        #  valid-box start, which the masks / pool sparsity zero out.)
        t = 0
        for kd in range(ksize):
            for kh in range(ksize):
                for kw in range(ksize):
                    off = ((kd - (ksize - 1)) * hc * wc
                           + (kh - (ksize - 1)) * wc
                           + (kw - (ksize - 1))) * d      # <= 0, static
                    s = -off
                    tap = act if s == 0 else pltpu.roll(act, shift=s, axis=1)
                    patches[t * cin_p:(t + 1) * cin_p, :] = tap.astype(
                        patches.dtype)
                    t += 1
        z = jnp.dot(w_ref[...], patches[:ksize ** 3 * cin_p, :],
                    preferred_element_type=jnp.float32)   # (Coutp, n_pad)
        # bias + ReLU; inner layers additionally zero everything outside the
        # layer's valid output box so the next layer sees exact zero padding.
        z = jnp.maximum(z + b_ref[...], 0.0)
        act = z if is_last else z * m_ref[...]

    # Epilogue: fold the 1x1x1 conv (channel reduce) FIRST, then one pooling
    # GEMM over canvas positions (pool rows sum to 1, so order is exact).
    y = jnp.sum(act * wf_ref[...], axis=0, keepdims=True)          # (1, n_pad)
    out = jnp.dot(y, p_ref[...],
                  preferred_element_type=jnp.float32) + bf_ref[...]
    o_ref[0] = out.astype(o_ref.dtype)


# ---------------------------------------------------------------------------
# Wrapper: layout plumbing (canvas embed, weight packing, pool matrix)
# ---------------------------------------------------------------------------
def temporal_conv_net_forward(params, x_ncdhw, output_shape=OUTPUT_SHAPE,
                              matmul_dtype=jnp.float32):
    """x_ncdhw: (B, C, D, H, W) float; returns (B, *output_shape)."""
    x = x_ncdhw.astype(jnp.float32)
    B, c_in, D, H, W = x.shape
    layers = params["layers"]
    num_layers = len(layers)
    K = layers[0]["w"].shape[0]
    dilations = tuple(2 ** i for i in range(num_layers))

    # Spatial extents after every layer: Conv3d(pad=(K-1)*d) grows each axis
    # by (K-1)*d (the reference module has no Chomp; sizes grow on purpose).
    sizes = [(D, H, W)]
    for d in dilations:
        g = (K - 1) * d
        pd_, ph_, pw_ = sizes[-1]
        sizes.append((pd_ + g, ph_ + g, pw_ + g))
    Df, Hf, Wf = sizes[-1]

    # Canvas = final spatial volume plus a front margin of (K-1)*max(dil)
    # zeros on every axis; flattened spatial sits on lanes, padded to 128.
    P = (K - 1) * max(dilations)
    Dc, Hc, Wc = P + Df, P + Hf, P + Wf
    Nc = Dc * Hc * Wc
    n_pad = _round_up(Nc, 128)

    # Safety for the pltpu.roll tap construction: wrapped lanes [0, shift)
    # must stay strictly before the valid-box start on the flat canvas.
    box_start = (P * Hc + P) * Wc + P
    max_shift = (K - 1) * max(dilations) * (Hc * Wc + Wc + 1)
    assert max_shift <= box_start, (max_shift, box_start)

    # Channel padding multiple: f32 sublane tile is 8, bf16 packs 16/sublane.
    c_mult = 16 if jnp.dtype(matmul_dtype).itemsize == 2 else 8

    def cpad(c):
        return max(_round_up(c, c_mult), c_mult)

    # --- input: channel-pad and embed into the zero canvas (one XLA pad) ---
    cp0 = cpad(c_in)
    xc = jnp.pad(x, ((0, 0), (0, cp0 - c_in),
                     (P, Dc - P - D), (P, Hc - P - H), (P, Wc - P - W)))
    xc = jnp.pad(xc.reshape(B, cp0, Nc), ((0, 0), (0, 0), (0, n_pad - Nc)))

    inputs = [xc]
    in_specs = [pl.BlockSpec((1, cp0, n_pad), lambda b: (b, 0, 0))]

    # --- per-layer packed weights / bias / (inner-layer) valid masks ---
    cin_p = cp0
    max_cin_p = cp0
    for li in range(num_layers):
        w = layers[li]["w"].astype(jnp.float32)     # (K,K,K,Cin,Cout)
        bias = layers[li]["b"].astype(jnp.float32)  # (Cout,)
        c_out = w.shape[-1]
        cout_p = cpad(c_out)
        wp = jnp.zeros((K, K, K, cin_p, cout_p), jnp.float32)
        wp = wp.at[:, :, :, :w.shape[3], :c_out].set(w)
        w2d = wp.reshape(K ** 3 * cin_p, cout_p).T.astype(matmul_dtype)
        bp = jnp.zeros((cout_p, 1), jnp.float32).at[:c_out, 0].set(bias)

        inputs += [w2d, bp]
        in_specs += [
            pl.BlockSpec((cout_p, K ** 3 * cin_p), lambda b: (0, 0)),
            pl.BlockSpec((cout_p, 1), lambda b: (0, 0)),
        ]
        if li < num_layers - 1:
            do_, ho_, wo_ = sizes[li + 1]
            mask = np.zeros((Dc, Hc, Wc), np.float32)
            mask[P:P + do_, P:P + ho_, P:P + wo_] = 1.0
            mask = np.pad(mask.reshape(1, Nc), ((0, 0), (0, n_pad - Nc)))
            inputs.append(jnp.asarray(mask))
            in_specs.append(pl.BlockSpec((1, n_pad), lambda b: (0, 0)))
        # Last layer's mask is redundant: the pooling matrix is zero outside
        # the final valid box, so out-of-box activations never reach output.
        cin_p = cout_p
        max_cin_p = max(max_cin_p, cout_p)

    # --- final 1x1x1 conv, folded into the pooling epilogue ---
    wf = params["final_w"].reshape(-1).astype(jnp.float32)     # (C_last,)
    wf_col = jnp.zeros((cin_p, 1), jnp.float32).at[:wf.shape[0], 0].set(wf)
    bf = params["final_b"].reshape(1, 1).astype(jnp.float32)

    # --- canvas-indexed adaptive-avg-pool matrix (exact PyTorch semantics);
    #     lane dim padded to a multiple of 128 for full-lane output stores ---
    out_flat = int(np.prod(output_shape))
    out_pad = _round_up(out_flat, 128)
    p_dense = np.kron(np.kron(_pool_matrix(Df, output_shape[0]),
                              _pool_matrix(Hf, output_shape[1])),
                      _pool_matrix(Wf, output_shape[2]))   # (out_flat, Df*Hf*Wf)
    dd, hh, ww = np.meshgrid(np.arange(Df), np.arange(Hf), np.arange(Wf),
                             indexing="ij")
    canvas_flat = (((dd + P) * Hc + (hh + P)) * Wc + (ww + P)).reshape(-1)
    p_canvas_t = np.zeros((n_pad, out_pad), np.float32)
    p_canvas_t[canvas_flat, :out_flat] = p_dense.T

    inputs += [wf_col, bf, jnp.asarray(p_canvas_t)]
    in_specs += [
        pl.BlockSpec((cin_p, 1), lambda b: (0, 0)),
        pl.BlockSpec((1, 1), lambda b: (0, 0)),
        pl.BlockSpec((n_pad, out_pad), lambda b: (0, 0)),
    ]

    # Shared tap scratch, reused by every layer.
    scratch_rows = K ** 3 * max_cin_p
    scratch = pltpu.VMEM((scratch_rows, n_pad), matmul_dtype)

    # VMEM budget per grid step (double-buffered blocks) + headroom, capped
    # with margin below v7x's 64 MiB/TC (v5e/v6e have 128 MiB).
    blk = 2 * cp0 * n_pad * 4 + 2 * out_pad * 4
    blk += sum(2 * int(np.prod(a.shape)) * a.dtype.itemsize
               for a in inputs[1:])
    blk += scratch_rows * n_pad * jnp.dtype(matmul_dtype).itemsize
    vmem_limit = int(min(48 * 2 ** 20, max(2 * blk, 16 * 2 ** 20)))

    kernel = functools.partial(_fused_tcn_kernel, ksize=K, dilations=dilations,
                               canvas=(Dc, Hc, Wc), n_pad=n_pad)
    out = pl.pallas_call(
        kernel,
        out_shape=jax.ShapeDtypeStruct((B, 1, out_pad), jnp.float32),
        grid=(B,),
        in_specs=in_specs,
        out_specs=pl.BlockSpec((1, 1, out_pad), lambda b: (b, 0, 0)),
        scratch_shapes=[scratch],
        compiler_params=pltpu.CompilerParams(
            dimension_semantics=("parallel",),
            vmem_limit_bytes=vmem_limit),
    )(*inputs)
    return out[:, 0, :out_flat].reshape(B, *output_shape)


# ---------------------------------------------------------------------------
# Pure-JAX reference (same semantics) for validation
# ---------------------------------------------------------------------------
def _reference_forward(params, x_ncdhw, output_shape=OUTPUT_SHAPE):
    y = x_ncdhw.astype(jnp.float32)
    for i, ly in enumerate(params["layers"]):
        w, bias = ly["w"], ly["b"]
        K = w.shape[0]
        d = 2 ** i
        p = (K - 1) * d
        yp = jnp.pad(y, ((0, 0), (0, 0), (p, p), (p, p), (p, p)))
        do = y.shape[2] + p
        ho = y.shape[3] + p
        wo = y.shape[4] + p
        acc = None
        for kd in range(K):
            for kh in range(K):
                for kw in range(K):
                    sl = yp[:, :, kd * d:kd * d + do,
                                  kh * d:kh * d + ho,
                                  kw * d:kw * d + wo]
                    t = jnp.einsum("bcdhw,co->bodhw", sl, w[kd, kh, kw],
                                   precision=jax.lax.Precision.HIGHEST)
                    acc = t if acc is None else acc + t
        y = jnp.maximum(acc + bias.reshape(1, -1, 1, 1, 1), 0.0)
    wf = params["final_w"].reshape(-1)
    y = jnp.einsum("bcdhw,c->bdhw", y, wf, precision=jax.lax.Precision.HIGHEST)
    y = y + params["final_b"].reshape(1, 1, 1, 1)
    pd_ = jnp.asarray(_pool_matrix(y.shape[1], output_shape[0]))
    ph_ = jnp.asarray(_pool_matrix(y.shape[2], output_shape[1]))
    pw_ = jnp.asarray(_pool_matrix(y.shape[3], output_shape[2]))
    return jnp.einsum("bdhw,ad,eh,fw->baef", y, pd_, ph_, pw_,
                      precision=jax.lax.Precision.HIGHEST)


# ---------------------------------------------------------------------------
# Params
# ---------------------------------------------------------------------------
def init_tcn_params(key, num_inputs, num_channels, kernel_size=2):
    params = {"layers": []}
    in_ch = num_inputs
    for out_ch in num_channels:
        key, kw_, kb_ = jax.random.split(key, 3)
        fan_in = in_ch * kernel_size ** 3
        bound = 1.0 / np.sqrt(fan_in)
        w = jax.random.uniform(kw_, (kernel_size,) * 3 + (in_ch, out_ch),
                               jnp.float32, -bound, bound)
        b = jax.random.uniform(kb_, (out_ch,), jnp.float32, -bound, bound)
        params["layers"].append({"w": w, "b": b})
        in_ch = out_ch
    key, kw_, kb_ = jax.random.split(key, 3)
    bound = 1.0 / np.sqrt(in_ch)
    params["final_w"] = jax.random.uniform(kw_, (1, 1, 1, in_ch, 1),
                                           jnp.float32, -bound, bound)
    params["final_b"] = jax.random.uniform(kb_, (1,), jnp.float32,
                                           -bound, bound)
    return params


if __name__ == "__main__":
    key = jax.random.PRNGKey(0)
    k_param, k_x = jax.random.split(key)

    num_inputs = 4
    num_channels = (8, 8)
    B, D, H, W = 2, 6, 4, 8   # even B keeps both v7x TensorCores busy

    params = init_tcn_params(k_param, num_inputs, num_channels, kernel_size=2)
    x = jax.random.normal(k_x, (B, num_inputs, D, H, W), jnp.float32)

    fwd = jax.jit(temporal_conv_net_forward)
    out = jax.block_until_ready(fwd(params, x))
    assert out.shape == (B,) + OUTPUT_SHAPE, out.shape
    assert bool(jnp.all(jnp.isfinite(out)))

    ref = jax.block_until_ready(_reference_forward(params, x))
    max_err = float(jnp.max(jnp.abs(out - ref)))
    assert max_err < 2e-3, f"mismatch vs reference: {max_err}"

    # Optional bf16 GEMM-operand path (native single-pass MXU on v6e/v7x);
    # pool matrix stays f32, so only the conv GEMMs lose precision.
    fwd_bf16 = jax.jit(functools.partial(temporal_conv_net_forward,
                                         matmul_dtype=jnp.bfloat16))
    out_bf16 = jax.block_until_ready(fwd_bf16(params, x))
    err_bf16 = float(jnp.max(jnp.abs(out_bf16 - ref)))
    assert err_bf16 < 5e-2, f"bf16 path mismatch vs reference: {err_bf16}"

    print("KERNEL_OK")
</pallas_src>

<mosaic_0001>
module attributes {stable_mosaic.version = 11 : i64} {
  func.func @_fused_tcn_kernel(%arg0: i32, %arg1: memref<1x8x1408xf32, #tpu.memory_space<vmem>>, %arg2: memref<8x64xf32, #tpu.memory_space<vmem>>, %arg3: memref<8x1xf32, #tpu.memory_space<vmem>>, %arg4: memref<1x1408xf32, #tpu.memory_space<vmem>>, %arg5: memref<8x64xf32, #tpu.memory_space<vmem>>, %arg6: memref<8x1xf32, #tpu.memory_space<vmem>>, %arg7: memref<8x1xf32, #tpu.memory_space<vmem>>, %arg8: memref<1x1xf32, #tpu.memory_space<vmem>>, %arg9: memref<1408x384xf32, #tpu.memory_space<vmem>>, %arg10: memref<1x1x384xf32, #tpu.memory_space<vmem>>, %arg11: memref<64x1408xf32, #tpu.memory_space<vmem>>) attributes {dimension_semantics = [#tpu.dimension_semantics<parallel>], iteration_bounds = array<i64: 2>, scalar_prefetch = 0 : i64, scratch_operands = 1 : i64, tpu.core_type = #tpu.core_type<tc>, window_params = [{transform_indices = @transform_0, window_bounds = array<i64: 1, 8, 1408>}, {pipeline_mode = #tpu.pipeline_mode<synchronous>, transform_indices = @transform_1, window_bounds = array<i64: 8, 64>}, {pipeline_mode = #tpu.pipeline_mode<synchronous>, transform_indices = @transform_2, window_bounds = array<i64: 8, 1>}, {pipeline_mode = #tpu.pipeline_mode<synchronous>, transform_indices = @transform_3, window_bounds = array<i64: 1, 1408>}, {pipeline_mode = #tpu.pipeline_mode<synchronous>, transform_indices = @transform_4, window_bounds = array<i64: 8, 64>}, {pipeline_mode = #tpu.pipeline_mode<synchronous>, transform_indices = @transform_5, window_bounds = array<i64: 8, 1>}, {pipeline_mode = #tpu.pipeline_mode<synchronous>, transform_indices = @transform_6, window_bounds = array<i64: 8, 1>}, {pipeline_mode = #tpu.pipeline_mode<synchronous>, transform_indices = @transform_7, window_bounds = array<i64: 1, 1>}, {pipeline_mode = #tpu.pipeline_mode<synchronous>, transform_indices = @transform_8, window_bounds = array<i64: 1408, 384>}, {transform_indices = @transform_9, window_bounds = array<i64: 1, 1, 384>}]} {
    %c0 = arith.constant 0 : index
    %c0_0 = arith.constant 0 : index
    %c0_1 = arith.constant 0 : index
    %0 = vector.load %arg1[%c0, %c0_0, %c0_1] : memref<1x8x1408xf32, #tpu.memory_space<vmem>>, vector<1x8x1408xf32>
    %1 = vector.shape_cast %0 : vector<1x8x1408xf32> to vector<8x1408xf32>
    %c131_i32 = arith.constant 131 : i32
    %2 = tpu.dynamic_rotate %1 by %c131_i32 dim 1 : vector<8x1408xf32>, i32 -> vector<8x1408xf32>
    %c0_2 = arith.constant 0 : index
    %c0_3 = arith.constant 0 : index
    %3 = vector.load %arg11[%c0_2, %c0_3] : memref<64x1408xf32, #tpu.memory_space<vmem>>, vector<8x1408xf32>
    tpu.vector_store %arg11[%c0_2, %c0_3], %2 {strides = array<i32>} : memref<64x1408xf32, #tpu.memory_space<vmem>>, vector<8x1408xf32>,
    %c130_i32 = arith.constant 130 : i32
    %4 = tpu.dynamic_rotate %1 by %c130_i32 dim 1 : vector<8x1408xf32>, i32 -> vector<8x1408xf32>
    %c8 = arith.constant 8 : index
    %c0_4 = arith.constant 0 : index
    %5 = vector.load %arg11[%c8, %c0_4] : memref<64x1408xf32, #tpu.memory_space<vmem>>, vector<8x1408xf32>
    tpu.vector_store %arg11[%c8, %c0_4], %4 {strides = array<i32>} : memref<64x1408xf32, #tpu.memory_space<vmem>>, vector<8x1408xf32>,
    %c118_i32 = arith.constant 118 : i32
    %6 = tpu.dynamic_rotate %1 by %c118_i32 dim 1 : vector<8x1408xf32>, i32 -> vector<8x1408xf32>
    %c16 = arith.constant 16 : index
    %c0_5 = arith.constant 0 : index
    %7 = vector.load %arg11[%c16, %c0_5] : memref<64x1408xf32, #tpu.memory_space<vmem>>, vector<8x1408xf32>
    tpu.vector_store %arg11[%c16, %c0_5], %6 {strides = array<i32>} : memref<64x1408xf32, #tpu.memory_space<vmem>>, vector<8x1408xf32>,
    %c117_i32 = arith.constant 117 : i32
    %8 = tpu.dynamic_rotate %1 by %c117_i32 dim 1 : vector<8x1408xf32>, i32 -> vector<8x1408xf32>
    %c24 = arith.constant 24 : index
    %c0_6 = arith.constant 0 : index
    %9 = vector.load %arg11[%c24, %c0_6] : memref<64x1408xf32, #tpu.memory_space<vmem>>, vector<8x1408xf32>
    tpu.vector_store %arg11[%c24, %c0_6], %8 {strides = array<i32>} : memref<64x1408xf32, #tpu.memory_space<vmem>>, vector<8x1408xf32>,
    %c14_i32 = arith.constant 14 : i32
    %10 = tpu.dynamic_rotate %1 by %c14_i32 dim 1 : vector<8x1408xf32>, i32 -> vector<8x1408xf32>
    %c32 = arith.constant 32 : index
    %c0_7 = arith.constant 0 : index
    %11 = vector.load %arg11[%c32, %c0_7] : memref<64x1408xf32, #tpu.memory_space<vmem>>, vector<8x1408xf32>
    tpu.vector_store %arg11[%c32, %c0_7], %10 {strides = array<i32>} : memref<64x1408xf32, #tpu.memory_space<vmem>>, vector<8x1408xf32>,
    %c13_i32 = arith.constant 13 : i32
    %12 = tpu.dynamic_rotate %1 by %c13_i32 dim 1 : vector<8x1408xf32>, i32 -> vector<8x1408xf32>
    %c40 = arith.constant 40 : index
    %c0_8 = arith.constant 0 : index
    %13 = vector.load %arg11[%c40, %c0_8] : memref<64x1408xf32, #tpu.memory_space<vmem>>, vector<8x1408xf32>
    tpu.vector_store %arg11[%c40, %c0_8], %12 {strides = array<i32>} : memref<64x1408xf32, #tpu.memory_space<vmem>>, vector<8x1408xf32>,
    %c1_i32 = arith.constant 1 : i32
    %14 = tpu.dynamic_rotate %1 by %c1_i32 dim 1 : vector<8x1408xf32>, i32 -> vector<8x1408xf32>
    %c48 = arith.constant 48 : index
    %c0_9 = arith.constant 0 : index
    %15 = vector.load %arg11[%c48, %c0_9] : memref<64x1408xf32, #tpu.memory_space<vmem>>, vector<8x1408xf32>
    tpu.vector_store %arg11[%c48, %c0_9], %14 {strides = array<i32>} : memref<64x1408xf32, #tpu.memory_space<vmem>>, vector<8x1408xf32>,
    %c56 = arith.constant 56 : index
    %c0_10 = arith.constant 0 : index
    %16 = vector.load %arg11[%c56, %c0_10] : memref<64x1408xf32, #tpu.memory_space<vmem>>, vector<8x1408xf32>
    tpu.vector_store %arg11[%c56, %c0_10], %1 {strides = array<i32>} : memref<64x1408xf32, #tpu.memory_space<vmem>>, vector<8x1408xf32>,
    %c0_11 = arith.constant 0 : index
    %c0_12 = arith.constant 0 : index
    %17 = vector.load %arg2[%c0_11, %c0_12] : memref<8x64xf32, #tpu.memory_space<vmem>>, vector<8x64xf32>
    %c0_13 = arith.constant 0 : index
    %c0_14 = arith.constant 0 : index
    %18 = vector.load %arg11[%c0_13, %c0_14] : memref<64x1408xf32, #tpu.memory_space<vmem>>, vector<64x1408xf32>
    %cst = arith.constant dense<0.000000e+00> : vector<8x1408xf32>
    %19 = tpu.matmul %17, %18, %cst {dimension_numbers = #tpu.dot_dimension_numbers<[1], [0], [0], [1], [0, 0, 1, 1], [], []>} : vector<8x64xf32>, vector<64x1408xf32>, vector<8x1408xf32> -> vector<8x1408xf32>
    %c0_15 = arith.constant 0 : index
    %c0_16 = arith.constant 0 : index
    %20 = vector.load %arg3[%c0_15, %c0_16] : memref<8x1xf32, #tpu.memory_space<vmem>>, vector<8x1xf32>
    %21 = vector.broadcast %20 : vector<8x1xf32> to vector<8x1408xf32>
    %22 = arith.addf %19, %21 : vector<8x1408xf32>
    %cst_17 = arith.constant 0.000000e+00 : f32
    %23 = vector.broadcast %cst_17 : f32 to vector<8x1408xf32>
    %24 = arith.maximumf %22, %23 : vector<8x1408xf32>
    %c0_18 = arith.constant 0 : index
    %c0_19 = arith.constant 0 : index
    %25 = vector.load %arg4[%c0_18, %c0_19] : memref<1x1408xf32, #tpu.memory_space<vmem>>, vector<1x1408xf32>
    %26 = vector.broadcast %25 : vector<1x1408xf32> to vector<8x1408xf32>
    %27 = arith.mulf %24, %26 : vector<8x1408xf32>
    %c262_i32 = arith.constant 262 : i32
    %28 = tpu.dynamic_rotate %27 by %c262_i32 dim 1 : vector<8x1408xf32>, i32 -> vector<8x1408xf32>
    %c0_20 = arith.constant 0 : index
    %c0_21 = arith.constant 0 : index
    %29 = vector.load %arg11[%c0_20, %c0_21] : memref<64x1408xf32, #tpu.memory_space<vmem>>, vector<8x1408xf32>
    tpu.vector_store %arg11[%c0_20, %c0_21], %28 {strides = array<i32>} : memref<64x1408xf32, #tpu.memory_space<vmem>>, vector<8x1408xf32>,
    %c260_i32 = arith.constant 260 : i32
    %30 = tpu.dynamic_rotate %27 by %c260_i32 dim 1 : vector<8x1408xf32>, i32 -> vector<8x1408xf32>
    %c8_22 = arith.constant 8 : index
    %c0_23 = arith.constant 0 : index
    %31 = vector.load %arg11[%c8_22, %c0_23] : memref<64x1408xf32, #tpu.memory_space<vmem>>, vector<8x1408xf32>
    tpu.vector_store %arg11[%c8_22, %c0_23], %30 {strides = array<i32>} : memref<64x1408xf32, #tpu.memory_space<vmem>>, vector<8x1408xf32>,
    %c236_i32 = arith.constant 236 : i32
    %32 = tpu.dynamic_rotate %27 by %c236_i32 dim 1 : vector<8x1408xf32>, i32 -> vector<8x1408xf32>
    %c16_24 = arith.constant 16 : index
    %c0_25 = arith.constant 0 : index
    %33 = vector.load %arg11[%c16_24, %c0_25] : memref<64x1408xf32, #tpu.memory_space<vmem>>, vector<8x1408xf32>
    tpu.vector_store %arg11[%c16_24, %c0_25], %32 {strides = array<i32>} : memref<64x1408xf32, #tpu.memory_space<vmem>>, vector<8x1408xf32>,
    %c234_i32 = arith.constant 234 : i32
    %34 = tpu.dynamic_rotate %27 by %c234_i32 dim 1 : vector<8x1408xf32>, i32 -> vector<8x1408xf32>
    %c24_26 = arith.constant 24 : index
    %c0_27 = arith.constant 0 : index
    %35 = vector.load %arg11[%c24_26, %c0_27] : memref<64x1408xf32, #tpu.memory_space<vmem>>, vector<8x1408xf32>
    tpu.vector_store %arg11[%c24_26, %c0_27], %34 {strides = array<i32>} : memref<64x1408xf32, #tpu.memory_space<vmem>>, vector<8x1408xf32>,
    %c28_i32 = arith.constant 28 : i32
    %36 = tpu.dynamic_rotate %27 by %c28_i32 dim 1 : vector<8x1408xf32>, i32 -> vector<8x1408xf32>
    %c32_28 = arith.constant 32 : index
    %c0_29 = arith.constant 0 : index
    %37 = vector.load %arg11[%c32_28, %c0_29] : memref<64x1408xf32, #tpu.memory_space<vmem>>, vector<8x1408xf32>
    tpu.vector_store %arg11[%c32_28, %c0_29], %36 {strides = array<i32>} : memref<64x1408xf32, #tpu.memory_space<vmem>>, vector<8x1408xf32>,
    %c26_i32 = arith.constant 26 : i32
    %38 = tpu.dynamic_rotate %27 by %c26_i32 dim 1 : vector<8x1408xf32>, i32 -> vector<8x1408xf32>
    %c40_30 = arith.constant 40 : index
    %c0_31 = arith.constant 0 : index
    %39 = vector.load %arg11[%c40_30, %c0_31] : memref<64x1408xf32, #tpu.memory_space<vmem>>, vector<8x1408xf32>
    tpu.vector_store %arg11[%c40_30, %c0_31], %38 {strides = array<i32>} : memref<64x1408xf32, #tpu.memory_space<vmem>>, vector<8x1408xf32>,
    %c2_i32 = arith.constant 2 : i32
    %40 = tpu.dynamic_rotate %27 by %c2_i32 dim 1 : vector<8x1408xf32>, i32 -> vector<8x1408xf32>
    %c48_32 = arith.constant 48 : index
    %c0_33 = arith.constant 0 : index
    %41 = vector.load %arg11[%c48_32, %c0_33] : memref<64x1408xf32, #tpu.memory_space<vmem>>, vector<8x1408xf32>
    tpu.vector_store %arg11[%c48_32, %c0_33], %40 {strides = array<i32>} : memref<64x1408xf32, #tpu.memory_space<vmem>>, vector<8x1408xf32>,
    %c56_34 = arith.constant 56 : index
    %c0_35 = arith.constant 0 : index
    %42 = vector.load %arg11[%c56_34, %c0_35] : memref<64x1408xf32, #tpu.memory_space<vmem>>, vector<8x1408xf32>
    tpu.vector_store %arg11[%c56_34, %c0_35], %27 {strides = array<i32>} : memref<64x1408xf32, #tpu.memory_space<vmem>>, vector<8x1408xf32>,
    %c0_36 = arith.constant 0 : index
    %c0_37 = arith.constant 0 : index
    %43 = vector.load %arg5[%c0_36, %c0_37] : memref<8x64xf32, #tpu.memory_space<vmem>>, vector<8x64xf32>
    %c0_38 = arith.constant 0 : index
    %c0_39 = arith.constant 0 : index
    %44 = vector.load %arg11[%c0_38, %c0_39] : memref<64x1408xf32, #tpu.memory_space<vmem>>, vector<64x1408xf32>
    %cst_40 = arith.constant dense<0.000000e+00> : vector<8x1408xf32>
    %45 = tpu.matmul %43, %44, %cst_40 {dimension_numbers = #tpu.dot_dimension_numbers<[1], [0], [0], [1], [0, 0, 1, 1], [], []>} : vector<8x64xf32>, vector<64x1408xf32>, vector<8x1408xf32> -> vector<8x1408xf32>
    %c0_41 = arith.constant 0 : index
    %c0_42 = arith.constant 0 : index
    %46 = vector.load %arg6[%c0_41, %c0_42] : memref<8x1xf32, #tpu.memory_space<vmem>>, vector<8x1xf32>
    %47 = vector.broadcast %46 : vector<8x1xf32> to vector<8x1408xf32>
    %48 = arith.addf %45, %47 : vector<8x1408xf32>
    %cst_43 = arith.constant 0.000000e+00 : f32
    %49 = vector.broadcast %cst_43 : f32 to vector<8x1408xf32>
    %50 = arith.maximumf %48, %49 : vector<8x1408xf32>
    %c0_44 = arith.constant 0 : index
    %c0_45 = arith.constant 0 : index
    %51 = vector.load %arg7[%c0_44, %c0_45] : memref<8x1xf32, #tpu.memory_space<vmem>>, vector<8x1xf32>
    %52 = vector.broadcast %51 : vector<8x1xf32> to vector<8x1408xf32>
    %53 = arith.mulf %50, %52 : vector<8x1408xf32>
    %cst_46 = arith.constant dense<0.000000e+00> : vector<1408xf32>
    %54 = vector.multi_reduction <add>, %53, %cst_46 [0] : vector<8x1408xf32> to vector<1408xf32>
    %55 = vector.shape_cast %54 : vector<1408xf32> to vector<1x1408xf32>
    %c0_47 = arith.constant 0 : index
    %c0_48 = arith.constant 0 : index
    %56 = vector.load %arg9[%c0_47, %c0_48] : memref<1408x384xf32, #tpu.memory_space<vmem>>, vector<1408x384xf32>
    %cst_49 = arith.constant dense<0.000000e+00> : vector<1x384xf32>
    %57 = tpu.matmul %55, %56, %cst_49 {dimension_numbers = #tpu.dot_dimension_numbers<[1], [0], [0], [1], [0, 0, 1, 1], [], []>} : vector<1x1408xf32>, vector<1408x384xf32>, vector<1x384xf32> -> vector<1x384xf32>
    %c0_50 = arith.constant 0 : index
    %c0_51 = arith.constant 0 : index
    %58 = vector.load %arg8[%c0_50, %c0_51] : memref<1x1xf32, #tpu.memory_space<vmem>>, vector<1x1xf32>
    %59 = vector.broadcast %58 : vector<1x1xf32> to vector<1x384xf32>
    %60 = arith.addf %57, %59 : vector<1x384xf32>
    %c0_52 = arith.constant 0 : index
    %c0_53 = arith.constant 0 : index
    %c0_54 = arith.constant 0 : index
    %61 = vector.load %arg10[%c0_52, %c0_53, %c0_54] : memref<1x1x384xf32, #tpu.memory_space<vmem>>, vector<1x1x384xf32>
    %62 = vector.shape_cast %61 : vector<1x1x384xf32> to vector<1x384xf32>
    %63 = vector.shape_cast %60 : vector<1x384xf32> to vector<1x1x384xf32>
    tpu.vector_store %arg10[%c0_52, %c0_53, %c0_54], %63 {strides = array<i32>} : memref<1x1x384xf32, #tpu.memory_space<vmem>>, vector<1x1x384xf32>,
    return
  }
  func.func @transform_0(%arg0: i32) -> (i32, i32, i32) {
    %c0_i32 = arith.constant 0 : i32
    %c0_i32_0 = arith.constant 0 : i32
    %c0_i32_1 = arith.constant 0 : i32
    return %arg0, %c0_i32, %c0_i32_0 : i32, i32, i32
  }
  func.func @transform_1(%arg0: i32) -> (i32, i32) {
    %c0_i32 = arith.constant 0 : i32
    %c0_i32_0 = arith.constant 0 : i32
    %c0_i32_1 = arith.constant 0 : i32
    return %c0_i32, %c0_i32_0 : i32, i32
  }
  func.func @transform_2(%arg0: i32) -> (i32, i32) {
    %c0_i32 = arith.constant 0 : i32
    %c0_i32_0 = arith.constant 0 : i32
    %c0_i32_1 = arith.constant 0 : i32
    return %c0_i32, %c0_i32_0 : i32, i32
  }
  func.func @transform_3(%arg0: i32) -> (i32, i32) {
    %c0_i32 = arith.constant 0 : i32
    %c0_i32_0 = arith.constant 0 : i32
    %c0_i32_1 = arith.constant 0 : i32
    return %c0_i32, %c0_i32_0 : i32, i32
  }
  func.func @transform_4(%arg0: i32) -> (i32, i32) {
    %c0_i32 = arith.constant 0 : i32
    %c0_i32_0 = arith.constant 0 : i32
    %c0_i32_1 = arith.constant 0 : i32
    return %c0_i32, %c0_i32_0 : i32, i32
  }
  func.func @transform_5(%arg0: i32) -> (i32, i32) {
    %c0_i32 = arith.constant 0 : i32
    %c0_i32_0 = arith.constant 0 : i32
    %c0_i32_1 = arith.constant 0 : i32
    return %c0_i32, %c0_i32_0 : i32, i32
  }
  func.func @transform_6(%arg0: i32) -> (i32, i32) {
    %c0_i32 = arith.constant 0 : i32
    %c0_i32_0 = arith.constant 0 : i32
    %c0_i32_1 = arith.constant 0 : i32
    return %c0_i32, %c0_i32_0 : i32, i32
  }
  func.func @transform_7(%arg0: i32) -> (i32, i32) {
    %c0_i32 = arith.constant 0 : i32
    %c0_i32_0 = arith.constant 0 : i32
    %c0_i32_1 = arith.constant 0 : i32
    return %c0_i32, %c0_i32_0 : i32, i32
  }
  func.func @transform_8(%arg0: i32) -> (i32, i32) {
    %c0_i32 = arith.constant 0 : i32
    %c0_i32_0 = arith.constant 0 : i32
    %c0_i32_1 = arith.constant 0 : i32
    return %c0_i32, %c0_i32_0 : i32, i32
  }
  func.func @transform_9(%arg0: i32) -> (i32, i32, i32) {
    %c0_i32 = arith.constant 0 : i32
    %c0_i32_0 = arith.constant 0 : i32
    %c0_i32_1 = arith.constant 0 : i32
    return %arg0, %c0_i32, %c0_i32_0 : i32, i32, i32
  }
}

</mosaic_0001>

<llo_original>
// kernel: squeeze.1
$region0: #{squeeze.1}
  %s0 = inlined_call_operand.vmem [shape: f32[2,286], index: 0, kind: input, shape index: {}]
  %s1 = inlined_call_operand.vmem [shape: f32[2,13,2,11], index: 1, kind: output, shape index: {}]
  $region1: #{squeeze.1} parent=0
    #allocation0 [shape = 'u8[106496]{0}', space=vmem, size = 0x1a000, scoped, tag = 'scoped mem for output reshape']
    #allocation1 [shape = 'u8[12288]{0}', space=vmem, size = 0x3000, scoped, tag = 'scoped mem for input reshape']
    %s3 = sshllo.u32 0, 2
    %s4 = smul.addr 2, 2
    %s5 = scalar_lea.vmem %s0, %s4
    %v6 = vld [vmem:[%s5] sm:%s3]
    %s7 = scalar_lea.vmem [#allocation1], 16
    %8 = vst [vmem:[%s7] sm:%s3] %v6
    %s9 = scalar_lea.vmem %s0, 2
    %v10 = vld [vmem:[%s9] sm:%s3]
    %s11 = scalar_lea.vmem [#allocation1], 8
    %12 = vst [vmem:[%s11] sm:%s3] %v10
    %v13 = vld [vmem:[%s0] sm:%s3]
    %14 = vst [vmem:[#allocation1] sm:%s3] %v13
    %v15 = vld [vmem:[#allocation1] sm:$0x3]
    %vm16 = vcmask 89088
    %17 = vst.msk [vmem:[#allocation0] ss:$104 sm:$0x3] %vm16, %v15
    %s18 = scalar_lea.vmem [#allocation1], 8
    %v19 = vld [vmem:[%s18] sm:$0x3]
    %20 = vrot.lane.b32.xlu0 %v19, 124
    %v21 = vpop.permute.xlu0 %20
    %vm22 = vcmask 89088
    %s23 = scalar_lea.vmem [#allocation0], 48
    %24 = vst.msk [vmem:[%s23] ss:$104 sm:$0x3] %vm22, %v21
    %s25 = scalar_lea.vmem [#allocation1], 16
    %v26 = vld [vmem:[%s25] sm:$0x3]
    %27 = vrot.lane.b32.xlu0 %v26, 120
    %v28 = vpop.permute.xlu0 %27
    %vm29 = vcmask 89088
    %s30 = scalar_lea.vmem [#allocation0], 96
    %31 = vst.msk [vmem:[%s30] ss:$104 sm:$0x3] %vm29, %v28
    %v32 = vld [vmem:[#allocation1] sm:$0x3]
    %33 = vrot.lane.b32.xlu0 %v32, 117
    %v34 = vpop.permute.xlu0 %33
    %vm35 = vcmask 89088
    %s36 = scalar_lea.vmem [#allocation0], 1
    %37 = vst.msk [vmem:[%s36] ss:$104 sm:$0x3] %vm35, %v34
    %s38 = scalar_lea.vmem [#allocation1], 8
    %v39 = vld [vmem:[%s38] sm:$0x3]
    %40 = vrot.lane.b32.xlu0 %v39, 113
    %v41 = vpop.permute.xlu0 %40
    %vm42 = vcmask 89088
    %s43 = scalar_lea.vmem [#allocation0], 49
    %44 = vst.msk [vmem:[%s43] ss:$104 sm:$0x3] %vm42, %v41
    %s45 = scalar_lea.vmem [#allocation1], 16
    %v46 = vld [vmem:[%s45] sm:$0x3]
    %47 = vrot.lane.b32.xlu0 %v46, 109
    %v48 = vpop.permute.xlu0 %47
    %vm49 = vcmask 89088
    %s50 = scalar_lea.vmem [#allocation0], 97
    %51 = vst.msk [vmem:[%s50] ss:$104 sm:$0x3] %vm49, %v48
    %v52 = vld [vmem:[#allocation1] sm:$0x3]
    %53 = vrot.lane.b32.xlu0 %v52, 106
    %v54 = vpop.permute.xlu0 %53
    %vm55 = vcmask 89088
    %s56 = scalar_lea.vmem [#allocation0], 8
    %57 = vst.msk [vmem:[%s56] ss:$104 sm:$0x3] %vm55, %v54
    %s58 = scalar_lea.vmem [#allocation1], 9
    %s59 = smov 3
    %v60 = vld [vmem:[%s58] ss:$-1 sm:%s59]
    %61 = vrot.lane.b32.xlu0 %v60, 102
    %v62 = vpop.permute.xlu0 %61
    %vm63 = vcmask 89088
    %s64 = scalar_lea.vmem [#allocation0], 160
    %65 = vst.msk [vmem:[%s64] ss:$-104 sm:$0x3] %vm63, %v62
    %v66 = vld [vmem:[#allocation1] sm:$0x3]
    %67 = vrot.lane.b32.xlu0 %v66, 95
    %v68 = vpop.permute.xlu0 %67
    %vm69 = vcmask 89088
    %s70 = scalar_lea.vmem [#allocation0], 9
    %71 = vst.msk [vmem:[%s70] ss:$104 sm:$0x3] %vm69, %v68
    %s72 = scalar_lea.vmem [#allocation1], 9
    %s73 = smov 3
    %v74 = vld [vmem:[%s72] ss:$-1 sm:%s73]
    %75 = vrot.lane.b32.xlu0 %v74, 91
    %v76 = vpop.permute.xlu0 %75
    %vm77 = vcmask 89088
    %s78 = scalar_lea.vmem [#allocation0], 161
    %79 = vst.msk [vmem:[%s78] ss:$-104 sm:$0x3] %vm77, %v76
    %v80 = vld [vmem:[#allocation1] sm:$0x3]
    %81 = vrot.lane.b32.xlu0 %v80, 84
    %v82 = vpop.permute.xlu0 %81
    %vm83 = vcmask 89088
    %s84 = scalar_lea.vmem [#allocation0], 16
    %85 = vst.msk [vmem:[%s84] ss:$104 sm:$0x3] %vm83, %v82
    %s86 = scalar_lea.vmem [#allocation1], 8
    %v87 = vld [vmem:[%s86] sm:$0x3]
    %88 = vrot.lane.b32.xlu0 %v87, 80
    %v89 = vpop.permute.xlu0 %88
    %vm90 = vcmask 89088
    %s91 = scalar_lea.vmem [#allocation0], 64
    %92 = vst.msk [vmem:[%s91] ss:$104 sm:$0x3] %vm90, %v89
    %v93 = vld [vmem:[#allocation1] sm:$0x3]
    %94 = vrot.lane.b32.xlu0 %v93, 73
    %v95 = vpop.permute.xlu0 %94
    %vm96 = vcmask 89088
    %s97 = scalar_lea.vmem [#allocation0], 17
    %98 = vst.msk [vmem:[%s97] ss:$104 sm:$0x3] %vm96, %v95
    %s99 = scalar_lea.vmem [#allocation1], 8
    %v100 = vld [vmem:[%s99] sm:$0x3]
    %101 = vrot.lane.b32.xlu0 %v100, 69
    %v102 = vpop.permute.xlu0 %101
    %vm103 = vcmask 89088
    %s104 = scalar_lea.vmem [#allocation0], 65
    %105 = vst.msk [vmem:[%s104] ss:$104 sm:$0x3] %vm103, %v102
    %s106 = scalar_lea.vmem [#allocation1], 1
    %s107 = smov 3
    %v108 = vld [vmem:[%s106] ss:$-1 sm:%s107]
    %109 = vrot.lane.b32.xlu0 %v108, 62
    %v110 = vpop.permute.xlu0 %109
    %vm111 = vcmask 89088
    %s112 = scalar_lea.vmem [#allocation0], 128
    %113 = vst.msk [vmem:[%s112] ss:$-104 sm:$0x3] %vm111, %v110
    %s114 = scalar_lea.vmem [#allocation1], 8
    %v115 = vld [vmem:[%s114] sm:$0x3]
    %116 = vrot.lane.b32.xlu0 %v115, 58
    %v117 = vpop.permute.xlu0 %116
    %vm118 = vcmask 89088
    %s119 = scalar_lea.vmem [#allocation0], 72
    %120 = vst.msk [vmem:[%s119] ss:$104 sm:$0x3] %vm118, %v117
    %s121 = scalar_lea.vmem [#allocation1], 1
    %s122 = smov 3
    %v123 = vld [vmem:[%s121] ss:$-1 sm:%s122]
    %124 = vrot.lane.b32.xlu0 %v123, 51
    %v125 = vpop.permute.xlu0 %124
    %vm126 = vcmask 89088
    %s127 = scalar_lea.vmem [#allocation0], 129
    %128 = vst.msk [vmem:[%s127] ss:$-104 sm:$0x3] %vm126, %v125
    %s129 = scalar_lea.vmem [#allocation1], 8
    %v130 = vld [vmem:[%s129] sm:$0x3]
    %131 = vrot.lane.b32.xlu0 %v130, 47
    %v132 = vpop.permute.xlu0 %131
    %vm133 = vcmask 89088
    %s134 = scalar_lea.vmem [#allocation0], 73
    %135 = vst.msk [vmem:[%s134] ss:$104 sm:$0x3] %vm133, %v132
    %v136 = vld [vmem:[#allocation1] sm:$0x3]
    %137 = vrot.lane.b32.xlu0 %v136, 40
    %v138 = vpop.permute.xlu0 %137
    %vm139 = vcmask 89088
    %s140 = scalar_lea.vmem [#allocation0], 32
    %141 = vst.msk [vmem:[%s140] ss:$104 sm:$0x3] %vm139, %v138
    %s142 = scalar_lea.vmem [#allocation1], 8
    %v143 = vld [vmem:[%s142] sm:$0x3]
    %144 = vrot.lane.b32.xlu0 %v143, 36
    %v145 = vpop.permute.xlu0 %144
    %vm146 = vcmask 89088
    %s147 = scalar_lea.vmem [#allocation0], 80
    %148 = vst.msk [vmem:[%s147] ss:$104 sm:$0x3] %vm146, %v145
    %v149 = vld [vmem:[#allocation1] sm:$0x3]
    %150 = vrot.lane.b32.xlu0 %v149, 29
    %v151 = vpop.permute.xlu0 %150
    %vm152 = vcmask 89088
    %s153 = scalar_lea.vmem [#allocation0], 33
    %154 = vst.msk [vmem:[%s153] ss:$104 sm:$0x3] %vm152, %v151
    %s155 = scalar_lea.vmem [#allocation1], 8
    %v156 = vld [vmem:[%s155] sm:$0x3]
    %157 = vrot.lane.b32.xlu0 %v156, 25
    %v158 = vpop.permute.xlu0 %157
    %vm159 = vcmask 89088
    %s160 = scalar_lea.vmem [#allocation0], 81
    %161 = vst.msk [vmem:[%s160] ss:$104 sm:$0x3] %vm159, %v158
    %v162 = vld [vmem:[#allocation1] sm:$0x3]
    %163 = vrot.lane.b32.xlu0 %v162, 18
    %v164 = vpop.permute.xlu0 %163
    %vm165 = vcmask 89088
    %s166 = scalar_lea.vmem [#allocation0], 40
    %167 = vst.msk [vmem:[%s166] ss:$104 sm:$0x3] %vm165, %v164
    %s168 = scalar_lea.vmem [#allocation1], 9
    %s169 = smov 3
    %v170 = vld [vmem:[%s168] ss:$-1 sm:%s169]
    %171 = vrot.lane.b32.xlu0 %v170, 14
    %v172 = vpop.permute.xlu0 %171
    %vm173 = vcmask 89088
    %s174 = scalar_lea.vmem [#allocation0], 192
    %175 = vst.msk [vmem:[%s174] ss:$-104 sm:$0x3] %vm173, %v172
    %v176 = vld [vmem:[#allocation1] sm:$0x3]
    %s177 = scalar_lea.vmem [#allocation1], 8
    %v178 = vld [vmem:[%s177] sm:$0x3]
    %vm179 = vcmask 990208
    %v180 = vsel %vm179, %v178, %v176
    %181 = vrot.lane.b32.xlu0 %v180, 7
    %v182 = vpop.permute.xlu0 %181
    %vm183 = vcmask 56320
    %s184 = scalar_lea.vmem [#allocation0], 41
    %185 = vst.msk [vmem:[%s184] ss:$104 sm:$0x3] %vm183, %v182
    %vm186 = vcmask 89144
    %s187 = scalar_lea.vmem [#allocation0], 41
    %188 = vst.msk [vmem:[%s187] ss:$104 sm:$0x3] %vm186, %v182
    %s189 = scalar_lea.vmem [#allocation1], 9
    %s190 = smov 3
    %v191 = vld [vmem:[%s189] ss:$-1 sm:%s190]
    %s192 = scalar_lea.vmem [#allocation1], 17
    %s193 = smov 3
    %v194 = vld [vmem:[%s192] ss:$-1 sm:%s193]
    %vm195 = vcmask 1022976
    %v196 = vsel %vm195, %v194, %v191
    %197 = vrot.lane.b32.xlu0 %v196, 3
    %v198 = vpop.permute.xlu0 %197
    %vm199 = vcmask 23552
    %s200 = scalar_lea.vmem [#allocation0], 193
    %201 = vst.msk [vmem:[%s200] ss:$-104 sm:$0x3] %vm199, %v198
    %vm202 = vcmask 89112
    %s203 = scalar_lea.vmem [#allocation0], 193
    %204 = vst.msk [vmem:[%s203] ss:$-104 sm:$0x3] %vm202, %v198
    %s206 = sshllo.u32 0, 2
    %v208 = vld [vmem:[#allocation0] sm:%s206]
    %s209 = sshllo.u32 0, 2
    %210 = vst [vmem:[%s1] sm:%s209] %v208
    %s211 = scalar_lea.vmem [#allocation0], 8
    %v212 = vld [vmem:[%s211] sm:%s206]
    %s213 = sshllo.u32 0, 2
    %s214 = scalar_lea.vmem %s1, 2
    %215 = vst [vmem:[%s214] sm:%s213] %v212
    %s216 = scalar_lea.vmem [#allocation0], 16
    %v217 = vld [vmem:[%s216] sm:%s206]
    %s218 = sshllo.u32 0, 2
    %s219 = smul.addr 2, 2
    %s220 = scalar_lea.vmem %s1, %s219
    %221 = vst [vmem:[%s220] sm:%s218] %v217
    %s222 = scalar_lea.vmem [#allocation0], 24
    %v223 = vld [vmem:[%s222] sm:%s206]
    %s224 = sshllo.u32 0, 2
    %s225 = smul.addr 2, 3
    %s226 = scalar_lea.vmem %s1, %s225
    %227 = vst [vmem:[%s226] sm:%s224] %v223
    %s228 = scalar_lea.vmem [#allocation0], 32
    %v229 = vld [vmem:[%s228] sm:%s206]
    %s230 = sshllo.u32 0, 2
    %s231 = smul.addr 2, 4
    %s232 = scalar_lea.vmem %s1, %s231
    %233 = vst [vmem:[%s232] sm:%s230] %v229
    %s234 = scalar_lea.vmem [#allocation0], 40
    %v235 = vld [vmem:[%s234] sm:%s206]
    %s236 = sshllo.u32 0, 2
    %s237 = smul.addr 2, 5
    %s238 = scalar_lea.vmem %s1, %s237
    %239 = vst [vmem:[%s238] sm:%s236] %v235
    %s240 = scalar_lea.vmem [#allocation0], 48
    %v241 = vld [vmem:[%s240] sm:%s206]
    %s242 = sshllo.u32 0, 2
    %s243 = smul.addr 2, 6
    %s244 = scalar_lea.vmem %s1, %s243
    %245 = vst [vmem:[%s244] sm:%s242] %v241
    %s246 = scalar_lea.vmem [#allocation0], 56
    %v247 = vld [vmem:[%s246] sm:%s206]
    %s248 = sshllo.u32 0, 2
    %s249 = smul.addr 2, 7
    %s250 = scalar_lea.vmem %s1, %s249
    %251 = vst [vmem:[%s250] sm:%s248] %v247
    %s252 = scalar_lea.vmem [#allocation0], 64
    %v253 = vld [vmem:[%s252] sm:%s206]
    %s254 = sshllo.u32 0, 2
    %s255 = smul.addr 2, 8
    %s256 = scalar_lea.vmem %s1, %s255
    %257 = vst [vmem:[%s256] sm:%s254] %v253
    %s258 = scalar_lea.vmem [#allocation0], 72
    %v259 = vld [vmem:[%s258] sm:%s206]
    %s260 = sshllo.u32 0, 2
    %s261 = smul.addr 2, 9
    %s262 = scalar_lea.vmem %s1, %s261
    %263 = vst [vmem:[%s262] sm:%s260] %v259
    %s264 = scalar_lea.vmem [#allocation0], 80
    %v265 = vld [vmem:[%s264] sm:%s206]
    %s266 = sshllo.u32 0, 2
    %s267 = smul.addr 2, 10
    %s268 = scalar_lea.vmem %s1, %s267
    %269 = vst [vmem:[%s268] sm:%s266] %v265
    %s270 = scalar_lea.vmem [#allocation0], 88
    %v271 = vld [vmem:[%s270] sm:%s206]
    %s272 = sshllo.u32 0, 2
    %s273 = smul.addr 2, 11
    %s274 = scalar_lea.vmem %s1, %s273
    %275 = vst [vmem:[%s274] sm:%s272] %v271
    %s276 = scalar_lea.vmem [#allocation0], 96
    %v277 = vld [vmem:[%s276] sm:%s206]
    %s278 = sshllo.u32 0, 2
    %s279 = smul.addr 2, 12
    %s280 = scalar_lea.vmem %s1, %s279
    %281 = vst [vmem:[%s280] sm:%s278] %v277
    %s282 = scalar_lea.vmem [#allocation0], 104
    %v283 = vld [vmem:[%s282] sm:%s206]
    %s284 = sshllo.u32 0, 2
    %s285 = smul.addr 2, 13
    %s286 = scalar_lea.vmem %s1, %s285
    %287 = vst [vmem:[%s286] sm:%s284] %v283
    %s288 = scalar_lea.vmem [#allocation0], 112
    %v289 = vld [vmem:[%s288] sm:%s206]
    %s290 = sshllo.u32 0, 2
    %s291 = smul.addr 2, 14
    %s292 = scalar_lea.vmem %s1, %s291
    %293 = vst [vmem:[%s292] sm:%s290] %v289
    %s294 = scalar_lea.vmem [#allocation0], 120
    %v295 = vld [vmem:[%s294] sm:%s206]
    %s296 = sshllo.u32 0, 2
    %s297 = smul.addr 2, 15
    %s298 = scalar_lea.vmem %s1, %s297
    %299 = vst [vmem:[%s298] sm:%s296] %v295
    %s300 = scalar_lea.vmem [#allocation0], 128
    %v301 = vld [vmem:[%s300] sm:%s206]
    %s302 = sshllo.u32 0, 2
    %s303 = smul.addr 2, 16
    %s304 = scalar_lea.vmem %s1, %s303
    %305 = vst [vmem:[%s304] sm:%s302] %v301
    %s306 = scalar_lea.vmem [#allocation0], 136
    %v307 = vld [vmem:[%s306] sm:%s206]
    %s308 = sshllo.u32 0, 2
    %s309 = smul.addr 2, 17
    %s310 = scalar_lea.vmem %s1, %s309
    %311 = vst [vmem:[%s310] sm:%s308] %v307
    %s312 = scalar_lea.vmem [#allocation0], 144
    %v313 = vld [vmem:[%s312] sm:%s206]
    %s314 = sshllo.u32 0, 2
    %s315 = smul.addr 2, 18
    %s316 = scalar_lea.vmem %s1, %s315
    %317 = vst [vmem:[%s316] sm:%s314] %v313
    %s318 = scalar_lea.vmem [#allocation0], 152
    %v319 = vld [vmem:[%s318] sm:%s206]
    %s320 = sshllo.u32 0, 2
    %s321 = smul.addr 2, 19
    %s322 = scalar_lea.vmem %s1, %s321
    %323 = vst [vmem:[%s322] sm:%s320] %v319
    %s324 = scalar_lea.vmem [#allocation0], 160
    %v325 = vld [vmem:[%s324] sm:%s206]
    %s326 = sshllo.u32 0, 2
    %s327 = smul.addr 2, 20
    %s328 = scalar_lea.vmem %s1, %s327
    %329 = vst [vmem:[%s328] sm:%s326] %v325
    %s330 = scalar_lea.vmem [#allocation0], 168
    %v331 = vld [vmem:[%s330] sm:%s206]
    %s332 = sshllo.u32 0, 2
    %s333 = smul.addr 2, 21
    %s334 = scalar_lea.vmem %s1, %s333
    %335 = vst [vmem:[%s334] sm:%s332] %v331
    %s336 = scalar_lea.vmem [#allocation0], 176
    %v337 = vld [vmem:[%s336] sm:%s206]
    %s338 = sshllo.u32 0, 2
    %s339 = smul.addr 2, 22
    %s340 = scalar_lea.vmem %s1, %s339
    %341 = vst [vmem:[%s340] sm:%s338] %v337
    %s342 = scalar_lea.vmem [#allocation0], 184
    %v343 = vld [vmem:[%s342] sm:%s206]
    %s344 = sshllo.u32 0, 2
    %s345 = smul.addr 2, 23
    %s346 = scalar_lea.vmem %s1, %s345
    %347 = vst [vmem:[%s346] sm:%s344] %v343
    %s348 = scalar_lea.vmem [#allocation0], 192
    %v349 = vld [vmem:[%s348] sm:%s206]
    %s350 = sshllo.u32 0, 2
    %s351 = smul.addr 2, 24
    %s352 = scalar_lea.vmem %s1, %s351
    %353 = vst [vmem:[%s352] sm:%s350] %v349
    %s354 = scalar_lea.vmem [#allocation0], 200
    %v355 = vld [vmem:[%s354] sm:%s206]
    %s356 = sshllo.u32 0, 2
    %s357 = smul.addr 2, 25
    %s358 = scalar_lea.vmem %s1, %s357
    %359 = vst [vmem:[%s358] sm:%s356] %v355

// kernel: temporal_conv_net_forward.1
$region0: #{temporal_conv_net_forward.1}
  #allocation0 [shape = 'u32[]', space=smem, size = 0x4, offset = 0x4, fixed_abs, tag = 'smem constant byte address 0x4 - core index']
  #allocation1 [shape = 'u32[144,128]{1,0:T(1,128)}', space=vmem, size = 0x12000, scoped, tag = 'internal scratch']
  #allocation2 [shape = 'f32[64,1408]{1,0:T(8,128)}', space=vmem, size = 0x58000, scoped, tag = 'scratch operand']
  #allocation3 [shape = 'f32[1,1]{1,0:T(1,128)S(1)}', space=vmem, size = 0x200, scoped, tag = 'scoped memory for temporal_conv_net_forward.1']
  %s0 = inlined_call_operand.vmem [shape: f32[2,8,1408], index: 0, kind: input, shape index: {}]
  %s1 = inlined_call_operand.vmem [shape: f32[8,64], index: 1, kind: input, shape index: {}]
  %s2 = inlined_call_operand.vmem [shape: f32[8,1], index: 2, kind: input, shape index: {}]
  %s3 = inlined_call_operand.vmem [shape: f32[1,1408], index: 3, kind: input, shape index: {}]
  %s4 = inlined_call_operand.vmem [shape: f32[8,64], index: 4, kind: input, shape index: {}]
  %s5 = inlined_call_operand.vmem [shape: f32[8,1], index: 5, kind: input, shape index: {}]
  %s6 = inlined_call_operand.vmem [shape: f32[8,1], index: 6, kind: input, shape index: {}]
  %s7 = inlined_call_operand.<no memory space> [shape: f32[1,1], index: 7, kind: input, shape index: {}]
  %s8 = inlined_call_operand.vmem [shape: f32[1408,384], index: 8, kind: input, shape index: {}]
  %s9 = inlined_call_operand.vmem [shape: f32[2,1,384], index: 9, kind: output, shape index: {}]
  %s10 = sld [smem:[#allocation0]]
  $region69: #{temporal_conv_net_forward.1} parent=0
    _
  %s12 = ssub.s32 1, %s10
  %s13 = scalar_select 0, %s12, %s10
  %v14 = vstv %s7
  %15 = vst [vmem:[#allocation3] sm:$0x1] %v14
  loop: start=0, step=1, limit=4
  $region2: #{temporal_conv_net_forward.1} parent=0 // loop_pre_header
    _
  $region3: #{temporal_conv_net_forward.1} parent=0 // loop_header
    %s17 = sphi 0, %s21
    %p18 = scmp.ge.s32.totalorder %s17, 4
    %s27 = sphi 0, %s29
    %s30 = sphi 0, %s27
    %s31 = sphi 0, %s30
    %s47 = sphi 0, %s31
    %s51 = sphi 0, %s51
    %s53 = sphi 0, %s51
    %s54 = sphi 0, %s53
    %s68 = sphi 0, %s54
    %s72 = sphi 0, %s72
    %s74 = sphi 0, %s72
    %s75 = sphi 0, %s74
    %s89 = sphi 0, %s75
    %s93 = sphi 0, %s93
    %s95 = sphi 0, %s93
    %s96 = sphi 0, %s95
    %s110 = sphi 0, %s96
    %s114 = sphi 0, %s114
    %s116 = sphi 0, %s114
    %s117 = sphi 0, %s116
    %s131 = sphi 0, %s117
    %s135 = sphi 0, %s135
    %s137 = sphi 0, %s135
    %s138 = sphi 0, %s137
    %s152 = sphi 0, %s138
    %s156 = sphi 0, %s156
    %s158 = sphi 0, %s156
    %s159 = sphi 0, %s158
    %s173 = sphi 0, %s159
    %s177 = sphi 0, %s177
    %s179 = sphi 0, %s177
    %s180 = sphi 0, %s179
    %s194 = sphi 0, %s180
    %s198 = sphi 0, %s198
    %s200 = sphi 0, %s198
    %s201 = sphi 0, %s200
    %s215 = sphi 0, %s201
    %s221 = sphi 0, %s223
    %s224 = sphi 0, %s221
    %s225 = sphi 0, %s224
    %s241 = sphi 0, %s225
  $region4: #{temporal_conv_net_forward.1} parent=0 // loop_header_branch
    %20 = sbr.rel (%p18) target = $region8
  $region5: #{temporal_conv_net_forward.1} parent=0 // loop_body
    %s22 = ssub.s32 %s17, 1
    %s23 = ssub.s32 %s17, 2
    %s24 = sadd.s32 %s17, 1
    %s25 = ssub.s32 %s17, %s24
    %p26 = scmp.eq.s32.totalorder %s25, 0
    %s28 = sadd.s32 %s27, 1
    %s29 = scalar_select %p26, %s27, %s28
    %p32 = pneg %p26
    %p33 = scmp.eq.s32.totalorder %s17, 1
    %p34 = por %p32, %p33
    %p35 = scmp.ne.s32.totalorder %s27, %s30
    %p36 = scmp.eq.s32.totalorder %s17, 0
    %p37 = por %p35, %p36
    %p38 = scmp.ne.s32.totalorder %s27, %s30
    %p39 = scmp.eq.s32.totalorder %s22, 1
    %p40 = por %p38, %p39
    %p41 = scmp.ne.s32.totalorder %s30, %s31
    %p42 = scmp.eq.s32.totalorder %s22, 0
    %p43 = por %p41, %p42
    %p44 = scmp.ne.s32.totalorder %s30, %s31
    %p45 = scmp.eq.s32.totalorder %s23, 1
    %p46 = por %p44, %p45
    %p48 = scmp.ne.s32.totalorder %s31, %s47
    %p49 = scmp.eq.s32.totalorder %s23, 0
    %p50 = por %p48, %p49
    %s52 = sadd.s32 %s51, 1
    %p55 = scmp.eq.s32.totalorder %s17, 1
    %p56 = scmp.ne.s32.totalorder %s51, %s53
    %p57 = scmp.eq.s32.totalorder %s17, 0
    %p58 = por %p56, %p57
    %p59 = scmp.ne.s32.totalorder %s51, %s53
    %p60 = scmp.eq.s32.totalorder %s22, 1
    %p61 = por %p59, %p60
    %p62 = scmp.ne.s32.totalorder %s53, %s54
    %p63 = scmp.eq.s32.totalorder %s22, 0
    %p64 = por %p62, %p63
    %p65 = scmp.ne.s32.totalorder %s53, %s54
    %p66 = scmp.eq.s32.totalorder %s23, 1
    %p67 = por %p65, %p66
    %p69 = scmp.ne.s32.totalorder %s54, %s68
    %p70 = scmp.eq.s32.totalorder %s23, 0
    %p71 = por %p69, %p70
    %s73 = sadd.s32 %s72, 1
    %p76 = scmp.eq.s32.totalorder %s17, 1
    %p77 = scmp.ne.s32.totalorder %s72, %s74
    %p78 = scmp.eq.s32.totalorder %s17, 0
    %p79 = por %p77, %p78
    %p80 = scmp.ne.s32.totalorder %s72, %s74
    %p81 = scmp.eq.s32.totalorder %s22, 1
    %p82 = por %p80, %p81
    %p83 = scmp.ne.s32.totalorder %s74, %s75
    %p84 = scmp.eq.s32.totalorder %s22, 0
    %p85 = por %p83, %p84
    %p86 = scmp.ne.s32.totalorder %s74, %s75
    %p87 = scmp.eq.s32.totalorder %s23, 1
    %p88 = por %p86, %p87
    %p90 = scmp.ne.s32.totalorder %s75, %s89
    %p91 = scmp.eq.s32.totalorder %s23, 0
    %p92 = por %p90, %p91
    %s94 = sadd.s32 %s93, 1
    %p97 = scmp.eq.s32.totalorder %s17, 1
    %p98 = scmp.ne.s32.totalorder %s93, %s95
    %p99 = scmp.eq.s32.totalorder %s17, 0
    %p100 = por %p98, %p99
    %p101 = scmp.ne.s32.totalorder %s93, %s95
    %p102 = scmp.eq.s32.totalorder %s22, 1
    %p103 = por %p101, %p102
    %p104 = scmp.ne.s32.totalorder %s95, %s96
    %p105 = scmp.eq.s32.totalorder %s22, 0
    %p106 = por %p104, %p105
    %p107 = scmp.ne.s32.totalorder %s95, %s96
    %p108 = scmp.eq.s32.totalorder %s23, 1
    %p109 = por %p107, %p108
    %p111 = scmp.ne.s32.totalorder %s96, %s110
    %p112 = scmp.eq.s32.totalorder %s23, 0
    %p113 = por %p111, %p112
    %s115 = sadd.s32 %s114, 1
    %p118 = scmp.eq.s32.totalorder %s17, 1
    %p119 = scmp.ne.s32.totalorder %s114, %s116
    %p120 = scmp.eq.s32.totalorder %s17, 0
    %p121 = por %p119, %p120
    %p122 = scmp.ne.s32.totalorder %s114, %s116
    %p123 = scmp.eq.s32.totalorder %s22, 1
    %p124 = por %p122, %p123
    %p125 = scmp.ne.s32.totalorder %s116, %s117
    %p126 = scmp.eq.s32.totalorder %s22, 0
    %p127 = por %p125, %p126
    %p128 = scmp.ne.s32.totalorder %s116, %s117
    %p129 = scmp.eq.s32.totalorder %s23, 1
    %p130 = por %p128, %p129
    %p132 = scmp.ne.s32.totalorder %s117, %s131
    %p133 = scmp.eq.s32.totalorder %s23, 0
    %p134 = por %p132, %p133
    %s136 = sadd.s32 %s135, 1
    %p139 = scmp.eq.s32.totalorder %s17, 1
    %p140 = scmp.ne.s32.totalorder %s135, %s137
    %p141 = scmp.eq.s32.totalorder %s17, 0
    %p142 = por %p140, %p141
    %p143 = scmp.ne.s32.totalorder %s135, %s137
    %p144 = scmp.eq.s32.totalorder %s22, 1
    %p145 = por %p143, %p144
    %p146 = scmp.ne.s32.totalorder %s137, %s138
    %p147 = scmp.eq.s32.totalorder %s22, 0
    %p148 = por %p146, %p147
    %p149 = scmp.ne.s32.totalorder %s137, %s138
    %p150 = scmp.eq.s32.totalorder %s23, 1
    %p151 = por %p149, %p150
    %p153 = scmp.ne.s32.totalorder %s138, %s152
    %p154 = scmp.eq.s32.totalorder %s23, 0
    %p155 = por %p153, %p154
    %s157 = sadd.s32 %s156, 1
    %p160 = scmp.eq.s32.totalorder %s17, 1
    %p161 = scmp.ne.s32.totalorder %s156, %s158
    %p162 = scmp.eq.s32.totalorder %s17, 0
    %p163 = por %p161, %p162
    %p164 = scmp.ne.s32.totalorder %s156, %s158
    %p165 = scmp.eq.s32.totalorder %s22, 1
    %p166 = por %p164, %p165
    %p167 = scmp.ne.s32.totalorder %s158, %s159
    %p168 = scmp.eq.s32.totalorder %s22, 0
    %p169 = por %p167, %p168
    %p170 = scmp.ne.s32.totalorder %s158, %s159
    %p171 = scmp.eq.s32.totalorder %s23, 1
    %p172 = por %p170, %p171
    %p174 = scmp.ne.s32.totalorder %s159, %s173
    %p175 = scmp.eq.s32.totalorder %s23, 0
    %p176 = por %p174, %p175
    %s178 = sadd.s32 %s177, 1
    %p181 = scmp.eq.s32.totalorder %s17, 1
    %p182 = scmp.ne.s32.totalorder %s177, %s179
    %p183 = scmp.eq.s32.totalorder %s17, 0
    %p184 = por %p182, %p183
    %p185 = scmp.ne.s32.totalorder %s177, %s179
    %p186 = scmp.eq.s32.totalorder %s22, 1
    %p187 = por %p185, %p186
    %p188 = scmp.ne.s32.totalorder %s179, %s180
    %p189 = scmp.eq.s32.totalorder %s22, 0
    %p190 = por %p188, %p189
    %p191 = scmp.ne.s32.totalorder %s179, %s180
    %p192 = scmp.eq.s32.totalorder %s23, 1
    %p193 = por %p191, %p192
    %p195 = scmp.ne.s32.totalorder %s180, %s194
    %p196 = scmp.eq.s32.totalorder %s23, 0
    %p197 = por %p195, %p196
    %s199 = sadd.s32 %s198, 1
    %p202 = scmp.eq.s32.totalorder %s17, 1
    %p203 = scmp.ne.s32.totalorder %s198, %s200
    %p204 = scmp.eq.s32.totalorder %s17, 0
    %p205 = por %p203, %p204
    %p206 = scmp.ne.s32.totalorder %s198, %s200
    %p207 = scmp.eq.s32.totalorder %s22, 1
    %p208 = por %p206, %p207
    %p209 = scmp.ne.s32.totalorder %s200, %s201
    %p210 = scmp.eq.s32.totalorder %s22, 0
    %p211 = por %p209, %p210
    %p212 = scmp.ne.s32.totalorder %s200, %s201
    %p213 = scmp.eq.s32.totalorder %s23, 1
    %p214 = por %p212, %p213
    %p216 = scmp.ne.s32.totalorder %s201, %s215
    %p217 = scmp.eq.s32.totalorder %s23, 0
    %p218 = por %p216, %p217
    %s219 = ssub.s32 %s17, %s24
    %p220 = scmp.eq.s32.totalorder %s219, 0
    %s222 = sadd.s32 %s221, 1
    %s223 = scalar_select %p220, %s221, %s222
    %p226 = pneg %p220
    %p227 = scmp.eq.s32.totalorder %s17, 1
    %p228 = por %p226, %p227
    %p229 = scmp.ne.s32.totalorder %s221, %s224
    %p230 = scmp.eq.s32.totalorder %s17, 0
    %p231 = por %p229, %p230
    %p232 = scmp.ne.s32.totalorder %s221, %s224
    %p233 = scmp.eq.s32.totalorder %s22, 1
    %p234 = por %p232, %p233
    %p235 = scmp.ne.s32.totalorder %s224, %s225
    %p236 = scmp.eq.s32.totalorder %s22, 0
    %p237 = por %p235, %p236
    %p238 = scmp.ne.s32.totalorder %s224, %s225
    %p239 = scmp.eq.s32.totalorder %s23, 1
    %p240 = por %p238, %p239
    %p242 = scmp.ne.s32.totalorder %s225, %s241
    %p243 = scmp.eq.s32.totalorder %s23, 0
    %p244 = por %p242, %p243
    %p245 = scmp.le.s32.totalorder 1, %s17
    %p246 = scmp.lt.s32.totalorder %s17, 3
    %p247 = pnand %p245, %p246
    %p248 = pneg %p247
    // Predicated region
    $region9: #{temporal_conv_net_forward.1} parent=5 // pred_check
      _
    $region10: #{temporal_conv_net_forward.1} parent=5 // pred_check_branch
      %250 = sbr.rel (%p247) target = $region12
    $region11: #{temporal_conv_net_forward.1} parent=5 // pred_region
      %s251 = ssub.s32 %s17, 1
      // Predicated region
      $region13: #{temporal_conv_net_forward.1} parent=11 // pred_check
        %p252 = pneg %p64
      $region14: #{temporal_conv_net_forward.1} parent=11 // pred_check_branch
        %254 = sbr.rel (%p252) target = $region16
      $region15: #{temporal_conv_net_forward.1} parent=11 // pred_region
        _
      $region16: #{temporal_conv_net_forward.1} parent=11 // pred_fallthru
        _
      // Predicated region
      $region17: #{temporal_conv_net_forward.1} parent=11 // pred_check
        %p255 = pneg %p85
      $region18: #{temporal_conv_net_forward.1} parent=11 // pred_check_branch
        %257 = sbr.rel (%p255) target = $region20
      $region19: #{temporal_conv_net_forward.1} parent=11 // pred_region
        _
      $region20: #{temporal_conv_net_forward.1} parent=11 // pred_fallthru
        _
      // Predicated region
      $region21: #{temporal_conv_net_forward.1} parent=11 // pred_check
        %p258 = pneg %p106
      $region22: #{temporal_conv_net_forward.1} parent=11 // pred_check_branch
        %260 = sbr.rel (%p258) target = $region24
      $region23: #{temporal_conv_net_forward.1} parent=11 // pred_region
        _
      $region24: #{temporal_conv_net_forward.1} parent=11 // pred_fallthru
        _
      // Predicated region
      $region25: #{temporal_conv_net_forward.1} parent=11 // pred_check
        %p261 = pneg %p127
      $region26: #{temporal_conv_net_forward.1} parent=11 // pred_check_branch
        %263 = sbr.rel (%p261) target = $region28
      $region27: #{temporal_conv_net_forward.1} parent=11 // pred_region
        _
      $region28: #{temporal_conv_net_forward.1} parent=11 // pred_fallthru
        _
      // Predicated region
      $region29: #{temporal_conv_net_forward.1} parent=11 // pred_check
        %p264 = pneg %p148
      $region30: #{temporal_conv_net_forward.1} parent=11 // pred_check_branch
        %266 = sbr.rel (%p264) target = $region32
      $region31: #{temporal_conv_net_forward.1} parent=11 // pred_region
        _
      $region32: #{temporal_conv_net_forward.1} parent=11 // pred_fallthru
        _
      // Predicated region
      $region33: #{temporal_conv_net_forward.1} parent=11 // pred_check
        %p267 = pneg %p169
      $region34: #{temporal_conv_net_forward.1} parent=11 // pred_check_branch
        %269 = sbr.rel (%p267) target = $region36
      $region35: #{temporal_conv_net_forward.1} parent=11 // pred_region
        _
      $region36: #{temporal_conv_net_forward.1} parent=11 // pred_fallthru
        _
      // Predicated region
      $region37: #{temporal_conv_net_forward.1} parent=11 // pred_check
        %p270 = pneg %p190
      $region38: #{temporal_conv_net_forward.1} parent=11 // pred_check_branch
        %272 = sbr.rel (%p270) target = $region40
      $region39: #{temporal_conv_net_forward.1} parent=11 // pred_region
        _
      $region40: #{temporal_conv_net_forward.1} parent=11 // pred_fallthru
        _
      // Predicated region
      $region41: #{temporal_conv_net_forward.1} parent=11 // pred_check
        %p273 = pneg %p211
      $region42: #{temporal_conv_net_forward.1} parent=11 // pred_check_branch
        %275 = sbr.rel (%p273) target = $region44
      $region43: #{temporal_conv_net_forward.1} parent=11 // pred_region
        _
      $region44: #{temporal_conv_net_forward.1} parent=11 // pred_fallthru
        _
    $region12: #{temporal_conv_net_forward.1} parent=5 // pred_fallthru
      _
    %p276 = scmp.lt.s32.totalorder %s17, 2
    // Predicated region
    $region45: #{temporal_conv_net_forward.1} parent=5 // pred_check
      %p277 = pneg %p276
    $region46: #{temporal_conv_net_forward.1} parent=5 // pred_check_branch
      %279 = sbr.rel (%p277) target = $region48
    $region47: #{temporal_conv_net_forward.1} parent=5 // pred_region
      // Predicated region
      $region49: #{temporal_conv_net_forward.1} parent=47 // pred_check
        %p280 = pneg %p37
      $region50: #{temporal_conv_net_forward.1} parent=47 // pred_check_branch
        %282 = sbr.rel (%p280) target = $region52
      $region51: #{temporal_conv_net_forward.1} parent=47 // pred_region
        %p283 = scmp.lt.s32.totalorder %s17, 1
        %s284 = scalar_select %p283, %s17, 1
        %s285 = smul.addr %s284, 11
        %s286 = smul.addr %s285, 8
        %s287 = scalar_lea.vmem %s0, %s286
      $region52: #{temporal_conv_net_forward.1} parent=47 // pred_fallthru
        _
    $region48: #{temporal_conv_net_forward.1} parent=5 // pred_fallthru
      _
    %p288 = scmp.le.s32.totalorder 1, %s17
    %p289 = scmp.lt.s32.totalorder %s17, 3
    %p290 = pnand %p288, %p289
    %p291 = pneg %p290
    // Predicated region
    $region53: #{temporal_conv_net_forward.1} parent=5 // pred_check
      _
    $region54: #{temporal_conv_net_forward.1} parent=5 // pred_check_branch
      %293 = sbr.rel (%p290) target = $region56
    $region55: #{temporal_conv_net_forward.1} parent=5 // pred_region
      %s294 = ssub.s32 %s17, 1
      %p295 = scmp.lt.s32.totalorder %s22, 1
      %s296 = scalar_select %p295, %s22, 1
      %s297 = smul.addr %s296, 11
      %s298 = smul.addr %s297, 8
      %s299 = scalar_lea.vmem %s0, %s298
      %p300 = pneg %p43
      %p301 = pneg %p40
      %p302 = pneg %p64
      %p303 = pneg %p61
      %p304 = pneg %p85
      %p305 = pneg %p82
      %p306 = pneg %p106
      %p307 = pneg %p103
      %p308 = pneg %p127
      %p309 = pneg %p124
      %p310 = pneg %p148
      %p311 = pneg %p145
      %p312 = pneg %p169
      %p313 = pneg %p166
      %p314 = pneg %p190
      %p315 = pneg %p187
      %p316 = pneg %p211
      %p317 = pneg %p208
      %p318 = pneg %p237
      %p319 = pneg %p234
      %p320 = scmp.lt.s32.totalorder %s22, 1
      %s321 = scalar_select %p320, %s22, 1
      %s322 = smul.addr %s321, 3
      %s323 = scalar_lea.vmem %s9, %s322
      %p324 = scmp.lt.s32.totalorder %s22, 1
      %s325 = scalar_select %p324, %s22, 1
      %s326 = smul.addr %s325, 11
      %s327 = smul.addr %s326, 8
      %s328 = scalar_lea.vmem %s0, %s327
      %p329 = scmp.lt.s32.totalorder %s22, 1
      %s330 = scalar_select %p329, %s22, 1
      %s331 = smul.addr %s330, 3
      %s332 = scalar_lea.vmem %s9, %s331
      %v333 = vld [vmem:[%s328] sm:$0xff]
      %v334 = vld [vmem:[%s328 + $0x8] sm:$0xff]
      %v335 = vld [vmem:[%s328 + $0x10] sm:$0xff]
      %v336 = vld [vmem:[%s328 + $0x18] sm:$0xff]
      %v337 = vld [vmem:[%s328 + $0x20] sm:$0xff]
      %v338 = vld [vmem:[%s328 + $0x28] sm:$0xff]
      %v339 = vld [vmem:[%s328 + $0x30] sm:$0xff]
      %v340 = vld [vmem:[%s328 + $0x38] sm:$0xff]
      %v341 = vld [vmem:[%s328 + $0x40] sm:$0xff]
      %v342 = vld [vmem:[%s328 + $0x48] sm:$0xff]
      %v343 = vld [vmem:[%s328 + $0x50] sm:$0xff]
      %344 = vrot.lane.b32.xlu0 %v333, 3
      %v345 = vpop.permute.xlu0 %344
      %346 = vrot.lane.b32.xlu0 %v334, 3
      %v347 = vpop.permute.xlu0 %346
      %348 = vrot.lane.b32.xlu0 %v335, 3
      %v349 = vpop.permute.xlu0 %348
      %350 = vrot.lane.b32.xlu0 %v336, 3
      %v351 = vpop.permute.xlu0 %350
      %352 = vrot.lane.b32.xlu0 %v337, 3
      %v353 = vpop.permute.xlu0 %352
      %354 = vrot.lane.b32.xlu0 %v338, 3
      %v355 = vpop.permute.xlu0 %354
      %356 = vrot.lane.b32.xlu0 %v339, 3
      %v357 = vpop.permute.xlu0 %356
      %358 = vrot.lane.b32.xlu0 %v340, 3
      %v359 = vpop.permute.xlu0 %358
      %360 = vrot.lane.b32.xlu0 %v341, 3
      %v361 = vpop.permute.xlu0 %360
      %362 = vrot.lane.b32.xlu0 %v342, 3
      %v363 = vpop.permute.xlu0 %362
      %364 = vrot.lane.b32.xlu0 %v343, 3
      %v365 = vpop.permute.xlu0 %364
      %v366 = vlaneseq
      %v367 = vand.u32 %v366, 127
      %vm368 = vcmp.lt.s32.totalorder %v367, 3
      %v369 = vsel %vm368, %v363, %v365
      %v370 = vsel %vm368, %v361, %v363
      %v371 = vsel %vm368, %v359, %v361
      %v372 = vsel %vm368, %v357, %v359
      %v373 = vsel %vm368, %v355, %v357
      %v374 = vsel %vm368, %v353, %v355
      %v375 = vsel %vm368, %v351, %v353
      %v376 = vsel %vm368, %v349, %v351
      %v377 = vsel %vm368, %v347, %v349
      %v378 = vsel %vm368, %v345, %v347
      %v379 = vsel %vm368, %v365, %v345
      %380 = vst [vmem:[#allocation2] sm:$0xff] %v369
      %381 = vst [vmem:[#allocation2 + $0x8] sm:$0xff] %v379
      %382 = vst [vmem:[#allocation2 + $0x10] sm:$0xff] %v378
      %383 = vst [vmem:[#allocation2 + $0x18] sm:$0xff] %v377
      %384 = vst [vmem:[#allocation2 + $0x20] sm:$0xff] %v376
      %385 = vst [vmem:[#allocation2 + $0x28] sm:$0xff] %v375
      %386 = vst [vmem:[#allocation2 + $0x30] sm:$0xff] %v374
      %387 = vst [vmem:[#allocation2 + $0x38] sm:$0xff] %v373
      %388 = vst [vmem:[#allocation2 + $0x40] sm:$0xff] %v372
      %389 = vst [vmem:[#allocation2 + $0x48] sm:$0xff] %v371
      %390 = vst [vmem:[#allocation2 + $0x50] sm:$0xff] %v370
      %391 = vrot.lane.b32.xlu0 %v333, 2
      %v392 = vpop.permute.xlu0 %391
      %393 = vrot.lane.b32.xlu0 %v334, 2
      %v394 = vpop.permute.xlu0 %393
      %395 = vrot.lane.b32.xlu0 %v335, 2
      %v396 = vpop.permute.xlu0 %395
      %397 = vrot.lane.b32.xlu0 %v336, 2
      %v398 = vpop.permute.xlu0 %397
      %399 = vrot.lane.b32.xlu0 %v337, 2
      %v400 = vpop.permute.xlu0 %399
      %401 = vrot.lane.b32.xlu0 %v338, 2
      %v402 = vpop.permute.xlu0 %401
      %403 = vrot.lane.b32.xlu0 %v339, 2
      %v404 = vpop.permute.xlu0 %403
      %405 = vrot.lane.b32.xlu0 %v340, 2
      %v406 = vpop.permute.xlu0 %405
      %407 = vrot.lane.b32.xlu0 %v341, 2
      %v408 = vpop.permute.xlu0 %407
      %409 = vrot.lane.b32.xlu0 %v342, 2
      %v410 = vpop.permute.xlu0 %409
      %411 = vrot.lane.b32.xlu0 %v343, 2
      %v412 = vpop.permute.xlu0 %411
      %vm413 = vcmp.lt.s32.totalorder %v367, 2
      %v414 = vsel %vm413, %v410, %v412
      %v415 = vsel %vm413, %v408, %v410
      %v416 = vsel %vm413, %v406, %v408
      %v417 = vsel %vm413, %v404, %v406
      %v418 = vsel %vm413, %v402, %v404
      %v419 = vsel %vm413, %v400, %v402
      %v420 = vsel %vm413, %v398, %v400
      %v421 = vsel %vm413, %v396, %v398
      %v422 = vsel %vm413, %v394, %v396
      %v423 = vsel %vm413, %v392, %v394
      %v424 = vsel %vm413, %v412, %v392
      %425 = vst [vmem:[#allocation2 + $0x58] sm:$0xff] %v414
      %426 = vst [vmem:[#allocation2 + $0x60] sm:$0xff] %v424
      %427 = vst [vmem:[#allocation2 + $0x68] sm:$0xff] %v423
      %428 = vst [vmem:[#allocation2 + $0x70] sm:$0xff] %v422
      %429 = vst [vmem:[#allocation2 + $0x78] sm:$0xff] %v421
      %430 = vst [vmem:[#allocation2 + $0x80] sm:$0xff] %v420
      %431 = vst [vmem:[#allocation2 + $0x88] sm:$0xff] %v419
      %432 = vst [vmem:[#allocation2 + $0x90] sm:$0xff] %v418
      %433 = vst [vmem:[#allocation2 + $0x98] sm:$0xff] %v417
      %434 = vst [vmem:[#allocation2 + $0xa0] sm:$0xff] %v416
      %435 = vst [vmem:[#allocation2 + $0xa8] sm:$0xff] %v415
      %436 = vrot.lane.b32.xlu0 %v333, 118
      %v437 = vpop.permute.xlu0 %436
      %438 = vrot.lane.b32.xlu0 %v334, 118
      %v439 = vpop.permute.xlu0 %438
      %440 = vrot.lane.b32.xlu0 %v335, 118
      %v441 = vpop.permute.xlu0 %440
      %442 = vrot.lane.b32.xlu0 %v336, 118
      %v443 = vpop.permute.xlu0 %442
      %444 = vrot.lane.b32.xlu0 %v337, 118
      %v445 = vpop.permute.xlu0 %444
      %446 = vrot.lane.b32.xlu0 %v338, 118
      %v447 = vpop.permute.xlu0 %446
      %448 = vrot.lane.b32.xlu0 %v339, 118
      %v449 = vpop.permute.xlu0 %448
      %450 = vrot.lane.b32.xlu0 %v340, 118
      %v451 = vpop.permute.xlu0 %450
      %452 = vrot.lane.b32.xlu0 %v341, 118
      %v453 = vpop.permute.xlu0 %452
      %454 = vrot.lane.b32.xlu0 %v342, 118
      %v455 = vpop.permute.xlu0 %454
      %456 = vrot.lane.b32.xlu0 %v343, 118
      %v457 = vpop.permute.xlu0 %456
      %vm458 = vcmp.lt.s32.totalorder %v367, 118
      %v459 = vsel %vm458, %v455, %v457
      %v460 = vsel %vm458, %v453, %v455
      %v461 = vsel %vm458, %v451, %v453
      %v462 = vsel %vm458, %v449, %v451
      %v463 = vsel %vm458, %v447, %v449
      %v464 = vsel %vm458, %v445, %v447
      %v465 = vsel %vm458, %v443, %v445
      %v466 = vsel %vm458, %v441, %v443
      %v467 = vsel %vm458, %v439, %v441
      %v468 = vsel %vm458, %v437, %v439
      %v469 = vsel %vm458, %v457, %v437
      %470 = vst [vmem:[#allocation2 + $0xb0] sm:$0xff] %v469
      %471 = vst [vmem:[#allocation2 + $0xb8] sm:$0xff] %v468
      %472 = vst [vmem:[#allocation2 + $0xc0] sm:$0xff] %v467
      %473 = vst [vmem:[#allocation2 + $0xc8] sm:$0xff] %v466
      %474 = vst [vmem:[#allocation2 + $0xd0] sm:$0xff] %v465
      %475 = vst [vmem:[#allocation2 + $0xd8] sm:$0xff] %v464
      %476 = vst [vmem:[#allocation2 + $0xe0] sm:$0xff] %v463
      %477 = vst [vmem:[#allocation2 + $0xe8] sm:$0xff] %v462
      %478 = vst [vmem:[#allocation2 + $0xf0] sm:$0xff] %v461
      %479 = vst [vmem:[#allocation2 + $0xf8] sm:$0xff] %v460
      %480 = vst [vmem:[#allocation2 + $0x100] sm:$0xff] %v459
      %481 = vrot.lane.b32.xlu0 %v333, 117
      %v482 = vpop.permute.xlu0 %481
      %483 = vrot.lane.b32.xlu0 %v334, 117
      %v484 = vpop.permute.xlu0 %483
      %485 = vrot.lane.b32.xlu0 %v335, 117
      %v486 = vpop.permute.xlu0 %485
      %487 = vrot.lane.b32.xlu0 %v336, 117
      %v488 = vpop.permute.xlu0 %487
      %489 = vrot.lane.b32.xlu0 %v337, 117
      %v490 = vpop.permute.xlu0 %489
      %491 = vrot.lane.b32.xlu0 %v338, 117
      %v492 = vpop.permute.xlu0 %491
      %493 = vrot.lane.b32.xlu0 %v339, 117
      %v494 = vpop.permute.xlu0 %493
      %495 = vrot.lane.b32.xlu0 %v340, 117
      %v496 = vpop.permute.xlu0 %495
      %497 = vrot.lane.b32.xlu0 %v341, 117
      %v498 = vpop.permute.xlu0 %497
      %499 = vrot.lane.b32.xlu0 %v342, 117
      %v500 = vpop.permute.xlu0 %499
      %501 = vrot.lane.b32.xlu0 %v343, 117
      %v502 = vpop.permute.xlu0 %501
      %vm503 = vcmp.lt.s32.totalorder %v367, 117
      %v504 = vsel %vm503, %v500, %v502
      %v505 = vsel %vm503, %v498, %v500
      %v506 = vsel %vm503, %v496, %v498
      %v507 = vsel %vm503, %v494, %v496
      %v508 = vsel %vm503, %v492, %v494
      %v509 = vsel %vm503, %v490, %v492
      %v510 = vsel %vm503, %v488, %v490
      %v511 = vsel %vm503, %v486, %v488
      %v512 = vsel %vm503, %v484, %v486
      %v513 = vsel %vm503, %v482, %v484
      %v514 = vsel %vm503, %v502, %v482
      %515 = vst [vmem:[#allocation2 + $0x108] sm:$0xff] %v514
      %516 = vst [vmem:[#allocation2 + $0x110] sm:$0xff] %v513
      %517 = vst [vmem:[#allocation2 + $0x118] sm:$0xff] %v512
      %518 = vst [vmem:[#allocation2 + $0x120] sm:$0xff] %v511
      %519 = vst [vmem:[#allocation2 + $0x128] sm:$0xff] %v510
      %520 = vst [vmem:[#allocation2 + $0x130] sm:$0xff] %v509
      %521 = vst [vmem:[#allocation2 + $0x138] sm:$0xff] %v508
      %522 = vst [vmem:[#allocation2 + $0x140] sm:$0xff] %v507
      %523 = vst [vmem:[#allocation2 + $0x148] sm:$0xff] %v506
      %524 = vst [vmem:[#allocation2 + $0x150] sm:$0xff] %v505
      %525 = vst [vmem:[#allocation2 + $0x158] sm:$0xff] %v504
      %526 = vrot.lane.b32.xlu0 %v333, 14
      %v527 = vpop.permute.xlu0 %526
      %528 = vrot.lane.b32.xlu0 %v334, 14
      %v529 = vpop.permute.xlu0 %528
      %530 = vrot.lane.b32.xlu0 %v335, 14
      %v531 = vpop.permute.xlu0 %530
      %532 = vrot.lane.b32.xlu0 %v336, 14
      %v533 = vpop.permute.xlu0 %532
      %534 = vrot.lane.b32.xlu0 %v337, 14
      %v535 = vpop.permute.xlu0 %534
      %536 = vrot.lane.b32.xlu0 %v338, 14
      %v537 = vpop.permute.xlu0 %536
      %538 = vrot.lane.b32.xlu0 %v339, 14
      %v539 = vpop.permute.xlu0 %538
      %540 = vrot.lane.b32.xlu0 %v340, 14
      %v541 = vpop.permute.xlu0 %540
      %542 = vrot.lane.b32.xlu0 %v341, 14
      %v543 = vpop.permute.xlu0 %542
      %544 = vrot.lane.b32.xlu0 %v342, 14
      %v545 = vpop.permute.xlu0 %544
      %546 = vrot.lane.b32.xlu0 %v343, 14
      %v547 = vpop.permute.xlu0 %546
      %vm548 = vcmp.lt.s32.totalorder %v367, 14
      %v549 = vsel %vm548, %v545, %v547
      %v550 = vsel %vm548, %v543, %v545
      %v551 = vsel %vm548, %v541, %v543
      %v552 = vsel %vm548, %v539, %v541
      %v553 = vsel %vm548, %v537, %v539
      %v554 = vsel %vm548, %v535, %v537
      %v555 = vsel %vm548, %v533, %v535
      %v556 = vsel %vm548, %v531, %v533
      %v557 = vsel %vm548, %v529, %v531
      %v558 = vsel %vm548, %v527, %v529
      %v559 = vsel %vm548, %v547, %v527
      %560 = vst [vmem:[#allocation2 + $0x160] sm:$0xff] %v559
      %561 = vst [vmem:[#allocation2 + $0x168] sm:$0xff] %v558
      %562 = vst [vmem:[#allocation2 + $0x170] sm:$0xff] %v557
      %563 = vst [vmem:[#allocation2 + $0x178] sm:$0xff] %v556
      %564 = vst [vmem:[#allocation2 + $0x180] sm:$0xff] %v555
      %565 = vst [vmem:[#allocation2 + $0x188] sm:$0xff] %v554
      %566 = vst [vmem:[#allocation2 + $0x190] sm:$0xff] %v553
      %567 = vst [vmem:[#allocation2 + $0x198] sm:$0xff] %v552
      %568 = vst [vmem:[#allocation2 + $0x1a0] sm:$0xff] %v551
      %569 = vst [vmem:[#allocation2 + $0x1a8] sm:$0xff] %v550
      %570 = vst [vmem:[#allocation2 + $0x1b0] sm:$0xff] %v549
      %571 = vrot.lane.b32.xlu0 %v333, 13
      %v572 = vpop.permute.xlu0 %571
      %573 = vrot.lane.b32.xlu0 %v334, 13
      %v574 = vpop.permute.xlu0 %573
      %575 = vrot.lane.b32.xlu0 %v335, 13
      %v576 = vpop.permute.xlu0 %575
      %577 = vrot.lane.b32.xlu0 %v336, 13
      %v578 = vpop.permute.xlu0 %577
      %579 = vrot.lane.b32.xlu0 %v337, 13
      %v580 = vpop.permute.xlu0 %579
      %581 = vrot.lane.b32.xlu0 %v338, 13
      %v582 = vpop.permute.xlu0 %581
      %583 = vrot.lane.b32.xlu0 %v339, 13
      %v584 = vpop.permute.xlu0 %583
      %585 = vrot.lane.b32.xlu0 %v340, 13
      %v586 = vpop.permute.xlu0 %585
      %587 = vrot.lane.b32.xlu0 %v341, 13
      %v588 = vpop.permute.xlu0 %587
      %589 = vrot.lane.b32.xlu0 %v342, 13
      %v590 = vpop.permute.xlu0 %589
      %591 = vrot.lane.b32.xlu0 %v343, 13
      %v592 = vpop.permute.xlu0 %591
      %vm593 = vcmp.lt.s32.totalorder %v367, 13
      %v594 = vsel %vm593, %v590, %v592
      %v595 = vsel %vm593, %v588, %v590
      %v596 = vsel %vm593, %v586, %v588
      %v597 = vsel %vm593, %v584, %v586
      %v598 = vsel %vm593, %v582, %v584
      %v599 = vsel %vm593, %v580, %v582
      %v600 = vsel %vm593, %v578, %v580
      %v601 = vsel %vm593, %v576, %v578
      %v602 = vsel %vm593, %v574, %v576
      %v603 = vsel %vm593, %v572, %v574
      %v604 = vsel %vm593, %v592, %v572
      %605 = vst [vmem:[#allocation2 + $0x1b8] sm:$0xff] %v604
      %606 = vst [vmem:[#allocation2 + $0x1c0] sm:$0xff] %v603
      %607 = vst [vmem:[#allocation2 + $0x1c8] sm:$0xff] %v602
      %608 = vst [vmem:[#allocation2 + $0x1d0] sm:$0xff] %v601
      %609 = vst [vmem:[#allocation2 + $0x1d8] sm:$0xff] %v600
      %610 = vst [vmem:[#allocation2 + $0x1e0] sm:$0xff] %v599
      %611 = vst [vmem:[#allocation2 + $0x1e8] sm:$0xff] %v598
      %612 = vst [vmem:[#allocation2 + $0x1f0] sm:$0xff] %v597
      %613 = vst [vmem:[#allocation2 + $0x1f8] sm:$0xff] %v596
      %614 = vst [vmem:[#allocation2 + $0x200] sm:$0xff] %v595
      %615 = vst [vmem:[#allocation2 + $0x208] sm:$0xff] %v594
      %616 = vrot.lane.b32.xlu0 %v333, 1
      %v617 = vpop.permute.xlu0 %616
      %618 = vrot.lane.b32.xlu0 %v334, 1
      %v619 = vpop.permute.xlu0 %618
      %620 = vrot.lane.b32.xlu0 %v335, 1
      %v621 = vpop.permute.xlu0 %620
      %622 = vrot.lane.b32.xlu0 %v336, 1
      %v623 = vpop.permute.xlu0 %622
      %624 = vrot.lane.b32.xlu0 %v337, 1
      %v625 = vpop.permute.xlu0 %624
      %626 = vrot.lane.b32.xlu0 %v338, 1
      %v627 = vpop.permute.xlu0 %626
      %628 = vrot.lane.b32.xlu0 %v339, 1
      %v629 = vpop.permute.xlu0 %628
      %630 = vrot.lane.b32.xlu0 %v340, 1
      %v631 = vpop.permute.xlu0 %630
      %632 = vrot.lane.b32.xlu0 %v341, 1
      %v633 = vpop.permute.xlu0 %632
      %634 = vrot.lane.b32.xlu0 %v342, 1
      %v635 = vpop.permute.xlu0 %634
      %636 = vrot.lane.b32.xlu0 %v343, 1
      %v637 = vpop.permute.xlu0 %636
      %vm638 = vcmp.lt.s32.totalorder %v367, 1
      %v639 = vsel %vm638, %v635, %v637
      %v640 = vsel %vm638, %v633, %v635
      %v641 = vsel %vm638, %v631, %v633
      %v642 = vsel %vm638, %v629, %v631
      %v643 = vsel %vm638, %v627, %v629
      %v644 = vsel %vm638, %v625, %v627
      %v645 = vsel %vm638, %v623, %v625
      %v646 = vsel %vm638, %v621, %v623
      %v647 = vsel %vm638, %v619, %v621
      %v648 = vsel %vm638, %v617, %v619
      %v649 = vsel %vm638, %v637, %v617
      %650 = vst [vmem:[#allocation2 + $0x210] sm:$0xff] %v649
      %651 = vst [vmem:[#allocation2 + $0x218] sm:$0xff] %v648
      %652 = vst [vmem:[#allocation2 + $0x220] sm:$0xff] %v647
      %653 = vst [vmem:[#allocation2 + $0x228] sm:$0xff] %v646
      %654 = vst [vmem:[#allocation2 + $0x230] sm:$0xff] %v645
      %655 = vst [vmem:[#allocation2 + $0x238] sm:$0xff] %v644
      %656 = vst [vmem:[#allocation2 + $0x240] sm:$0xff] %v643
      %657 = vst [vmem:[#allocation2 + $0x248] sm:$0xff] %v642
      %658 = vst [vmem:[#allocation2 + $0x250] sm:$0xff] %v641
      %659 = vst [vmem:[#allocation2 + $0x258] sm:$0xff] %v640
      %660 = vst [vmem:[#allocation2 + $0x260] sm:$0xff] %v639
      %661 = vst [vmem:[#allocation2 + $0x268] sm:$0xff] %v333
      %662 = vst [vmem:[#allocation2 + $0x270] sm:$0xff] %v334
      %663 = vst [vmem:[#allocation2 + $0x278] sm:$0xff] %v335
      %664 = vst [vmem:[#allocation2 + $0x280] sm:$0xff] %v336
      %665 = vst [vmem:[#allocation2 + $0x288] sm:$0xff] %v337
      %666 = vst [vmem:[#allocation2 + $0x290] sm:$0xff] %v338
      %667 = vst [vmem:[#allocation2 + $0x298] sm:$0xff] %v339
      %668 = vst [vmem:[#allocation2 + $0x2a0] sm:$0xff] %v340
      %669 = vst [vmem:[#allocation2 + $0x2a8] sm:$0xff] %v341
      %670 = vst [vmem:[#allocation2 + $0x2b0] sm:$0xff] %v342
      %671 = vst [vmem:[#allocation2 + $0x2b8] sm:$0xff] %v343
      %v672 = vld [vmem:[%s1] sm:$0xff]
      %v673 = vld [vmem:[#allocation2] sm:$0xff]
      %v674 = vld [vmem:[#allocation2 + $0x8] sm:$0xff]
      %v675 = vld [vmem:[#allocation2 + $0x10] sm:$0xff]
      %v676 = vld [vmem:[#allocation2 + $0x18] sm:$0xff]
      %v677 = vld [vmem:[#allocation2 + $0x20] sm:$0xff]
      %v678 = vld [vmem:[#allocation2 + $0x28] sm:$0xff]
      %v679 = vld [vmem:[#allocation2 + $0x30] sm:$0xff]
      %v680 = vld [vmem:[#allocation2 + $0x38] sm:$0xff]
      %v681 = vld [vmem:[#allocation2 + $0x40] sm:$0xff]
      %v682 = vld [vmem:[#allocation2 + $0x48] sm:$0xff]
      %v683 = vld [vmem:[#allocation2 + $0x50] sm:$0xff]
      %v684 = vld [vmem:[#allocation2 + $0x58] sm:$0xff]
      %v685 = vld [vmem:[#allocation2 + $0x60] sm:$0xff]
      %v686 = vld [vmem:[#allocation2 + $0x68] sm:$0xff]
      %v687 = vld [vmem:[#allocation2 + $0x70] sm:$0xff]
      %v688 = vld [vmem:[#allocation2 + $0x78] sm:$0xff]
      %v689 = vld [vmem:[#allocation2 + $0x80] sm:$0xff]
      %v690 = vld [vmem:[#allocation2 + $0x88] sm:$0xff]
      %v691 = vld [vmem:[#allocation2 + $0x90] sm:$0xff]
      %v692 = vld [vmem:[#allocation2 + $0x98] sm:$0xff]
      %v693 = vld [vmem:[#allocation2 + $0xa0] sm:$0xff]
      %v694 = vld [vmem:[#allocation2 + $0xa8] sm:$0xff]
      %v695 = vld [vmem:[#allocation2 + $0xb0] sm:$0xff]
      %v696 = vld [vmem:[#allocation2 + $0xb8] sm:$0xff]
      %v697 = vld [vmem:[#allocation2 + $0xc0] sm:$0xff]
      %v698 = vld [vmem:[#allocation2 + $0xc8] sm:$0xff]
      %v699 = vld [vmem:[#allocation2 + $0xd0] sm:$0xff]
      %v700 = vld [vmem:[#allocation2 + $0xd8] sm:$0xff]
      %v701 = vld [vmem:[#allocation2 + $0xe0] sm:$0xff]
      %v702 = vld [vmem:[#allocation2 + $0xe8] sm:$0xff]
      %v703 = vld [vmem:[#allocation2 + $0xf0] sm:$0xff]
      %v704 = vld [vmem:[#allocation2 + $0xf8] sm:$0xff]
      %v705 = vld [vmem:[#allocation2 + $0x100] sm:$0xff]
      %v706 = vld [vmem:[#allocation2 + $0x108] sm:$0xff]
      %v707 = vld [vmem:[#allocation2 + $0x110] sm:$0xff]
      %v708 = vld [vmem:[#allocation2 + $0x118] sm:$0xff]
      %v709 = vld [vmem:[#allocation2 + $0x120] sm:$0xff]
      %v710 = vld [vmem:[#allocation2 + $0x128] sm:$0xff]
      %v711 = vld [vmem:[#allocation2 + $0x130] sm:$0xff]
      %v712 = vld [vmem:[#allocation2 + $0x138] sm:$0xff]
      %v713 = vld [vmem:[#allocation2 + $0x140] sm:$0xff]
      %v714 = vld [vmem:[#allocation2 + $0x148] sm:$0xff]
      %v715 = vld [vmem:[#allocation2 + $0x150] sm:$0xff]
      %v716 = vld [vmem:[#allocation2 + $0x158] sm:$0xff]
      %v717 = vld [vmem:[#allocation2 + $0x160] sm:$0xff]
      %v718 = vld [vmem:[#allocation2 + $0x168] sm:$0xff]
      %v719 = vld [vmem:[#allocation2 + $0x170] sm:$0xff]
      %v720 = vld [vmem:[#allocation2 + $0x178] sm:$0xff]
      %v721 = vld [vmem:[#allocation2 + $0x180] sm:$0xff]
      %v722 = vld [vmem:[#allocation2 + $0x188] sm:$0xff]
      %v723 = vld [vmem:[#allocation2 + $0x190] sm:$0xff]
      %v724 = vld [vmem:[#allocation2 + $0x198] sm:$0xff]
      %v725 = vld [vmem:[#allocation2 + $0x1a0] sm:$0xff]
      %v726 = vld [vmem:[#allocation2 + $0x1a8] sm:$0xff]
      %v727 = vld [vmem:[#allocation2 + $0x1b0] sm:$0xff]
      %v728 = vld [vmem:[#allocation2 + $0x1b8] sm:$0xff]
      %v729 = vld [vmem:[#allocation2 + $0x1c0] sm:$0xff]
      %v730 = vld [vmem:[#allocation2 + $0x1c8] sm:$0xff]
      %v731 = vld [vmem:[#allocation2 + $0x1d0] sm:$0xff]
      %v732 = vld [vmem:[#allocation2 + $0x1d8] sm:$0xff]
      %v733 = vld [vmem:[#allocation2 + $0x1e0] sm:$0xff]
      %v734 = vld [vmem:[#allocation2 + $0x1e8] sm:$0xff]
      %v735 = vld [vmem:[#allocation2 + $0x1f0] sm:$0xff]
      %v736 = vld [vmem:[#allocation2 + $0x1f8] sm:$0xff]
      %v737 = vld [vmem:[#allocation2 + $0x200] sm:$0xff]
      %v738 = vld [vmem:[#allocation2 + $0x208] sm:$0xff]
      %v739 = vld [vmem:[#allocation2 + $0x210] sm:$0xff]
      %v740 = vld [vmem:[#allocation2 + $0x218] sm:$0xff]
      %v741 = vld [vmem:[#allocation2 + $0x220] sm:$0xff]
      %v742 = vld [vmem:[#allocation2 + $0x228] sm:$0xff]
      %v743 = vld [vmem:[#allocation2 + $0x230] sm:$0xff]
      %v744 = vld [vmem:[#allocation2 + $0x238] sm:$0xff]
      %v745 = vld [vmem:[#allocation2 + $0x240] sm:$0xff]
      %v746 = vld [vmem:[#allocation2 + $0x248] sm:$0xff]
      %v747 = vld [vmem:[#allocation2 + $0x250] sm:$0xff]
      %v748 = vld [vmem:[#allocation2 + $0x258] sm:$0xff]
      %v749 = vld [vmem:[#allocation2 + $0x260] sm:$0xff]
      %v750 = vld [vmem:[#allocation2 + $0x268] sm:$0xff]
      %v751 = vld [vmem:[#allocation2 + $0x270] sm:$0xff]
      %v752 = vld [vmem:[#allocation2 + $0x278] sm:$0xff]
      %v753 = vld [vmem:[#allocation2 + $0x280] sm:$0xff]
      %v754 = vld [vmem:[#allocation2 + $0x288] sm:$0xff]
      %v755 = vld [vmem:[#allocation2 + $0x290] sm:$0xff]
      %v756 = vld [vmem:[#allocation2 + $0x298] sm:$0xff]
      %v757 = vld [vmem:[#allocation2 + $0x2a0] sm:$0xff]
      %v758 = vld [vmem:[#allocation2 + $0x2a8] sm:$0xff]
      %v759 = vld [vmem:[#allocation2 + $0x2b0] sm:$0xff]
      %v760 = vld [vmem:[#allocation2 + $0x2b8] sm:$0xff]
      %v761 = vld [vmem:[%s2] sm:$0xff]
      %763 = vset.pattern.permute.xlu0 0
      %764 = vperm.xlu0 %763, %v761
      %v765 = vpop.permute.xlu0 %764
      %vm767 = vcmask 523264
      %v769 = vsel %vm767, %v672, 0
      %771 = vmatprep.subr.mxu0 %v674
      %772 = vmatpush1.msra.mxu0 %v673
      %773 = vmatprep.subr.mxu0 %v685
      %774 = vmatpush1.msra.mxu0 %v684
      %775 = vmatprep.subr.mxu0 %v696
      %776 = vmatpush1.msra.mxu0 %v695
      %777 = vmatprep.subr.mxu0 %v707
      %778 = vmatpush1.msra.mxu0 %v706
      %779 = vmatprep.subr.mxu0 %v718
      %780 = vmatpush1.msra.mxu0 %v717
      %781 = vmatprep.subr.mxu0 %v729
      %782 = vmatpush1.msra.mxu0 %v728
      %783 = vmatprep.subr.mxu0 %v740
      %784 = vmatpush1.msra.mxu0 %v739
      %785 = vmatprep.subr.mxu0 %v751
      %786 = vmatpush1.msra.mxu0 %v750
      %787 = vmatprep.subr.mxu0 0.0
      %788 = vmatpush1.msra.mxu0 0.0
      %789 = vmatprep.subr.mxu0 0.0
      %790 = vmatpush1.msra.mxu0 0.0
      %791 = vmatprep.subr.mxu0 0.0
      %792 = vmatpush1.msra.mxu0 0.0
      %793 = vmatprep.subr.mxu0 0.0
      %794 = vmatpush1.msra.mxu0 0.0
      %795 = vmatprep.subr.mxu0 0.0
      %796 = vmatpush1.msra.mxu0 0.0
      %797 = vmatprep.subr.mxu0 0.0
      %798 = vmatpush1.msra.mxu0 0.0
      %799 = vmatprep.subr.mxu0 0.0
      %800 = vmatpush1.msra.mxu0 0.0
      %801 = vmatprep.subr.mxu0 0.0
      %802 = vmatpush1.msra.mxu0 0.0
      %803 = vmatprep.subr.mxu0 0.0
      %804 = vmatpush1.msra.mxu0 0.0
      %805 = vmatprep.subr.mxu0 0.0
      %806 = vmatpush1.msra.mxu0 0.0
      %807 = vmatprep.subr.mxu0 0.0
      %808 = vmatpush1.msra.mxu0 0.0
      %809 = vmatprep.subr.mxu0 0.0
      %810 = vmatpush1.msra.mxu0 0.0
      %811 = vmatprep.subr.mxu0 0.0
      %812 = vmatpush1.msra.mxu0 0.0
      %813 = vmatprep.subr.mxu0 0.0
      %814 = vmatpush1.msra.mxu0 0.0
      %815 = vmatprep.subr.mxu0 0.0
      %816 = vmatpush1.msra.mxu0 0.0
      %817 = vmatprep.subr.mxu0 0.0
      %818 = vmatpush1.msra.mxu0 0.0
      %819 = vmatprep.subr.mxu0 0.0
      %820 = vmatpush1.msra.mxu0 0.0
      %821 = vmatprep.subr.mxu0 0.0
      %822 = vmatpush1.msra.mxu0 0.0
      %823 = vmatprep.subr.mxu0 0.0
      %824 = vmatpush1.msra.mxu0 0.0
      %825 = vmatprep.subr.mxu0 0.0
      %826 = vmatpush1.msra.mxu0 0.0
      %827 = vmatprep.subr.mxu0 0.0
      %828 = vmatpush1.msra.mxu0 0.0
      %829 = vmatprep.subr.mxu0 0.0
      %830 = vmatpush1.msra.mxu0 0.0
      %831 = vmatprep.subr.mxu0 0.0
      %832 = vmatpush1.msra.mxu0 0.0
      %833 = vmatprep.subr.mxu0 0.0
      %834 = vmatpush1.msra.mxu0 0.0
      %835 = vmatprep.mubr.f32.mxu0 0.0
      %836 = vmatmul.mubr.f32.gmra.mrb[0].mxu0 %v769
      %v837 = vpop.f32.mrb[0].mxu0
      %v838 = vadd.f32 %v765, %v837
      %v839 = vpop.f32.mrb[0].mxu0
      %v840 = vadd.f32 %v765, %v839
      %841 = vdwg.mxu0
      %842 = vmatprep.subr.mxu0 %v676
      %843 = vmatpush1.msra.mxu0 %v675
      %844 = vmatprep.subr.mxu0 %v687
      %845 = vmatpush1.msra.mxu0 %v686
      %846 = vmatprep.subr.mxu0 %v698
      %847 = vmatpush1.msra.mxu0 %v697
      %848 = vmatprep.subr.mxu0 %v709
      %849 = vmatpush1.msra.mxu0 %v708
      %850 = vmatprep.subr.mxu0 %v720
      %851 = vmatpush1.msra.mxu0 %v719
      %852 = vmatprep.subr.mxu0 %v731
      %853 = vmatpush1.msra.mxu0 %v730
      %854 = vmatprep.subr.mxu0 %v742
      %855 = vmatpush1.msra.mxu0 %v741
      %856 = vmatprep.subr.mxu0 %v753
      %857 = vmatpush1.msra.mxu0 %v752
      %858 = vmatprep.subr.mxu0 0.0
      %859 = vmatpush1.msra.mxu0 0.0
      %860 = vmatprep.subr.mxu0 0.0
      %861 = vmatpush1.msra.mxu0 0.0
      %862 = vmatprep.subr.mxu0 0.0
      %863 = vmatpush1.msra.mxu0 0.0
      %864 = vmatprep.subr.mxu0 0.0
      %865 = vmatpush1.msra.mxu0 0.0
      %866 = vmatprep.subr.mxu0 0.0
      %867 = vmatpush1.msra.mxu0 0.0
      %868 = vmatprep.subr.mxu0 0.0
      %869 = vmatpush1.msra.mxu0 0.0
      %870 = vmatprep.subr.mxu0 0.0
      %871 = vmatpush1.msra.mxu0 0.0
      %872 = vmatprep.subr.mxu0 0.0
      %873 = vmatpush1.msra.mxu0 0.0
      %874 = vmatprep.subr.mxu0 0.0
      %875 = vmatpush1.msra.mxu0 0.0
      %876 = vmatprep.subr.mxu0 0.0
      %877 = vmatpush1.msra.mxu0 0.0
      %878 = vmatprep.subr.mxu0 0.0
      %879 = vmatpush1.msra.mxu0 0.0
      %880 = vmatprep.subr.mxu0 0.0
      %881 = vmatpush1.msra.mxu0 0.0
      %882 = vmatprep.subr.mxu0 0.0
      %883 = vmatpush1.msra.mxu0 0.0
      %884 = vmatprep.subr.mxu0 0.0
      %885 = vmatpush1.msra.mxu0 0.0
      %886 = vmatprep.subr.mxu0 0.0
      %887 = vmatpush1.msra.mxu0 0.0
      %888 = vmatprep.subr.mxu0 0.0
      %889 = vmatpush1.msra.mxu0 0.0
      %890 = vmatprep.subr.mxu0 0.0
      %891 = vmatpush1.msra.mxu0 0.0
      %892 = vmatprep.subr.mxu0 0.0
      %893 = vmatpush1.msra.mxu0 0.0
      %894 = vmatprep.subr.mxu0 0.0
      %895 = vmatpush1.msra.mxu0 0.0
      %896 = vmatprep.subr.mxu0 0.0
      %897 = vmatpush1.msra.mxu0 0.0
      %898 = vmatprep.subr.mxu0 0.0
      %899 = vmatpush1.msra.mxu0 0.0
      %900 = vmatprep.subr.mxu0 0.0
      %901 = vmatpush1.msra.mxu0 0.0
      %902 = vmatprep.subr.mxu0 0.0
      %903 = vmatpush1.msra.mxu0 0.0
      %904 = vmatprep.subr.mxu0 0.0
      %905 = vmatpush1.msra.mxu0 0.0
      %906 = vmatprep.mubr.f32.mxu0 0.0
      %907 = vmatmul.mubr.f32.gmra.mrb[0].mxu0 %v769
      %v908 = vpop.f32.mrb[0].mxu0
      %v909 = vadd.f32 %v765, %v908
      %v910 = vpop.f32.mrb[0].mxu0
      %v911 = vadd.f32 %v765, %v910
      %912 = vdwg.mxu0
      %913 = vmatprep.subr.mxu0 %v678
      %914 = vmatpush1.msra.mxu0 %v677
      %915 = vmatprep.subr.mxu0 %v689
      %916 = vmatpush1.msra.mxu0 %v688
      %917 = vmatprep.subr.mxu0 %v700
      %918 = vmatpush1.msra.mxu0 %v699
      %919 = vmatprep.subr.mxu0 %v711
      %920 = vmatpush1.msra.mxu0 %v710
      %921 = vmatprep.subr.mxu0 %v722
      %922 = vmatpush1.msra.mxu0 %v721
      %923 = vmatprep.subr.mxu0 %v733
      %924 = vmatpush1.msra.mxu0 %v732
      %925 = vmatprep.subr.mxu0 %v744
      %926 = vmatpush1.msra.mxu0 %v743
      %927 = vmatprep.subr.mxu0 %v755
      %928 = vmatpush1.msra.mxu0 %v754
      %929 = vmatprep.subr.mxu0 0.0
      %930 = vmatpush1.msra.mxu0 0.0
      %931 = vmatprep.subr.mxu0 0.0
      %932 = vmatpush1.msra.mxu0 0.0
      %933 = vmatprep.subr.mxu0 0.0
      %934 = vmatpush1.msra.mxu0 0.0
      %935 = vmatprep.subr.mxu0 0.0
      %936 = vmatpush1.msra.mxu0 0.0
      %937 = vmatprep.subr.mxu0 0.0
      %938 = vmatpush1.msra.mxu0 0.0
      %939 = vmatprep.subr.mxu0 0.0
      %940 = vmatpush1.msra.mxu0 0.0
      %941 = vmatprep.subr.mxu0 0.0
      %942 = vmatpush1.msra.mxu0 0.0
      %943 = vmatprep.subr.mxu0 0.0
      %944 = vmatpush1.msra.mxu0 0.0
      %945 = vmatprep.subr.mxu0 0.0
      %946 = vmatpush1.msra.mxu0 0.0
      %947 = vmatprep.subr.mxu0 0.0
      %948 = vmatpush1.msra.mxu0 0.0
      %949 = vmatprep.subr.mxu0 0.0
      %950 = vmatpush1.msra.mxu0 0.0
      %951 = vmatprep.subr.mxu0 0.0
      %952 = vmatpush1.msra.mxu0 0.0
      %953 = vmatprep.subr.mxu0 0.0
      %954 = vmatpush1.msra.mxu0 0.0
      %955 = vmatprep.subr.mxu0 0.0
      %956 = vmatpush1.msra.mxu0 0.0
      %957 = vmatprep.subr.mxu0 0.0
      %958 = vmatpush1.msra.mxu0 0.0
      %959 = vmatprep.subr.mxu0 0.0
      %960 = vmatpush1.msra.mxu0 0.0
      %961 = vmatprep.subr.mxu0 0.0
      %962 = vmatpush1.msra.mxu0 0.0
      %963 = vmatprep.subr.mxu0 0.0
      %964 = vmatpush1.msra.mxu0 0.0
      %965 = vmatprep.subr.mxu0 0.0
      %966 = vmatpush1.msra.mxu0 0.0
      %967 = vmatprep.subr.mxu0 0.0
      %968 = vmatpush1.msra.mxu0 0.0
      %969 = vmatprep.subr.mxu0 0.0
      %970 = vmatpush1.msra.mxu0 0.0
      %971 = vmatprep.subr.mxu0 0.0
      %972 = vmatpush1.msra.mxu0 0.0
      %973 = vmatprep.subr.mxu0 0.0
      %974 = vmatpush1.msra.mxu0 0.0
      %975 = vmatprep.subr.mxu0 0.0
      %976 = vmatpush1.msra.mxu0 0.0
      %977 = vmatprep.mubr.f32.mxu0 0.0
      %978 = vmatmul.mubr.f32.gmra.mrb[0].mxu0 %v769
      %v979 = vpop.f32.mrb[0].mxu0
      %v980 = vadd.f32 %v765, %v979
      %v981 = vpop.f32.mrb[0].mxu0
      %v982 = vadd.f32 %v765, %v981
      %983 = vdwg.mxu0
      %984 = vmatprep.subr.mxu0 %v680
      %985 = vmatpush1.msra.mxu0 %v679
      %986 = vmatprep.subr.mxu0 %v691
      %987 = vmatpush1.msra.mxu0 %v690
      %988 = vmatprep.subr.mxu0 %v702
      %989 = vmatpush1.msra.mxu0 %v701
      %990 = vmatprep.subr.mxu0 %v713
      %991 = vmatpush1.msra.mxu0 %v712
      %992 = vmatprep.subr.mxu0 %v724
      %993 = vmatpush1.msra.mxu0 %v723
      %994 = vmatprep.subr.mxu0 %v735
      %995 = vmatpush1.msra.mxu0 %v734
      %996 = vmatprep.subr.mxu0 %v746
      %997 = vmatpush1.msra.mxu0 %v745
      %998 = vmatprep.subr.mxu0 %v757
      %999 = vmatpush1.msra.mxu0 %v756
      %1000 = vmatprep.subr.mxu0 0.0
      %1001 = vmatpush1.msra.mxu0 0.0
      %1002 = vmatprep.subr.mxu0 0.0
      %1003 = vmatpush1.msra.mxu0 0.0
      %1004 = vmatprep.subr.mxu0 0.0
      %1005 = vmatpush1.msra.mxu0 0.0
      %1006 = vmatprep.subr.mxu0 0.0
      %1007 = vmatpush1.msra.mxu0 0.0
      %1008 = vmatprep.subr.mxu0 0.0
      %1009 = vmatpush1.msra.mxu0 0.0
      %1010 = vmatprep.subr.mxu0 0.0
      %1011 = vmatpush1.msra.mxu0 0.0
      %1012 = vmatprep.subr.mxu0 0.0
      %1013 = vmatpush1.msra.mxu0 0.0
      %1014 = vmatprep.subr.mxu0 0.0
      %1015 = vmatpush1.msra.mxu0 0.0
      %1016 = vmatprep.subr.mxu0 0.0
      %1017 = vmatpush1.msra.mxu0 0.0
      %1018 = vmatprep.subr.mxu0 0.0
      %1019 = vmatpush1.msra.mxu0 0.0
      %1020 = vmatprep.subr.mxu0 0.0
      %1021 = vmatpush1.msra.mxu0 0.0
      %1022 = vmatprep.subr.mxu0 0.0
      %1023 = vmatpush1.msra.mxu0 0.0
      %1024 = vmatprep.subr.mxu0 0.0
      %1025 = vmatpush1.msra.mxu0 0.0
      %1026 = vmatprep.subr.mxu0 0.0
      %1027 = vmatpush1.msra.mxu0 0.0
      %1028 = vmatprep.subr.mxu0 0.0
      %1029 = vmatpush1.msra.mxu0 0.0
      %1030 = vmatprep.subr.mxu0 0.0
      %1031 = vmatpush1.msra.mxu0 0.0
      %1032 = vmatprep.subr.mxu0 0.0
      %1033 = vmatpush1.msra.mxu0 0.0
      %1034 = vmatprep.subr.mxu0 0.0
      %1035 = vmatpush1.msra.mxu0 0.0
      %1036 = vmatprep.subr.mxu0 0.0
      %1037 = vmatpush1.msra.mxu0 0.0
      %1038 = vmatprep.subr.mxu0 0.0
      %1039 = vmatpush1.msra.mxu0 0.0
      %1040 = vmatprep.subr.mxu0 0.0
      %1041 = vmatpush1.msra.mxu0 0.0
      %1042 = vmatprep.subr.mxu0 0.0
      %1043 = vmatpush1.msra.mxu0 0.0
      %1044 = vmatprep.subr.mxu0 0.0
      %1045 = vmatpush1.msra.mxu0 0.0
      %1046 = vmatprep.subr.mxu0 0.0
      %1047 = vmatpush1.msra.mxu0 0.0
      %1048 = vmatprep.mubr.f32.mxu0 0.0
      %1049 = vmatmul.mubr.f32.gmra.mrb[0].mxu0 %v769
      %v1050 = vpop.f32.mrb[0].mxu0
      %v1051 = vadd.f32 %v765, %v1050
      %v1052 = vpop.f32.mrb[0].mxu0
      %v1053 = vadd.f32 %v765, %v1052
      %1054 = vdwg.mxu0
      %1055 = vmatprep.subr.mxu0 %v682
      %1056 = vmatpush1.msra.mxu0 %v681
      %1057 = vmatprep.subr.mxu0 %v693
      %1058 = vmatpush1.msra.mxu0 %v692
      %1059 = vmatprep.subr.mxu0 %v704
      %1060 = vmatpush1.msra.mxu0 %v703
      %1061 = vmatprep.subr.mxu0 %v715
      %1062 = vmatpush1.msra.mxu0 %v714
      %1063 = vmatprep.subr.mxu0 %v726
      %1064 = vmatpush1.msra.mxu0 %v725
      %1065 = vmatprep.subr.mxu0 %v737
      %1066 = vmatpush1.msra.mxu0 %v736
      %1067 = vmatprep.subr.mxu0 %v748
      %1068 = vmatpush1.msra.mxu0 %v747
      %1069 = vmatprep.subr.mxu0 %v759
      %1070 = vmatpush1.msra.mxu0 %v758
      %1071 = vmatprep.subr.mxu0 0.0
      %1072 = vmatpush1.msra.mxu0 0.0
      %1073 = vmatprep.subr.mxu0 0.0
      %1074 = vmatpush1.msra.mxu0 0.0
      %1075 = vmatprep.subr.mxu0 0.0
      %1076 = vmatpush1.msra.mxu0 0.0
      %1077 = vmatprep.subr.mxu0 0.0
      %1078 = vmatpush1.msra.mxu0 0.0
      %1079 = vmatprep.subr.mxu0 0.0
      %1080 = vmatpush1.msra.mxu0 0.0
      %1081 = vmatprep.subr.mxu0 0.0
      %1082 = vmatpush1.msra.mxu0 0.0
      %1083 = vmatprep.subr.mxu0 0.0
      %1084 = vmatpush1.msra.mxu0 0.0
      %1085 = vmatprep.subr.mxu0 0.0
      %1086 = vmatpush1.msra.mxu0 0.0
      %1087 = vmatprep.subr.mxu0 0.0
      %1088 = vmatpush1.msra.mxu0 0.0
      %1089 = vmatprep.subr.mxu0 0.0
      %1090 = vmatpush1.msra.mxu0 0.0
      %1091 = vmatprep.subr.mxu0 0.0
      %1092 = vmatpush1.msra.mxu0 0.0
      %1093 = vmatprep.subr.mxu0 0.0
      %1094 = vmatpush1.msra.mxu0 0.0
      %1095 = vmatprep.subr.mxu0 0.0
      %1096 = vmatpush1.msra.mxu0 0.0
      %1097 = vmatprep.subr.mxu0 0.0
      %1098 = vmatpush1.msra.mxu0 0.0
      %1099 = vmatprep.subr.mxu0 0.0
      %1100 = vmatpush1.msra.mxu0 0.0
      %1101 = vmatprep.subr.mxu0 0.0
      %1102 = vmatpush1.msra.mxu0 0.0
      %1103 = vmatprep.subr.mxu0 0.0
      %1104 = vmatpush1.msra.mxu0 0.0
      %1105 = vmatprep.subr.mxu0 0.0
      %1106 = vmatpush1.msra.mxu0 0.0
      %1107 = vmatprep.subr.mxu0 0.0
      %1108 = vmatpush1.msra.mxu0 0.0
      %1109 = vmatprep.subr.mxu0 0.0
      %1110 = vmatpush1.msra.mxu0 0.0
      %1111 = vmatprep.subr.mxu0 0.0
      %1112 = vmatpush1.msra.mxu0 0.0
      %1113 = vmatprep.subr.mxu0 0.0
      %1114 = vmatpush1.msra.mxu0 0.0
      %1115 = vmatprep.subr.mxu0 0.0
      %1116 = vmatpush1.msra.mxu0 0.0
      %1117 = vmatprep.subr.mxu0 0.0
      %1118 = vmatpush1.msra.mxu0 0.0
      %1119 = vmatprep.mubr.f32.mxu0 0.0
      %1120 = vmatmul.mubr.f32.gmra.mrb[0].mxu0 %v769
      %v1121 = vpop.f32.mrb[0].mxu0
      %v1122 = vadd.f32 %v765, %v1121
      %v1123 = vpop.f32.mrb[0].mxu0
      %v1124 = vadd.f32 %v765, %v1123
      %1125 = vdwg.mxu0
      %1126 = vmatprep.subr.mxu0 0.0
      %1127 = vmatpush1.msra.mxu0 %v683
      %1128 = vmatprep.subr.mxu0 0.0
      %1129 = vmatpush1.msra.mxu0 %v694
      %1130 = vmatprep.subr.mxu0 0.0
      %1131 = vmatpush1.msra.mxu0 %v705
      %1132 = vmatprep.subr.mxu0 0.0
      %1133 = vmatpush1.msra.mxu0 %v716
      %1134 = vmatprep.subr.mxu0 0.0
      %1135 = vmatpush1.msra.mxu0 %v727
      %1136 = vmatprep.subr.mxu0 0.0
      %1137 = vmatpush1.msra.mxu0 %v738
      %1138 = vmatprep.subr.mxu0 0.0
      %1139 = vmatpush1.msra.mxu0 %v749
      %1140 = vmatprep.subr.mxu0 0.0
      %1141 = vmatpush1.msra.mxu0 %v760
      %1142 = vmatprep.subr.mxu0 0.0
      %1143 = vmatpush1.msra.mxu0 0.0
      %1144 = vmatprep.subr.mxu0 0.0
      %1145 = vmatpush1.msra.mxu0 0.0
      %1146 = vmatprep.subr.mxu0 0.0
      %1147 = vmatpush1.msra.mxu0 0.0
      %1148 = vmatprep.subr.mxu0 0.0
      %1149 = vmatpush1.msra.mxu0 0.0
      %1150 = vmatprep.subr.mxu0 0.0
      %1151 = vmatpush1.msra.mxu0 0.0
      %1152 = vmatprep.subr.mxu0 0.0
      %1153 = vmatpush1.msra.mxu0 0.0
      %1154 = vmatprep.subr.mxu0 0.0
      %1155 = vmatpush1.msra.mxu0 0.0
      %1156 = vmatprep.subr.mxu0 0.0
      %1157 = vmatpush1.msra.mxu0 0.0
      %1158 = vmatprep.subr.mxu0 0.0
      %1159 = vmatpush1.msra.mxu0 0.0
      %1160 = vmatprep.subr.mxu0 0.0
      %1161 = vmatpush1.msra.mxu0 0.0
      %1162 = vmatprep.subr.mxu0 0.0
      %1163 = vmatpush1.msra.mxu0 0.0
      %1164 = vmatprep.subr.mxu0 0.0
      %1165 = vmatpush1.msra.mxu0 0.0
      %1166 = vmatprep.subr.mxu0 0.0
      %1167 = vmatpush1.msra.mxu0 0.0
      %1168 = vmatprep.subr.mxu0 0.0
      %1169 = vmatpush1.msra.mxu0 0.0
      %1170 = vmatprep.subr.mxu0 0.0
      %1171 = vmatpush1.msra.mxu0 0.0
      %1172 = vmatprep.subr.mxu0 0.0
      %1173 = vmatpush1.msra.mxu0 0.0
      %1174 = vmatprep.subr.mxu0 0.0
      %1175 = vmatpush1.msra.mxu0 0.0
      %1176 = vmatprep.subr.mxu0 0.0
      %1177 = vmatpush1.msra.mxu0 0.0
      %1178 = vmatprep.subr.mxu0 0.0
      %1179 = vmatpush1.msra.mxu0 0.0
      %1180 = vmatprep.subr.mxu0 0.0
      %1181 = vmatpush1.msra.mxu0 0.0
      %1182 = vmatprep.subr.mxu0 0.0
      %1183 = vmatpush1.msra.mxu0 0.0
      %1184 = vmatprep.subr.mxu0 0.0
      %1185 = vmatpush1.msra.mxu0 0.0
      %1186 = vmatprep.subr.mxu0 0.0
      %1187 = vmatpush1.msra.mxu0 0.0
      %1188 = vmatprep.subr.mxu0 0.0
      %1189 = vmatpush1.msra.mxu0 0.0
      %1190 = vmatprep.mubr.f32.mxu0 0.0
      %1191 = vmatmul.mubr.f32.gmra.mrb[0].mxu0 %v769
      %v1192 = vpop.f32.mrb[0].mxu0
      %v1193 = vadd.f32 %v765, %v1192
      %v1194 = vpop.f32.mrb[0].mxu0
      %1195 = vdwg.mxu0
      %v1196 = vmax.f32 %v838, 0.0
      %v1197 = vmax.f32 %v840, 0.0
      %v1198 = vmax.f32 %v909, 0.0
      %v1199 = vmax.f32 %v911, 0.0
      %v1200 = vmax.f32 %v980, 0.0
      %v1201 = vmax.f32 %v982, 0.0
      %v1202 = vmax.f32 %v1051, 0.0
      %v1203 = vmax.f32 %v1053, 0.0
      %v1204 = vmax.f32 %v1122, 0.0
      %v1205 = vmax.f32 %v1124, 0.0
      %v1206 = vmax.f32 %v1193, 0.0
      %v1207 = vld [vmem:[%s3] sm:$0xff]
      %v1208 = vld [vmem:[%s3 + $0x8] sm:$0x7]
      %v1211 = vlaneseq
      %v1212 = vshrl.u32 %v1211, 7
      %v1213 = vsub.s32 0, %v1212
      %v1214 = vrot.slane %v1207, %v1213
      %v1215 = vlaneseq
      %v1216 = vshrl.u32 %v1215, 7
      %v1217 = vsub.s32 1, %v1216
      %v1218 = vrot.slane %v1207, %v1217
      %v1219 = vlaneseq
      %v1220 = vshrl.u32 %v1219, 7
      %v1221 = vsub.s32 2, %v1220
      %v1222 = vrot.slane %v1207, %v1221
      %v1223 = vlaneseq
      %v1224 = vshrl.u32 %v1223, 7
      %v1225 = vsub.s32 3, %v1224
      %v1226 = vrot.slane %v1207, %v1225
      %v1227 = vlaneseq
      %v1228 = vshrl.u32 %v1227, 7
      %v1229 = vsub.s32 4, %v1228
      %v1230 = vrot.slane %v1207, %v1229
      %v1231 = vlaneseq
      %v1232 = vshrl.u32 %v1231, 7
      %v1233 = vsub.s32 5, %v1232
      %v1234 = vrot.slane %v1207, %v1233
      %v1235 = vlaneseq
      %v1236 = vshrl.u32 %v1235, 7
      %v1237 = vsub.s32 6, %v1236
      %v1238 = vrot.slane %v1207, %v1237
      %v1239 = vlaneseq
      %v1240 = vshrl.u32 %v1239, 7
      %v1241 = vsub.s32 7, %v1240
      %v1242 = vrot.slane %v1207, %v1241
      %v1243 = vlaneseq
      %v1244 = vshrl.u32 %v1243, 7
      %v1245 = vsub.s32 0, %v1244
      %v1246 = vrot.slane %v1208, %v1245
      %v1247 = vlaneseq
      %v1248 = vshrl.u32 %v1247, 7
      %v1249 = vsub.s32 1, %v1248
      %v1250 = vrot.slane %v1208, %v1249
      %v1251 = vlaneseq
      %v1252 = vshrl.u32 %v1251, 7
      %v1253 = vsub.s32 2, %v1252
      %v1254 = vrot.slane %v1208, %v1253
      %v1266 = vmul.f32 %v1196, %v1214
      %v1267 = vmul.f32 %v1197, %v1218
      %v1268 = vmul.f32 %v1198, %v1222
      %v1269 = vmul.f32 %v1199, %v1226
      %v1270 = vmul.f32 %v1200, %v1230
      %v1271 = vmul.f32 %v1201, %v1234
      %v1272 = vmul.f32 %v1202, %v1238
      %v1273 = vmul.f32 %v1203, %v1242
      %v1274 = vmul.f32 %v1204, %v1246
      %v1275 = vmul.f32 %v1205, %v1250
      %v1276 = vmul.f32 %v1206, %v1254
      %1277 = vrot.lane.b32.xlu0 %v1266, 6
      %v1278 = vpop.permute.xlu0 %1277
      %1279 = vrot.lane.b32.xlu0 %v1267, 6
      %v1280 = vpop.permute.xlu0 %1279
      %1281 = vrot.lane.b32.xlu0 %v1268, 6
      %v1282 = vpop.permute.xlu0 %1281
      %1283 = vrot.lane.b32.xlu0 %v1269, 6
      %v1284 = vpop.permute.xlu0 %1283
      %1285 = vrot.lane.b32.xlu0 %v1270, 6
      %v1286 = vpop.permute.xlu0 %1285
      %1287 = vrot.lane.b32.xlu0 %v1271, 6
      %v1288 = vpop.permute.xlu0 %1287
      %1289 = vrot.lane.b32.xlu0 %v1272, 6
      %v1290 = vpop.permute.xlu0 %1289
      %1291 = vrot.lane.b32.xlu0 %v1273, 6
      %v1292 = vpop.permute.xlu0 %1291
      %1293 = vrot.lane.b32.xlu0 %v1274, 6
      %v1294 = vpop.permute.xlu0 %1293
      %1295 = vrot.lane.b32.xlu0 %v1275, 6
      %v1296 = vpop.permute.xlu0 %1295
      %1297 = vrot.lane.b32.xlu0 %v1276, 6
      %v1298 = vpop.permute.xlu0 %1297
      %vm1299 = vcmp.lt.s32.totalorder %v367, 6
      %v1300 = vsel %vm1299, %v1296, %v1298
      %v1301 = vsel %vm1299, %v1294, %v1296
      %v1302 = vsel %vm1299, %v1292, %v1294
      %v1303 = vsel %vm1299, %v1290, %v1292
      %v1304 = vsel %vm1299, %v1288, %v1290
      %v1305 = vsel %vm1299, %v1286, %v1288
      %v1306 = vsel %vm1299, %v1284, %v1286
      %v1307 = vsel %vm1299, %v1282, %v1284
      %v1308 = vsel %vm1299, %v1280, %v1282
      %v1309 = vsel %vm1299, %v1278, %v1280
      %v1310 = vsel %vm1299, %v1298, %v1278
      %1311 = vst [vmem:[#allocation2] sm:$0xff] %v1301
      %1312 = vst [vmem:[#allocation2 + $0x8] sm:$0xff] %v1300
      %1313 = vst [vmem:[#allocation2 + $0x10] sm:$0xff] %v1310
      %1314 = vst [vmem:[#allocation2 + $0x18] sm:$0xff] %v1309
      %1315 = vst [vmem:[#allocation2 + $0x20] sm:$0xff] %v1308
      %1316 = vst [vmem:[#allocation2 + $0x28] sm:$0xff] %v1307
      %1317 = vst [vmem:[#allocation2 + $0x30] sm:$0xff] %v1306
      %1318 = vst [vmem:[#allocation2 + $0x38] sm:$0xff] %v1305
      %1319 = vst [vmem:[#allocation2 + $0x40] sm:$0xff] %v1304
      %1320 = vst [vmem:[#allocation2 + $0x48] sm:$0xff] %v1303
      %1321 = vst [vmem:[#allocation2 + $0x50] sm:$0xff] %v1302
      %1322 = vrot.lane.b32.xlu0 %v1266, 4
      %v1323 = vpop.permute.xlu0 %1322
      %1324 = vrot.lane.b32.xlu0 %v1267, 4
      %v1325 = vpop.permute.xlu0 %1324
      %1326 = vrot.lane.b32.xlu0 %v1268, 4
      %v1327 = vpop.permute.xlu0 %1326
      %1328 = vrot.lane.b32.xlu0 %v1269, 4
      %v1329 = vpop.permute.xlu0 %1328
      %1330 = vrot.lane.b32.xlu0 %v1270, 4
      %v1331 = vpop.permute.xlu0 %1330
      %1332 = vrot.lane.b32.xlu0 %v1271, 4
      %v1333 = vpop.permute.xlu0 %1332
      %1334 = vrot.lane.b32.xlu0 %v1272, 4
      %v1335 = vpop.permute.xlu0 %1334
      %1336 = vrot.lane.b32.xlu0 %v1273, 4
      %v1337 = vpop.permute.xlu0 %1336
      %1338 = vrot.lane.b32.xlu0 %v1274, 4
      %v1339 = vpop.permute.xlu0 %1338
      %1340 = vrot.lane.b32.xlu0 %v1275, 4
      %v1341 = vpop.permute.xlu0 %1340
      %1342 = vrot.lane.b32.xlu0 %v1276, 4
      %v1343 = vpop.permute.xlu0 %1342
      %vm1344 = vcmp.lt.s32.totalorder %v367, 4
      %v1345 = vsel %vm1344, %v1341, %v1343
      %v1346 = vsel %vm1344, %v1339, %v1341
      %v1347 = vsel %vm1344, %v1337, %v1339
      %v1348 = vsel %vm1344, %v1335, %v1337
      %v1349 = vsel %vm1344, %v1333, %v1335
      %v1350 = vsel %vm1344, %v1331, %v1333
      %v1351 = vsel %vm1344, %v1329, %v1331
      %v1352 = vsel %vm1344, %v1327, %v1329
      %v1353 = vsel %vm1344, %v1325, %v1327
      %v1354 = vsel %vm1344, %v1323, %v1325
      %v1355 = vsel %vm1344, %v1343, %v1323
      %1356 = vst [vmem:[#allocation2 + $0x58] sm:$0xff] %v1346
      %1357 = vst [vmem:[#allocation2 + $0x60] sm:$0xff] %v1345
      %1358 = vst [vmem:[#allocation2 + $0x68] sm:$0xff] %v1355
      %1359 = vst [vmem:[#allocation2 + $0x70] sm:$0xff] %v1354
      %1360 = vst [vmem:[#allocation2 + $0x78] sm:$0xff] %v1353
      %1361 = vst [vmem:[#allocation2 + $0x80] sm:$0xff] %v1352
      %1362 = vst [vmem:[#allocation2 + $0x88] sm:$0xff] %v1351
      %1363 = vst [vmem:[#allocation2 + $0x90] sm:$0xff] %v1350
      %1364 = vst [vmem:[#allocation2 + $0x98] sm:$0xff] %v1349
      %1365 = vst [vmem:[#allocation2 + $0xa0] sm:$0xff] %v1348
      %1366 = vst [vmem:[#allocation2 + $0xa8] sm:$0xff] %v1347
      %1367 = vrot.lane.b32.xlu0 %v1266, 108
      %v1368 = vpop.permute.xlu0 %1367
      %1369 = vrot.lane.b32.xlu0 %v1267, 108
      %v1370 = vpop.permute.xlu0 %1369
      %1371 = vrot.lane.b32.xlu0 %v1268, 108
      %v1372 = vpop.permute.xlu0 %1371
      %1373 = vrot.lane.b32.xlu0 %v1269, 108
      %v1374 = vpop.permute.xlu0 %1373
      %1375 = vrot.lane.b32.xlu0 %v1270, 108
      %v1376 = vpop.permute.xlu0 %1375
      %1377 = vrot.lane.b32.xlu0 %v1271, 108
      %v1378 = vpop.permute.xlu0 %1377
      %1379 = vrot.lane.b32.xlu0 %v1272, 108
      %v1380 = vpop.permute.xlu0 %1379
      %1381 = vrot.lane.b32.xlu0 %v1273, 108
      %v1382 = vpop.permute.xlu0 %1381
      %1383 = vrot.lane.b32.xlu0 %v1274, 108
      %v1384 = vpop.permute.xlu0 %1383
      %1385 = vrot.lane.b32.xlu0 %v1275, 108
      %v1386 = vpop.permute.xlu0 %1385
      %1387 = vrot.lane.b32.xlu0 %v1276, 108
      %v1388 = vpop.permute.xlu0 %1387
      %vm1389 = vcmp.lt.s32.totalorder %v367, 108
      %v1390 = vsel %vm1389, %v1386, %v1388
      %v1391 = vsel %vm1389, %v1384, %v1386
      %v1392 = vsel %vm1389, %v1382, %v1384
      %v1393 = vsel %vm1389, %v1380, %v1382
      %v1394 = vsel %vm1389, %v1378, %v1380
      %v1395 = vsel %vm1389, %v1376, %v1378
      %v1396 = vsel %vm1389, %v1374, %v1376
      %v1397 = vsel %vm1389, %v1372, %v1374
      %v1398 = vsel %vm1389, %v1370, %v1372
      %v1399 = vsel %vm1389, %v1368, %v1370
      %v1400 = vsel %vm1389, %v1388, %v1368
      %1401 = vst [vmem:[#allocation2 + $0xb0] sm:$0xff] %v1390
      %1402 = vst [vmem:[#allocation2 + $0xb8] sm:$0xff] %v1400
      %1403 = vst [vmem:[#allocation2 + $0xc0] sm:$0xff] %v1399
      %1404 = vst [vmem:[#allocation2 + $0xc8] sm:$0xff] %v1398
      %1405 = vst [vmem:[#allocation2 + $0xd0] sm:$0xff] %v1397
      %1406 = vst [vmem:[#allocation2 + $0xd8] sm:$0xff] %v1396
      %1407 = vst [vmem:[#allocation2 + $0xe0] sm:$0xff] %v1395
      %1408 = vst [vmem:[#allocation2 + $0xe8] sm:$0xff] %v1394
      %1409 = vst [vmem:[#allocation2 + $0xf0] sm:$0xff] %v1393
      %1410 = vst [vmem:[#allocation2 + $0xf8] sm:$0xff] %v1392
      %1411 = vst [vmem:[#allocation2 + $0x100] sm:$0xff] %v1391
      %1412 = vrot.lane.b32.xlu0 %v1266, 106
      %v1413 = vpop.permute.xlu0 %1412
      %1414 = vrot.lane.b32.xlu0 %v1267, 106
      %v1415 = vpop.permute.xlu0 %1414
      %1416 = vrot.lane.b32.xlu0 %v1268, 106
      %v1417 = vpop.permute.xlu0 %1416
      %1418 = vrot.lane.b32.xlu0 %v1269, 106
      %v1419 = vpop.permute.xlu0 %1418
      %1420 = vrot.lane.b32.xlu0 %v1270, 106
      %v1421 = vpop.permute.xlu0 %1420
      %1422 = vrot.lane.b32.xlu0 %v1271, 106
      %v1423 = vpop.permute.xlu0 %1422
      %1424 = vrot.lane.b32.xlu0 %v1272, 106
      %v1425 = vpop.permute.xlu0 %1424
      %1426 = vrot.lane.b32.xlu0 %v1273, 106
      %v1427 = vpop.permute.xlu0 %1426
      %1428 = vrot.lane.b32.xlu0 %v1274, 106
      %v1429 = vpop.permute.xlu0 %1428
      %1430 = vrot.lane.b32.xlu0 %v1275, 106
      %v1431 = vpop.permute.xlu0 %1430
      %1432 = vrot.lane.b32.xlu0 %v1276, 106
      %v1433 = vpop.permute.xlu0 %1432
      %vm1434 = vcmp.lt.s32.totalorder %v367, 106
      %v1435 = vsel %vm1434, %v1431, %v1433
      %v1436 = vsel %vm1434, %v1429, %v1431
      %v1437 = vsel %vm1434, %v1427, %v1429
      %v1438 = vsel %vm1434, %v1425, %v1427
      %v1439 = vsel %vm1434, %v1423, %v1425
      %v1440 = vsel %vm1434, %v1421, %v1423
      %v1441 = vsel %vm1434, %v1419, %v1421
      %v1442 = vsel %vm1434, %v1417, %v1419
      %v1443 = vsel %vm1434, %v1415, %v1417
      %v1444 = vsel %vm1434, %v1413, %v1415
      %v1445 = vsel %vm1434, %v1433, %v1413
      %1446 = vst [vmem:[#allocation2 + $0x108] sm:$0xff] %v1435
      %1447 = vst [vmem:[#allocation2 + $0x110] sm:$0xff] %v1445
      %1448 = vst [vmem:[#allocation2 + $0x118] sm:$0xff] %v1444
      %1449 = vst [vmem:[#allocation2 + $0x120] sm:$0xff] %v1443
      %1450 = vst [vmem:[#allocation2 + $0x128] sm:$0xff] %v1442
      %1451 = vst [vmem:[#allocation2 + $0x130] sm:$0xff] %v1441
      %1452 = vst [vmem:[#allocation2 + $0x138] sm:$0xff] %v1440
      %1453 = vst [vmem:[#allocation2 + $0x140] sm:$0xff] %v1439
      %1454 = vst [vmem:[#allocation2 + $0x148] sm:$0xff] %v1438
      %1455 = vst [vmem:[#allocation2 + $0x150] sm:$0xff] %v1437
      %1456 = vst [vmem:[#allocation2 + $0x158] sm:$0xff] %v1436
      %1457 = vrot.lane.b32.xlu0 %v1266, 28
      %v1458 = vpop.permute.xlu0 %1457
      %1459 = vrot.lane.b32.xlu0 %v1267, 28
      %v1460 = vpop.permute.xlu0 %1459
      %1461 = vrot.lane.b32.xlu0 %v1268, 28
      %v1462 = vpop.permute.xlu0 %1461
      %1463 = vrot.lane.b32.xlu0 %v1269, 28
      %v1464 = vpop.permute.xlu0 %1463
      %1465 = vrot.lane.b32.xlu0 %v1270, 28
      %v1466 = vpop.permute.xlu0 %1465
      %1467 = vrot.lane.b32.xlu0 %v1271, 28
      %v1468 = vpop.permute.xlu0 %1467
      %1469 = vrot.lane.b32.xlu0 %v1272, 28
      %v1470 = vpop.permute.xlu0 %1469
      %1471 = vrot.lane.b32.xlu0 %v1273, 28
      %v1472 = vpop.permute.xlu0 %1471
      %1473 = vrot.lane.b32.xlu0 %v1274, 28
      %v1474 = vpop.permute.xlu0 %1473
      %1475 = vrot.lane.b32.xlu0 %v1275, 28
      %v1476 = vpop.permute.xlu0 %1475
      %1477 = vrot.lane.b32.xlu0 %v1276, 28
      %v1478 = vpop.permute.xlu0 %1477
      %vm1479 = vcmp.lt.s32.totalorder %v367, 28
      %v1480 = vsel %vm1479, %v1476, %v1478
      %v1481 = vsel %vm1479, %v1474, %v1476
      %v1482 = vsel %vm1479, %v1472, %v1474
      %v1483 = vsel %vm1479, %v1470, %v1472
      %v1484 = vsel %vm1479, %v1468, %v1470
      %v1485 = vsel %vm1479, %v1466, %v1468
      %v1486 = vsel %vm1479, %v1464, %v1466
      %v1487 = vsel %vm1479, %v1462, %v1464
      %v1488 = vsel %vm1479, %v1460, %v1462
      %v1489 = vsel %vm1479, %v1458, %v1460
      %v1490 = vsel %vm1479, %v1478, %v1458
      %1491 = vst [vmem:[#allocation2 + $0x160] sm:$0xff] %v1490
      %1492 = vst [vmem:[#allocation2 + $0x168] sm:$0xff] %v1489
      %1493 = vst [vmem:[#allocation2 + $0x170] sm:$0xff] %v1488
      %1494 = vst [vmem:[#allocation2 + $0x178] sm:$0xff] %v1487
      %1495 = vst [vmem:[#allocation2 + $0x180] sm:$0xff] %v1486
      %1496 = vst [vmem:[#allocation2 + $0x188] sm:$0xff] %v1485
      %1497 = vst [vmem:[#allocation2 + $0x190] sm:$0xff] %v1484
      %1498 = vst [vmem:[#allocation2 + $0x198] sm:$0xff] %v1483
      %1499 = vst [vmem:[#allocation2 + $0x1a0] sm:$0xff] %v1482
      %1500 = vst [vmem:[#allocation2 + $0x1a8] sm:$0xff] %v1481
      %1501 = vst [vmem:[#allocation2 + $0x1b0] sm:$0xff] %v1480
      %1502 = vrot.lane.b32.xlu0 %v1266, 26
      %v1503 = vpop.permute.xlu0 %1502
      %1504 = vrot.lane.b32.xlu0 %v1267, 26
      %v1505 = vpop.permute.xlu0 %1504
      %1506 = vrot.lane.b32.xlu0 %v1268, 26
      %v1507 = vpop.permute.xlu0 %1506
      %1508 = vrot.lane.b32.xlu0 %v1269, 26
      %v1509 = vpop.permute.xlu0 %1508
      %1510 = vrot.lane.b32.xlu0 %v1270, 26
      %v1511 = vpop.permute.xlu0 %1510
      %1512 = vrot.lane.b32.xlu0 %v1271, 26
      %v1513 = vpop.permute.xlu0 %1512
      %1514 = vrot.lane.b32.xlu0 %v1272, 26
      %v1515 = vpop.permute.xlu0 %1514
      %1516 = vrot.lane.b32.xlu0 %v1273, 26
      %v1517 = vpop.permute.xlu0 %1516
      %1518 = vrot.lane.b32.xlu0 %v1274, 26
      %v1519 = vpop.permute.xlu0 %1518
      %1520 = vrot.lane.b32.xlu0 %v1275, 26
      %v1521 = vpop.permute.xlu0 %1520
      %1522 = vrot.lane.b32.xlu0 %v1276, 26
      %v1523 = vpop.permute.xlu0 %1522
      %vm1524 = vcmp.lt.s32.totalorder %v367, 26
      %v1525 = vsel %vm1524, %v1521, %v1523
      %v1526 = vsel %vm1524, %v1519, %v1521
      %v1527 = vsel %vm1524, %v1517, %v1519
      %v1528 = vsel %vm1524, %v1515, %v1517
      %v1529 = vsel %vm1524, %v1513, %v1515
      %v1530 = vsel %vm1524, %v1511, %v1513
      %v1531 = vsel %vm1524, %v1509, %v1511
      %v1532 = vsel %vm1524, %v1507, %v1509
      %v1533 = vsel %vm1524, %v1505, %v1507
      %v1534 = vsel %vm1524, %v1503, %v1505
      %v1535 = vsel %vm1524, %v1523, %v1503
      %1536 = vst [vmem:[#allocation2 + $0x1b8] sm:$0xff] %v1535
      %1537 = vst [vmem:[#allocation2 + $0x1c0] sm:$0xff] %v1534
      %1538 = vst [vmem:[#allocation2 + $0x1c8] sm:$0xff] %v1533
      %1539 = vst [vmem:[#allocation2 + $0x1d0] sm:$0xff] %v1532
      %1540 = vst [vmem:[#allocation2 + $0x1d8] sm:$0xff] %v1531
      %1541 = vst [vmem:[#allocation2 + $0x1e0] sm:$0xff] %v1530
      %1542 = vst [vmem:[#allocation2 + $0x1e8] sm:$0xff] %v1529
      %1543 = vst [vmem:[#allocation2 + $0x1f0] sm:$0xff] %v1528
      %1544 = vst [vmem:[#allocation2 + $0x1f8] sm:$0xff] %v1527
      %1545 = vst [vmem:[#allocation2 + $0x200] sm:$0xff] %v1526
      %1546 = vst [vmem:[#allocation2 + $0x208] sm:$0xff] %v1525
      %1547 = vrot.lane.b32.xlu0 %v1266, 2
      %v1548 = vpop.permute.xlu0 %1547
      %1549 = vrot.lane.b32.xlu0 %v1267, 2
      %v1550 = vpop.permute.xlu0 %1549
      %1551 = vrot.lane.b32.xlu0 %v1268, 2
      %v1552 = vpop.permute.xlu0 %1551
      %1553 = vrot.lane.b32.xlu0 %v1269, 2
      %v1554 = vpop.permute.xlu0 %1553
      %1555 = vrot.lane.b32.xlu0 %v1270, 2
      %v1556 = vpop.permute.xlu0 %1555
      %1557 = vrot.lane.b32.xlu0 %v1271, 2
      %v1558 = vpop.permute.xlu0 %1557
      %1559 = vrot.lane.b32.xlu0 %v1272, 2
      %v1560 = vpop.permute.xlu0 %1559
      %1561 = vrot.lane.b32.xlu0 %v1273, 2
      %v1562 = vpop.permute.xlu0 %1561
      %1563 = vrot.lane.b32.xlu0 %v1274, 2
      %v1564 = vpop.permute.xlu0 %1563
      %1565 = vrot.lane.b32.xlu0 %v1275, 2
      %v1566 = vpop.permute.xlu0 %1565
      %1567 = vrot.lane.b32.xlu0 %v1276, 2
      %v1568 = vpop.permute.xlu0 %1567
      %v1569 = vsel %vm413, %v1566, %v1568
      %v1570 = vsel %vm413, %v1564, %v1566
      %v1571 = vsel %vm413, %v1562, %v1564
      %v1572 = vsel %vm413, %v1560, %v1562
      %v1573 = vsel %vm413, %v1558, %v1560
      %v1574 = vsel %vm413, %v1556, %v1558
      %v1575 = vsel %vm413, %v1554, %v1556
      %v1576 = vsel %vm413, %v1552, %v1554
      %v1577 = vsel %vm413, %v1550, %v1552
      %v1578 = vsel %vm413, %v1548, %v1550
      %v1579 = vsel %vm413, %v1568, %v1548
      %1580 = vst [vmem:[#allocation2 + $0x210] sm:$0xff] %v1579
      %1581 = vst [vmem:[#allocation2 + $0x218] sm:$0xff] %v1578
      %1582 = vst [vmem:[#allocation2 + $0x220] sm:$0xff] %v1577
      %1583 = vst [vmem:[#allocation2 + $0x228] sm:$0xff] %v1576
      %1584 = vst [vmem:[#allocation2 + $0x230] sm:$0xff] %v1575
      %1585 = vst [vmem:[#allocation2 + $0x238] sm:$0xff] %v1574
      %1586 = vst [vmem:[#allocation2 + $0x240] sm:$0xff] %v1573
      %1587 = vst [vmem:[#allocation2 + $0x248] sm:$0xff] %v1572
      %1588 = vst [vmem:[#allocation2 + $0x250] sm:$0xff] %v1571
      %1589 = vst [vmem:[#allocation2 + $0x258] sm:$0xff] %v1570
      %1590 = vst [vmem:[#allocation2 + $0x260] sm:$0xff] %v1569
      %1591 = vst [vmem:[#allocation2 + $0x268] sm:$0xff] %v1266
      %1592 = vst [vmem:[#allocation2 + $0x270] sm:$0xff] %v1267
      %1593 = vst [vmem:[#allocation2 + $0x278] sm:$0xff] %v1268
      %1594 = vst [vmem:[#allocation2 + $0x280] sm:$0xff] %v1269
      %1595 = vst [vmem:[#allocation2 + $0x288] sm:$0xff] %v1270
      %1596 = vst [vmem:[#allocation2 + $0x290] sm:$0xff] %v1271
      %1597 = vst [vmem:[#allocation2 + $0x298] sm:$0xff] %v1272
      %1598 = vst [vmem:[#allocation2 + $0x2a0] sm:$0xff] %v1273
      %1599 = vst [vmem:[#allocation2 + $0x2a8] sm:$0xff] %v1274
      %1600 = vst [vmem:[#allocation2 + $0x2b0] sm:$0xff] %v1275
      %1601 = vst [vmem:[#allocation2 + $0x2b8] sm:$0xff] %v1276
      %v1602 = vld [vmem:[%s4] sm:$0xff]
      %v1603 = vld [vmem:[#allocation2] sm:$0xff]
      %v1604 = vld [vmem:[#allocation2 + $0x8] sm:$0xff]
      %v1605 = vld [vmem:[#allocation2 + $0x10] sm:$0xff]
      %v1606 = vld [vmem:[#allocation2 + $0x18] sm:$0xff]
      %v1607 = vld [vmem:[#allocation2 + $0x20] sm:$0xff]
      %v1608 = vld [vmem:[#allocation2 + $0x28] sm:$0xff]
      %v1609 = vld [vmem:[#allocation2 + $0x30] sm:$0xff]
      %v1610 = vld [vmem:[#allocation2 + $0x38] sm:$0xff]
      %v1611 = vld [vmem:[#allocation2 + $0x40] sm:$0xff]
      %v1612 = vld [vmem:[#allocation2 + $0x48] sm:$0xff]
      %v1613 = vld [vmem:[#allocation2 + $0x50] sm:$0xff]
      %v1614 = vld [vmem:[#allocation2 + $0x58] sm:$0xff]
      %v1615 = vld [vmem:[#allocation2 + $0x60] sm:$0xff]
      %v1616 = vld [vmem:[#allocation2 + $0x68] sm:$0xff]
      %v1617 = vld [vmem:[#allocation2 + $0x70] sm:$0xff]
      %v1618 = vld [vmem:[#allocation2 + $0x78] sm:$0xff]
      %v1619 = vld [vmem:[#allocation2 + $0x80] sm:$0xff]
      %v1620 = vld [vmem:[#allocation2 + $0x88] sm:$0xff]
      %v1621 = vld [vmem:[#allocation2 + $0x90] sm:$0xff]
      %v1622 = vld [vmem:[#allocation2 + $0x98] sm:$0xff]
      %v1623 = vld [vmem:[#allocation2 + $0xa0] sm:$0xff]
      %v1624 = vld [vmem:[#allocation2 + $0xa8] sm:$0xff]
      %v1625 = vld [vmem:[#allocation2 + $0xb0] sm:$0xff]
      %v1626 = vld [vmem:[#allocation2 + $0xb8] sm:$0xff]
      %v1627 = vld [vmem:[#allocation2 + $0xc0] sm:$0xff]
      %v1628 = vld [vmem:[#allocation2 + $0xc8] sm:$0xff]
      %v1629 = vld [vmem:[#allocation2 + $0xd0] sm:$0xff]
      %v1630 = vld [vmem:[#allocation2 + $0xd8] sm:$0xff]
      %v1631 = vld [vmem:[#allocation2 + $0xe0] sm:$0xff]
      %v1632 = vld [vmem:[#allocation2 + $0xe8] sm:$0xff]
      %v1633 = vld [vmem:[#allocation2 + $0xf0] sm:$0xff]
      %v1634 = vld [vmem:[#allocation2 + $0xf8] sm:$0xff]
      %v1635 = vld [vmem:[#allocation2 + $0x100] sm:$0xff]
      %v1636 = vld [vmem:[#allocation2 + $0x108] sm:$0xff]
      %v1637 = vld [vmem:[#allocation2 + $0x110] sm:$0xff]
      %v1638 = vld [vmem:[#allocation2 + $0x118] sm:$0xff]
      %v1639 = vld [vmem:[#allocation2 + $0x120] sm:$0xff]
      %v1640 = vld [vmem:[#allocation2 + $0x128] sm:$0xff]
      %v1641 = vld [vmem:[#allocation2 + $0x130] sm:$0xff]
      %v1642 = vld [vmem:[#allocation2 + $0x138] sm:$0xff]
      %v1643 = vld [vmem:[#allocation2 + $0x140] sm:$0xff]
      %v1644 = vld [vmem:[#allocation2 + $0x148] sm:$0xff]
      %v1645 = vld [vmem:[#allocation2 + $0x150] sm:$0xff]
      %v1646 = vld [vmem:[#allocation2 + $0x158] sm:$0xff]
      %v1647 = vld [vmem:[#allocation2 + $0x160] sm:$0xff]
      %v1648 = vld [vmem:[#allocation2 + $0x168] sm:$0xff]
      %v1649 = vld [vmem:[#allocation2 + $0x170] sm:$0xff]
      %v1650 = vld [vmem:[#allocation2 + $0x178] sm:$0xff]
      %v1651 = vld [vmem:[#allocation2 + $0x180] sm:$0xff]
      %v1652 = vld [vmem:[#allocation2 + $0x188] sm:$0xff]
      %v1653 = vld [vmem:[#allocation2 + $0x190] sm:$0xff]
      %v1654 = vld [vmem:[#allocation2 + $0x198] sm:$0xff]
      %v1655 = vld [vmem:[#allocation2 + $0x1a0] sm:$0xff]
      %v1656 = vld [vmem:[#allocation2 + $0x1a8] sm:$0xff]
      %v1657 = vld [vmem:[#allocation2 + $0x1b0] sm:$0xff]
      %v1658 = vld [vmem:[#allocation2 + $0x1b8] sm:$0xff]
      %v1659 = vld [vmem:[#allocation2 + $0x1c0] sm:$0xff]
      %v1660 = vld [vmem:[#allocation2 + $0x1c8] sm:$0xff]
      %v1661 = vld [vmem:[#allocation2 + $0x1d0] sm:$0xff]
      %v1662 = vld [vmem:[#allocation2 + $0x1d8] sm:$0xff]
      %v1663 = vld [vmem:[#allocation2 + $0x1e0] sm:$0xff]
      %v1664 = vld [vmem:[#allocation2 + $0x1e8] sm:$0xff]
      %v1665 = vld [vmem:[#allocation2 + $0x1f0] sm:$0xff]
      %v1666 = vld [vmem:[#allocation2 + $0x1f8] sm:$0xff]
      %v1667 = vld [vmem:[#allocation2 + $0x200] sm:$0xff]
      %v1668 = vld [vmem:[#allocation2 + $0x208] sm:$0xff]
      %v1669 = vld [vmem:[#allocation2 + $0x210] sm:$0xff]
      %v1670 = vld [vmem:[#allocation2 + $0x218] sm:$0xff]
      %v1671 = vld [vmem:[#allocation2 + $0x220] sm:$0xff]
      %v1672 = vld [vmem:[#allocation2 + $0x228] sm:$0xff]
      %v1673 = vld [vmem:[#allocation2 + $0x230] sm:$0xff]
      %v1674 = vld [vmem:[#allocation2 + $0x238] sm:$0xff]
      %v1675 = vld [vmem:[#allocation2 + $0x240] sm:$0xff]
      %v1676 = vld [vmem:[#allocation2 + $0x248] sm:$0xff]
      %v1677 = vld [vmem:[#allocation2 + $0x250] sm:$0xff]
      %v1678 = vld [vmem:[#allocation2 + $0x258] sm:$0xff]
      %v1679 = vld [vmem:[#allocation2 + $0x260] sm:$0xff]
      %v1680 = vld [vmem:[#allocation2 + $0x268] sm:$0xff]
      %v1681 = vld [vmem:[#allocation2 + $0x270] sm:$0xff]
      %v1682 = vld [vmem:[#allocation2 + $0x278] sm:$0xff]
      %v1683 = vld [vmem:[#allocation2 + $0x280] sm:$0xff]
      %v1684 = vld [vmem:[#allocation2 + $0x288] sm:$0xff]
      %v1685 = vld [vmem:[#allocation2 + $0x290] sm:$0xff]
      %v1686 = vld [vmem:[#allocation2 + $0x298] sm:$0xff]
      %v1687 = vld [vmem:[#allocation2 + $0x2a0] sm:$0xff]
      %v1688 = vld [vmem:[#allocation2 + $0x2a8] sm:$0xff]
      %v1689 = vld [vmem:[#allocation2 + $0x2b0] sm:$0xff]
      %v1690 = vld [vmem:[#allocation2 + $0x2b8] sm:$0xff]
      %v1691 = vld [vmem:[%s5] sm:$0xff]
      %1693 = vset.pattern.permute.xlu0 0
      %1694 = vperm.xlu0 %1693, %v1691
      %v1695 = vpop.permute.xlu0 %1694
      %v1698 = vsel %vm767, %v1602, 0
      %1700 = vmatprep.subr.mxu0 %v1604
      %1701 = vmatpush1.msra.mxu0 %v1603
      %1702 = vmatprep.subr.mxu0 %v1615
      %1703 = vmatpush1.msra.mxu0 %v1614
      %1704 = vmatprep.subr.mxu0 %v1626
      %1705 = vmatpush1.msra.mxu0 %v1625
      %1706 = vmatprep.subr.mxu0 %v1637
      %1707 = vmatpush1.msra.mxu0 %v1636
      %1708 = vmatprep.subr.mxu0 %v1648
      %1709 = vmatpush1.msra.mxu0 %v1647
      %1710 = vmatprep.subr.mxu0 %v1659
      %1711 = vmatpush1.msra.mxu0 %v1658
      %1712 = vmatprep.subr.mxu0 %v1670
      %1713 = vmatpush1.msra.mxu0 %v1669
      %1714 = vmatprep.subr.mxu0 %v1681
      %1715 = vmatpush1.msra.mxu0 %v1680
      %1716 = vmatprep.subr.mxu0 0.0
      %1717 = vmatpush1.msra.mxu0 0.0
      %1718 = vmatprep.subr.mxu0 0.0
      %1719 = vmatpush1.msra.mxu0 0.0
      %1720 = vmatprep.subr.mxu0 0.0
      %1721 = vmatpush1.msra.mxu0 0.0
      %1722 = vmatprep.subr.mxu0 0.0
      %1723 = vmatpush1.msra.mxu0 0.0
      %1724 = vmatprep.subr.mxu0 0.0
      %1725 = vmatpush1.msra.mxu0 0.0
      %1726 = vmatprep.subr.mxu0 0.0
      %1727 = vmatpush1.msra.mxu0 0.0
      %1728 = vmatprep.subr.mxu0 0.0
      %1729 = vmatpush1.msra.mxu0 0.0
      %1730 = vmatprep.subr.mxu0 0.0
      %1731 = vmatpush1.msra.mxu0 0.0
      %1732 = vmatprep.subr.mxu0 0.0
      %1733 = vmatpush1.msra.mxu0 0.0
      %1734 = vmatprep.subr.mxu0 0.0
      %1735 = vmatpush1.msra.mxu0 0.0
      %1736 = vmatprep.subr.mxu0 0.0
      %1737 = vmatpush1.msra.mxu0 0.0
      %1738 = vmatprep.subr.mxu0 0.0
      %1739 = vmatpush1.msra.mxu0 0.0
      %1740 = vmatprep.subr.mxu0 0.0
      %1741 = vmatpush1.msra.mxu0 0.0
      %1742 = vmatprep.subr.mxu0 0.0
      %1743 = vmatpush1.msra.mxu0 0.0
      %1744 = vmatprep.subr.mxu0 0.0
      %1745 = vmatpush1.msra.mxu0 0.0
      %1746 = vmatprep.subr.mxu0 0.0
      %1747 = vmatpush1.msra.mxu0 0.0
      %1748 = vmatprep.subr.mxu0 0.0
      %1749 = vmatpush1.msra.mxu0 0.0
      %1750 = vmatprep.subr.mxu0 0.0
      %1751 = vmatpush1.msra.mxu0 0.0
      %1752 = vmatprep.subr.mxu0 0.0
      %1753 = vmatpush1.msra.mxu0 0.0
      %1754 = vmatprep.subr.mxu0 0.0
      %1755 = vmatpush1.msra.mxu0 0.0
      %1756 = vmatprep.subr.mxu0 0.0
      %1757 = vmatpush1.msra.mxu0 0.0
      %1758 = vmatprep.subr.mxu0 0.0
      %1759 = vmatpush1.msra.mxu0 0.0
      %1760 = vmatprep.subr.mxu0 0.0
      %1761 = vmatpush1.msra.mxu0 0.0
      %1762 = vmatprep.subr.mxu0 0.0
      %1763 = vmatpush1.msra.mxu0 0.0
      %1764 = vmatprep.mubr.f32.mxu0 0.0
      %1765 = vmatmul.mubr.f32.gmra.mrb[0].mxu0 %v1698
      %v1766 = vpop.f32.mrb[0].mxu0
      %v1767 = vadd.f32 %v1695, %v1766
      %v1768 = vpop.f32.mrb[0].mxu0
      %v1769 = vadd.f32 %v1695, %v1768
      %1770 = vdwg.mxu0
      %1771 = vmatprep.subr.mxu0 %v1606
      %1772 = vmatpush1.msra.mxu0 %v1605
      %1773 = vmatprep.subr.mxu0 %v1617
      %1774 = vmatpush1.msra.mxu0 %v1616
      %1775 = vmatprep.subr.mxu0 %v1628
      %1776 = vmatpush1.msra.mxu0 %v1627
      %1777 = vmatprep.subr.mxu0 %v1639
      %1778 = vmatpush1.msra.mxu0 %v1638
      %1779 = vmatprep.subr.mxu0 %v1650
      %1780 = vmatpush1.msra.mxu0 %v1649
      %1781 = vmatprep.subr.mxu0 %v1661
      %1782 = vmatpush1.msra.mxu0 %v1660
      %1783 = vmatprep.subr.mxu0 %v1672
      %1784 = vmatpush1.msra.mxu0 %v1671
      %1785 = vmatprep.subr.mxu0 %v1683
      %1786 = vmatpush1.msra.mxu0 %v1682
      %1787 = vmatprep.subr.mxu0 0.0
      %1788 = vmatpush1.msra.mxu0 0.0
      %1789 = vmatprep.subr.mxu0 0.0
      %1790 = vmatpush1.msra.mxu0 0.0
      %1791 = vmatprep.subr.mxu0 0.0
      %1792 = vmatpush1.msra.mxu0 0.0
      %1793 = vmatprep.subr.mxu0 0.0
      %1794 = vmatpush1.msra.mxu0 0.0
      %1795 = vmatprep.subr.mxu0 0.0
      %1796 = vmatpush1.msra.mxu0 0.0
      %1797 = vmatprep.subr.mxu0 0.0
      %1798 = vmatpush1.msra.mxu0 0.0
      %1799 = vmatprep.subr.mxu0 0.0
      %1800 = vmatpush1.msra.mxu0 0.0
      %1801 = vmatprep.subr.mxu0 0.0
      %1802 = vmatpush1.msra.mxu0 0.0
      %1803 = vmatprep.subr.mxu0 0.0
      %1804 = vmatpush1.msra.mxu0 0.0
      %1805 = vmatprep.subr.mxu0 0.0
      %1806 = vmatpush1.msra.mxu0 0.0
      %1807 = vmatprep.subr.mxu0 0.0
      %1808 = vmatpush1.msra.mxu0 0.0
      %1809 = vmatprep.subr.mxu0 0.0
      %1810 = vmatpush1.msra.mxu0 0.0
      %1811 = vmatprep.subr.mxu0 0.0
      %1812 = vmatpush1.msra.mxu0 0.0
      %1813 = vmatprep.subr.mxu0 0.0
      %1814 = vmatpush1.msra.mxu0 0.0
      %1815 = vmatprep.subr.mxu0 0.0
      %1816 = vmatpush1.msra.mxu0 0.0
      %1817 = vmatprep.subr.mxu0 0.0
      %1818 = vmatpush1.msra.mxu0 0.0
      %1819 = vmatprep.subr.mxu0 0.0
      %1820 = vmatpush1.msra.mxu0 0.0
      %1821 = vmatprep.subr.mxu0 0.0
      %1822 = vmatpush1.msra.mxu0 0.0
      %1823 = vmatprep.subr.mxu0 0.0
      %1824 = vmatpush1.msra.mxu0 0.0
      %1825 = vmatprep.subr.mxu0 0.0
      %1826 = vmatpush1.msra.mxu0 0.0
      %1827 = vmatprep.subr.mxu0 0.0
      %1828 = vmatpush1.msra.mxu0 0.0
      %1829 = vmatprep.subr.mxu0 0.0
      %1830 = vmatpush1.msra.mxu0 0.0
      %1831 = vmatprep.subr.mxu0 0.0
      %1832 = vmatpush1.msra.mxu0 0.0
      %1833 = vmatprep.subr.mxu0 0.0
      %1834 = vmatpush1.msra.mxu0 0.0
      %1835 = vmatprep.mubr.f32.mxu0 0.0
      %1836 = vmatmul.mubr.f32.gmra.mrb[0].mxu0 %v1698
      %v1837 = vpop.f32.mrb[0].mxu0
      %v1838 = vadd.f32 %v1695, %v1837
      %v1839 = vpop.f32.mrb[0].mxu0
      %v1840 = vadd.f32 %v1695, %v1839
      %1841 = vdwg.mxu0
      %1842 = vmatprep.subr.mxu0 %v1608
      %1843 = vmatpush1.msra.mxu0 %v1607
      %1844 = vmatprep.subr.mxu0 %v1619
      %1845 = vmatpush1.msra.mxu0 %v1618
      %1846 = vmatprep.subr.mxu0 %v1630
      %1847 = vmatpush1.msra.mxu0 %v1629
      %1848 = vmatprep.subr.mxu0 %v1641
      %1849 = vmatpush1.msra.mxu0 %v1640
      %1850 = vmatprep.subr.mxu0 %v1652
      %1851 = vmatpush1.msra.mxu0 %v1651
      %1852 = vmatprep.subr.mxu0 %v1663
      %1853 = vmatpush1.msra.mxu0 %v1662
      %1854 = vmatprep.subr.mxu0 %v1674
      %1855 = vmatpush1.msra.mxu0 %v1673
      %1856 = vmatprep.subr.mxu0 %v1685
      %1857 = vmatpush1.msra.mxu0 %v1684
      %1858 = vmatprep.subr.mxu0 0.0
      %1859 = vmatpush1.msra.mxu0 0.0
      %1860 = vmatprep.subr.mxu0 0.0
      %1861 = vmatpush1.msra.mxu0 0.0
      %1862 = vmatprep.subr.mxu0 0.0
      %1863 = vmatpush1.msra.mxu0 0.0
      %1864 = vmatprep.subr.mxu0 0.0
      %1865 = vmatpush1.msra.mxu0 0.0
      %1866 = vmatprep.subr.mxu0 0.0
      %1867 = vmatpush1.msra.mxu0 0.0
      %1868 = vmatprep.subr.mxu0 0.0
      %1869 = vmatpush1.msra.mxu0 0.0
      %1870 = vmatprep.subr.mxu0 0.0
      %1871 = vmatpush1.msra.mxu0 0.0
      %1872 = vmatprep.subr.mxu0 0.0
      %1873 = vmatpush1.msra.mxu0 0.0
      %1874 = vmatprep.subr.mxu0 0.0
      %1875 = vmatpush1.msra.mxu0 0.0
      %1876 = vmatprep.subr.mxu0 0.0
      %1877 = vmatpush1.msra.mxu0 0.0
      %1878 = vmatprep.subr.mxu0 0.0
      %1879 = vmatpush1.msra.mxu0 0.0
      %1880 = vmatprep.subr.mxu0 0.0
      %1881 = vmatpush1.msra.mxu0 0.0
      %1882 = vmatprep.subr.mxu0 0.0
      %1883 = vmatpush1.msra.mxu0 0.0
      %1884 = vmatprep.subr.mxu0 0.0
      %1885 = vmatpush1.msra.mxu0 0.0
      %1886 = vmatprep.subr.mxu0 0.0
      %1887 = vmatpush1.msra.mxu0 0.0
      %1888 = vmatprep.subr.mxu0 0.0
      %1889 = vmatpush1.msra.mxu0 0.0
      %1890 = vmatprep.subr.mxu0 0.0
      %1891 = vmatpush1.msra.mxu0 0.0
      %1892 = vmatprep.subr.mxu0 0.0
      %1893 = vmatpush1.msra.mxu0 0.0
      %1894 = vmatprep.subr.mxu0 0.0
      %1895 = vmatpush1.msra.mxu0 0.0
      %1896 = vmatprep.subr.mxu0 0.0
      %1897 = vmatpush1.msra.mxu0 0.0
      %1898 = vmatprep.subr.mxu0 0.0
      %1899 = vmatpush1.msra.mxu0 0.0
      %1900 = vmatprep.subr.mxu0 0.0
      %1901 = vmatpush1.msra.mxu0 0.0
      %1902 = vmatprep.subr.mxu0 0.0
      %1903 = vmatpush1.msra.mxu0 0.0
      %1904 = vmatprep.subr.mxu0 0.0
      %1905 = vmatpush1.msra.mxu0 0.0
      %1906 = vmatprep.mubr.f32.mxu0 0.0
      %1907 = vmatmul.mubr.f32.gmra.mrb[0].mxu0 %v1698
      %v1908 = vpop.f32.mrb[0].mxu0
      %v1909 = vadd.f32 %v1695, %v1908
      %v1910 = vpop.f32.mrb[0].mxu0
      %v1911 = vadd.f32 %v1695, %v1910
      %1912 = vdwg.mxu0
      %1913 = vmatprep.subr.mxu0 %v1610
      %1914 = vmatpush1.msra.mxu0 %v1609
      %1915 = vmatprep.subr.mxu0 %v1621
      %1916 = vmatpush1.msra.mxu0 %v1620
      %1917 = vmatprep.subr.mxu0 %v1632
      %1918 = vmatpush1.msra.mxu0 %v1631
      %1919 = vmatprep.subr.mxu0 %v1643
      %1920 = vmatpush1.msra.mxu0 %v1642
      %1921 = vmatprep.subr.mxu0 %v1654
      %1922 = vmatpush1.msra.mxu0 %v1653
      %1923 = vmatprep.subr.mxu0 %v1665
      %1924 = vmatpush1.msra.mxu0 %v1664
      %1925 = vmatprep.subr.mxu0 %v1676
      %1926 = vmatpush1.msra.mxu0 %v1675
      %1927 = vmatprep.subr.mxu0 %v1687
      %1928 = vmatpush1.msra.mxu0 %v1686
      %1929 = vmatprep.subr.mxu0 0.0
      %1930 = vmatpush1.msra.mxu0 0.0
      %1931 = vmatprep.subr.mxu0 0.0
      %1932 = vmatpush1.msra.mxu0 0.0
      %1933 = vmatprep.subr.mxu0 0.0
      %1934 = vmatpush1.msra.mxu0 0.0
      %1935 = vmatprep.subr.mxu0 0.0
      %1936 = vmatpush1.msra.mxu0 0.0
      %1937 = vmatprep.subr.mxu0 0.0
      %1938 = vmatpush1.msra.mxu0 0.0
      %1939 = vmatprep.subr.mxu0 0.0
      %1940 = vmatpush1.msra.mxu0 0.0
      %1941 = vmatprep.subr.mxu0 0.0
      %1942 = vmatpush1.msra.mxu0 0.0
      %1943 = vmatprep.subr.mxu0 0.0
      %1944 = vmatpush1.msra.mxu0 0.0
      %1945 = vmatprep.subr.mxu0 0.0
      %1946 = vmatpush1.msra.mxu0 0.0
      %1947 = vmatprep.subr.mxu0 0.0
      %1948 = vmatpush1.msra.mxu0 0.0
      %1949 = vmatprep.subr.mxu0 0.0
      %1950 = vmatpush1.msra.mxu0 0.0
      %1951 = vmatprep.subr.mxu0 0.0
      %1952 = vmatpush1.msra.mxu0 0.0
      %1953 = vmatprep.subr.mxu0 0.0
      %1954 = vmatpush1.msra.mxu0 0.0
      %1955 = vmatprep.subr.mxu0 0.0
      %1956 = vmatpush1.msra.mxu0 0.0
      %1957 = vmatprep.subr.mxu0 0.0
      %1958 = vmatpush1.msra.mxu0 0.0
      %1959 = vmatprep.subr.mxu0 0.0
      %1960 = vmatpush1.msra.mxu0 0.0
      %1961 = vmatprep.subr.mxu0 0.0
      %1962 = vmatpush1.msra.mxu0 0.0
      %1963 = vmatprep.subr.mxu0 0.0
      %1964 = vmatpush1.msra.mxu0 0.0
      %1965 = vmatprep.subr.mxu0 0.0
      %1966 = vmatpush1.msra.mxu0 0.0
      %1967 = vmatprep.subr.mxu0 0.0
      %1968 = vmatpush1.msra.mxu0 0.0
      %1969 = vmatprep.subr.mxu0 0.0
      %1970 = vmatpush1.msra.mxu0 0.0
      %1971 = vmatprep.subr.mxu0 0.0
      %1972 = vmatpush1.msra.mxu0 0.0
      %1973 = vmatprep.subr.mxu0 0.0
      %1974 = vmatpush1.msra.mxu0 0.0
      %1975 = vmatprep.subr.mxu0 0.0
      %1976 = vmatpush1.msra.mxu0 0.0
      %1977 = vmatprep.mubr.f32.mxu0 0.0
      %1978 = vmatmul.mubr.f32.gmra.mrb[0].mxu0 %v1698
      %v1979 = vpop.f32.mrb[0].mxu0
      %v1980 = vadd.f32 %v1695, %v1979
      %v1981 = vpop.f32.mrb[0].mxu0
      %v1982 = vadd.f32 %v1695, %v1981
      %1983 = vdwg.mxu0
      %1984 = vmatprep.subr.mxu0 %v1612
      %1985 = vmatpush1.msra.mxu0 %v1611
      %1986 = vmatprep.subr.mxu0 %v1623
      %1987 = vmatpush1.msra.mxu0 %v1622
      %1988 = vmatprep.subr.mxu0 %v1634
      %1989 = vmatpush1.msra.mxu0 %v1633
      %1990 = vmatprep.subr.mxu0 %v1645
      %1991 = vmatpush1.msra.mxu0 %v1644
      %1992 = vmatprep.subr.mxu0 %v1656
      %1993 = vmatpush1.msra.mxu0 %v1655
      %1994 = vmatprep.subr.mxu0 %v1667
      %1995 = vmatpush1.msra.mxu0 %v1666
      %1996 = vmatprep.subr.mxu0 %v1678
      %1997 = vmatpush1.msra.mxu0 %v1677
      %1998 = vmatprep.subr.mxu0 %v1689
      %1999 = vmatpush1.msra.mxu0 %v1688
      %2000 = vmatprep.subr.mxu0 0.0
      %2001 = vmatpush1.msra.mxu0 0.0
      %2002 = vmatprep.subr.mxu0 0.0
      %2003 = vmatpush1.msra.mxu0 0.0
      %2004 = vmatprep.subr.mxu0 0.0
      %2005 = vmatpush1.msra.mxu0 0.0
      %2006 = vmatprep.subr.mxu0 0.0
      %2007 = vmatpush1.msra.mxu0 0.0
      %2008 = vmatprep.subr.mxu0 0.0
      %2009 = vmatpush1.msra.mxu0 0.0
      %2010 = vmatprep.subr.mxu0 0.0
      %2011 = vmatpush1.msra.mxu0 0.0
      %2012 = vmatprep.subr.mxu0 0.0
      %2013 = vmatpush1.msra.mxu0 0.0
      %2014 = vmatprep.subr.mxu0 0.0
      %2015 = vmatpush1.msra.mxu0 0.0
      %2016 = vmatprep.subr.mxu0 0.0
      %2017 = vmatpush1.msra.mxu0 0.0
      %2018 = vmatprep.subr.mxu0 0.0
      %2019 = vmatpush1.msra.mxu0 0.0
      %2020 = vmatprep.subr.mxu0 0.0
      %2021 = vmatpush1.msra.mxu0 0.0
      %2022 = vmatprep.subr.mxu0 0.0
      %2023 = vmatpush1.msra.mxu0 0.0
      %2024 = vmatprep.subr.mxu0 0.0
      %2025 = vmatpush1.msra.mxu0 0.0
      %2026 = vmatprep.subr.mxu0 0.0
      %2027 = vmatpush1.msra.mxu0 0.0
      %2028 = vmatprep.subr.mxu0 0.0
      %2029 = vmatpush1.msra.mxu0 0.0
      %2030 = vmatprep.subr.mxu0 0.0
      %2031 = vmatpush1.msra.mxu0 0.0
      %2032 = vmatprep.subr.mxu0 0.0
      %2033 = vmatpush1.msra.mxu0 0.0
      %2034 = vmatprep.subr.mxu0 0.0
      %2035 = vmatpush1.msra.mxu0 0.0
      %2036 = vmatprep.subr.mxu0 0.0
      %2037 = vmatpush1.msra.mxu0 0.0
      %2038 = vmatprep.subr.mxu0 0.0
      %2039 = vmatpush1.msra.mxu0 0.0
      %2040 = vmatprep.subr.mxu0 0.0
      %2041 = vmatpush1.msra.mxu0 0.0
      %2042 = vmatprep.subr.mxu0 0.0
      %2043 = vmatpush1.msra.mxu0 0.0
      %2044 = vmatprep.subr.mxu0 0.0
      %2045 = vmatpush1.msra.mxu0 0.0
      %2046 = vmatprep.subr.mxu0 0.0
      %2047 = vmatpush1.msra.mxu0 0.0
      %2048 = vmatprep.mubr.f32.mxu0 0.0
      %2049 = vmatmul.mubr.f32.gmra.mrb[0].mxu0 %v1698
      %v2050 = vpop.f32.mrb[0].mxu0
      %v2051 = vadd.f32 %v1695, %v2050
      %v2052 = vpop.f32.mrb[0].mxu0
      %v2053 = vadd.f32 %v1695, %v2052
      %2054 = vdwg.mxu0
      %2055 = vmatprep.subr.mxu0 0.0
      %2056 = vmatpush1.msra.mxu0 %v1613
      %2057 = vmatprep.subr.mxu0 0.0
      %2058 = vmatpush1.msra.mxu0 %v1624
      %2059 = vmatprep.subr.mxu0 0.0
      %2060 = vmatpush1.msra.mxu0 %v1635
      %2061 = vmatprep.subr.mxu0 0.0
      %2062 = vmatpush1.msra.mxu0 %v1646
      %2063 = vmatprep.subr.mxu0 0.0
      %2064 = vmatpush1.msra.mxu0 %v1657
      %2065 = vmatprep.subr.mxu0 0.0
      %2066 = vmatpush1.msra.mxu0 %v1668
      %2067 = vmatprep.subr.mxu0 0.0
      %2068 = vmatpush1.msra.mxu0 %v1679
      %2069 = vmatprep.subr.mxu0 0.0
      %2070 = vmatpush1.msra.mxu0 %v1690
      %2071 = vmatprep.subr.mxu0 0.0
      %2072 = vmatpush1.msra.mxu0 0.0
      %2073 = vmatprep.subr.mxu0 0.0
      %2074 = vmatpush1.msra.mxu0 0.0
      %2075 = vmatprep.subr.mxu0 0.0
      %2076 = vmatpush1.msra.mxu0 0.0
      %2077 = vmatprep.subr.mxu0 0.0
      %2078 = vmatpush1.msra.mxu0 0.0
      %2079 = vmatprep.subr.mxu0 0.0
      %2080 = vmatpush1.msra.mxu0 0.0
      %2081 = vmatprep.subr.mxu0 0.0
      %2082 = vmatpush1.msra.mxu0 0.0
      %2083 = vmatprep.subr.mxu0 0.0
      %2084 = vmatpush1.msra.mxu0 0.0
      %2085 = vmatprep.subr.mxu0 0.0
      %2086 = vmatpush1.msra.mxu0 0.0
      %2087 = vmatprep.subr.mxu0 0.0
      %2088 = vmatpush1.msra.mxu0 0.0
      %2089 = vmatprep.subr.mxu0 0.0
      %2090 = vmatpush1.msra.mxu0 0.0
      %2091 = vmatprep.subr.mxu0 0.0
      %2092 = vmatpush1.msra.mxu0 0.0
      %2093 = vmatprep.subr.mxu0 0.0
      %2094 = vmatpush1.msra.mxu0 0.0
      %2095 = vmatprep.subr.mxu0 0.0
      %2096 = vmatpush1.msra.mxu0 0.0
      %2097 = vmatprep.subr.mxu0 0.0
      %2098 = vmatpush1.msra.mxu0 0.0
      %2099 = vmatprep.subr.mxu0 0.0
      %2100 = vmatpush1.msra.mxu0 0.0
      %2101 = vmatprep.subr.mxu0 0.0
      %2102 = vmatpush1.msra.mxu0 0.0
      %2103 = vmatprep.subr.mxu0 0.0
      %2104 = vmatpush1.msra.mxu0 0.0
      %2105 = vmatprep.subr.mxu0 0.0
      %2106 = vmatpush1.msra.mxu0 0.0
      %2107 = vmatprep.subr.mxu0 0.0
      %2108 = vmatpush1.msra.mxu0 0.0
      %2109 = vmatprep.subr.mxu0 0.0
      %2110 = vmatpush1.msra.mxu0 0.0
      %2111 = vmatprep.subr.mxu0 0.0
      %2112 = vmatpush1.msra.mxu0 0.0
      %2113 = vmatprep.subr.mxu0 0.0
      %2114 = vmatpush1.msra.mxu0 0.0
      %2115 = vmatprep.subr.mxu0 0.0
      %2116 = vmatpush1.msra.mxu0 0.0
      %2117 = vmatprep.subr.mxu0 0.0
      %2118 = vmatpush1.msra.mxu0 0.0
      %2119 = vmatprep.mubr.f32.mxu0 0.0
      %2120 = vmatmul.mubr.f32.gmra.mrb[0].mxu0 %v1698
      %v2121 = vpop.f32.mrb[0].mxu0
      %v2122 = vadd.f32 %v1695, %v2121
      %v2123 = vpop.f32.mrb[0].mxu0
      %2124 = vdwg.mxu0
      %v2125 = vmax.f32 %v1767, 0.0
      %v2126 = vmax.f32 %v1769, 0.0
      %v2127 = vmax.f32 %v1838, 0.0
      %v2128 = vmax.f32 %v1840, 0.0
      %v2129 = vmax.f32 %v1909, 0.0
      %v2130 = vmax.f32 %v1911, 0.0
      %v2131 = vmax.f32 %v1980, 0.0
      %v2132 = vmax.f32 %v1982, 0.0
      %v2133 = vmax.f32 %v2051, 0.0
      %v2134 = vmax.f32 %v2053, 0.0
      %v2135 = vmax.f32 %v2122, 0.0
      %v2136 = vld [vmem:[%s6] sm:$0xff]
      %2138 = vset.pattern.permute.xlu0 0
      %2139 = vperm.xlu0 %2138, %v2136
      %v2140 = vpop.permute.xlu0 %2139
      %v2142 = vmul.f32 %v2125, %v2140
      %v2143 = vmul.f32 %v2126, %v2140
      %v2144 = vmul.f32 %v2127, %v2140
      %v2145 = vmul.f32 %v2128, %v2140
      %v2146 = vmul.f32 %v2129, %v2140
      %v2147 = vmul.f32 %v2130, %v2140
      %v2148 = vmul.f32 %v2131, %v2140
      %v2149 = vmul.f32 %v2132, %v2140
      %v2150 = vmul.f32 %v2133, %v2140
      %v2151 = vmul.f32 %v2134, %v2140
      %v2152 = vmul.f32 %v2135, %v2140
      %v2153 = vrot.slane %v2142, 4
      %v2154 = vadd.f32 %v2142, %v2153
      %v2155 = vrot.slane %v2154, 2
      %v2156 = vadd.f32 %v2154, %v2155
      %v2157 = vrot.slane %v2156, 1
      %v2158 = vadd.f32 %v2156, %v2157
      %v2159 = vrot.slane %v2143, 4
      %v2160 = vadd.f32 %v2143, %v2159
      %v2161 = vrot.slane %v2160, 2
      %v2162 = vadd.f32 %v2160, %v2161
      %v2163 = vrot.slane %v2162, 1
      %v2164 = vadd.f32 %v2162, %v2163
      %v2165 = vrot.slane %v2144, 4
      %v2166 = vadd.f32 %v2144, %v2165
      %v2167 = vrot.slane %v2166, 2
      %v2168 = vadd.f32 %v2166, %v2167
      %v2169 = vrot.slane %v2168, 1
      %v2170 = vadd.f32 %v2168, %v2169
      %v2171 = vrot.slane %v2145, 4
      %v2172 = vadd.f32 %v2145, %v2171
      %v2173 = vrot.slane %v2172, 2
      %v2174 = vadd.f32 %v2172, %v2173
      %v2175 = vrot.slane %v2174, 1
      %v2176 = vadd.f32 %v2174, %v2175
      %v2177 = vrot.slane %v2146, 4
      %v2178 = vadd.f32 %v2146, %v2177
      %v2179 = vrot.slane %v2178, 2
      %v2180 = vadd.f32 %v2178, %v2179
      %v2181 = vrot.slane %v2180, 1
      %v2182 = vadd.f32 %v2180, %v2181
      %v2183 = vrot.slane %v2147, 4
      %v2184 = vadd.f32 %v2147, %v2183
      %v2185 = vrot.slane %v2184, 2
      %v2186 = vadd.f32 %v2184, %v2185
      %v2187 = vrot.slane %v2186, 1
      %v2188 = vadd.f32 %v2186, %v2187
      %v2189 = vrot.slane %v2148, 4
      %v2190 = vadd.f32 %v2148, %v2189
      %v2191 = vrot.slane %v2190, 2
      %v2192 = vadd.f32 %v2190, %v2191
      %v2193 = vrot.slane %v2192, 1
      %v2194 = vadd.f32 %v2192, %v2193
      %v2195 = vrot.slane %v2149, 4
      %v2196 = vadd.f32 %v2149, %v2195
      %v2197 = vrot.slane %v2196, 2
      %v2198 = vadd.f32 %v2196, %v2197
      %v2199 = vrot.slane %v2198, 1
      %v2200 = vadd.f32 %v2198, %v2199
      %v2201 = vrot.slane %v2150, 4
      %v2202 = vadd.f32 %v2150, %v2201
      %v2203 = vrot.slane %v2202, 2
      %v2204 = vadd.f32 %v2202, %v2203
      %v2205 = vrot.slane %v2204, 1
      %v2206 = vadd.f32 %v2204, %v2205
      %v2207 = vrot.slane %v2151, 4
      %v2208 = vadd.f32 %v2151, %v2207
      %v2209 = vrot.slane %v2208, 2
      %v2210 = vadd.f32 %v2208, %v2209
      %v2211 = vrot.slane %v2210, 1
      %v2212 = vadd.f32 %v2210, %v2211
      %v2213 = vrot.slane %v2152, 4
      %v2214 = vadd.f32 %v2152, %v2213
      %v2215 = vrot.slane %v2214, 2
      %v2216 = vadd.f32 %v2214, %v2215
      %v2217 = vrot.slane %v2216, 1
      %v2218 = vadd.f32 %v2216, %v2217
      %v2219 = vld [vmem:[%s8] sm:$0xff]
      %v2220 = vld [vmem:[%s8 + $0x8] sm:$0xff]
      %v2221 = vld [vmem:[%s8 + $0x10] sm:$0xff]
      %v2222 = vld [vmem:[%s8 + $0x18] sm:$0xff]
      %v2223 = vld [vmem:[%s8 + $0x20] sm:$0xff]
      %v2224 = vld [vmem:[%s8 + $0x28] sm:$0xff]
      %v2225 = vld [vmem:[%s8 + $0x30] sm:$0xff]
      %v2226 = vld [vmem:[%s8 + $0x38] sm:$0xff]
      %v2227 = vld [vmem:[%s8 + $0x40] sm:$0xff]
      %v2228 = vld [vmem:[%s8 + $0x48] sm:$0xff]
      %v2229 = vld [vmem:[%s8 + $0x50] sm:$0xff]
      %v2230 = vld [vmem:[%s8 + $0x58] sm:$0xff]
      %v2231 = vld [vmem:[%s8 + $0x60] sm:$0xff]
      %v2232 = vld [vmem:[%s8 + $0x68] sm:$0xff]
      %v2233 = vld [vmem:[%s8 + $0x70] sm:$0xff]
      %v2234 = vld [vmem:[%s8 + $0x78] sm:$0xff]
      %v2235 = vld [vmem:[%s8 + $0x80] sm:$0xff]
      %v2236 = vld [vmem:[%s8 + $0x88] sm:$0xff]
      %v2237 = vld [vmem:[%s8 + $0x90] sm:$0xff]
      %v2238 = vld [vmem:[%s8 + $0x98] sm:$0xff]
      %v2239 = vld [vmem:[%s8 + $0xa0] sm:$0xff]
      %v2240 = vld [vmem:[%s8 + $0xa8] sm:$0xff]
      %v2241 = vld [vmem:[%s8 + $0xb0] sm:$0xff]
      %v2242 = vld [vmem:[%s8 + $0xb8] sm:$0xff]
      %v2243 = vld [vmem:[%s8 + $0xc0] sm:$0xff]
      %v2244 = vld [vmem:[%s8 + $0xc8] sm:$0xff]
      %v2245 = vld [vmem:[%s8 + $0xd0] sm:$0xff]
      %v2246 = vld [vmem:[%s8 + $0xd8] sm:$0xff]
      %v2247 = vld [vmem:[%s8 + $0xe0] sm:$0xff]
      %v2248 = vld [vmem:[%s8 + $0xe8] sm:$0xff]
      %v2249 = vld [vmem:[%s8 + $0xf0] sm:$0xff]
      %v2250 = vld [vmem:[%s8 + $0xf8] sm:$0xff]
      %v2251 = vld [vmem:[%s8 + $0x100] sm:$0xff]
      %v2252 = vld [vmem:[%s8 + $0x108] sm:$0xff]
      %v2253 = vld [vmem:[%s8 + $0x110] sm:$0xff]
      %v2254 = vld [vmem:[%s8 + $0x118] sm:$0xff]
      %v2255 = vld [vmem:[%s8 + $0x120] sm:$0xff]
      %v2256 = vld [vmem:[%s8 + $0x128] sm:$0xff]
      %v2257 = vld [vmem:[%s8 + $0x130] sm:$0xff]
      %v2258 = vld [vmem:[%s8 + $0x138] sm:$0xff]
      %v2259 = vld [vmem:[%s8 + $0x140] sm:$0xff]
      %v2260 = vld [vmem:[%s8 + $0x148] sm:$0xff]
      %v2261 = vld [vmem:[%s8 + $0x150] sm:$0xff]
      %v2262 = vld [vmem:[%s8 + $0x158] sm:$0xff]
      %v2263 = vld [vmem:[%s8 + $0x160] sm:$0xff]
      %v2264 = vld [vmem:[%s8 + $0x168] sm:$0xff]
      %v2265 = vld [vmem:[%s8 + $0x170] sm:$0xff]
      %v2266 = vld [vmem:[%s8 + $0x178] sm:$0xff]
      %v2267 = vld [vmem:[%s8 + $0x180] sm:$0xff]
      %v2268 = vld [vmem:[%s8 + $0x188] sm:$0xff]
      %v2269 = vld [vmem:[%s8 + $0x190] sm:$0xff]
      %v2270 = vld [vmem:[%s8 + $0x198] sm:$0xff]
      %v2271 = vld [vmem:[%s8 + $0x1a0] sm:$0xff]
      %v2272 = vld [vmem:[%s8 + $0x1a8] sm:$0xff]
      %v2273 = vld [vmem:[%s8 + $0x1b0] sm:$0xff]
      %v2274 = vld [vmem:[%s8 + $0x1b8] sm:$0xff]
      %v2275 = vld [vmem:[%s8 + $0x1c0] sm:$0xff]
      %v2276 = vld [vmem:[%s8 + $0x1c8] sm:$0xff]
      %v2277 = vld [vmem:[%s8 + $0x1d0] sm:$0xff]
      %v2278 = vld [vmem:[%s8 + $0x1d8] sm:$0xff]
      %v2279 = vld [vmem:[%s8 + $0x1e0] sm:$0xff]
      %v2280 = vld [vmem:[%s8 + $0x1e8] sm:$0xff]
      %v2281 = vld [vmem:[%s8 + $0x1f0] sm:$0xff]
      %v2282 = vld [vmem:[%s8 + $0x1f8] sm:$0xff]
      %v2283 = vld [vmem:[%s8 + $0x200] sm:$0xff]
      %v2284 = vld [vmem:[%s8 + $0x208] sm:$0xff]
      %v2285 = vld [vmem:[%s8 + $0x210] sm:$0xff]
      %v2286 = vld [vmem:[%s8 + $0x218] sm:$0xff]
      %v2287 = vld [vmem:[%s8 + $0x220] sm:$0xff]
      %v2288 = vld [vmem:[%s8 + $0x228] sm:$0xff]
      %v2289 = vld [vmem:[%s8 + $0x230] sm:$0xff]
      %v2290 = vld [vmem:[%s8 + $0x238] sm:$0xff]
      %v2291 = vld [vmem:[%s8 + $0x240] sm:$0xff]
      %v2292 = vld [vmem:[%s8 + $0x248] sm:$0xff]
      %v2293 = vld [vmem:[%s8 + $0x250] sm:$0xff]
      %v2294 = vld [vmem:[%s8 + $0x258] sm:$0xff]
      %v2295 = vld [vmem:[%s8 + $0x260] sm:$0xff]
      %v2296 = vld [vmem:[%s8 + $0x268] sm:$0xff]
      %v2297 = vld [vmem:[%s8 + $0x270] sm:$0xff]
      %v2298 = vld [vmem:[%s8 + $0x278] sm:$0xff]
      %v2299 = vld [vmem:[%s8 + $0x280] sm:$0xff]
      %v2300 = vld [vmem:[%s8 + $0x288] sm:$0xff]
      %v2301 = vld [vmem:[%s8 + $0x290] sm:$0xff]
      %v2302 = vld [vmem:[%s8 + $0x298] sm:$0xff]
      %v2303 = vld [vmem:[%s8 + $0x2a0] sm:$0xff]
      %v2304 = vld [vmem:[%s8 + $0x2a8] sm:$0xff]
      %v2305 = vld [vmem:[%s8 + $0x2b0] sm:$0xff]
      %v2306 = vld [vmem:[%s8 + $0x2b8] sm:$0xff]
      %v2307 = vld [vmem:[%s8 + $0x2c0] sm:$0xff]
      %v2308 = vld [vmem:[%s8 + $0x2c8] sm:$0xff]
      %v2309 = vld [vmem:[%s8 + $0x2d0] sm:$0xff]
      %v2310 = vld [vmem:[%s8 + $0x2d8] sm:$0xff]
      %v2311 = vld [vmem:[%s8 + $0x2e0] sm:$0xff]
      %v2312 = vld [vmem:[%s8 + $0x2e8] sm:$0xff]
      %v2313 = vld [vmem:[%s8 + $0x2f0] sm:$0xff]
      %v2314 = vld [vmem:[%s8 + $0x2f8] sm:$0xff]
      %v2315 = vld [vmem:[%s8 + $0x300] sm:$0xff]
      %v2316 = vld [vmem:[%s8 + $0x308] sm:$0xff]
      %v2317 = vld [vmem:[%s8 + $0x310] sm:$0xff]
      %v2318 = vld [vmem:[%s8 + $0x318] sm:$0xff]
      %v2319 = vld [vmem:[%s8 + $0x320] sm:$0xff]
      %v2320 = vld [vmem:[%s8 + $0x328] sm:$0xff]
      %v2321 = vld [vmem:[%s8 + $0x330] sm:$0xff]
      %v2322 = vld [vmem:[%s8 + $0x338] sm:$0xff]
      %v2323 = vld [vmem:[%s8 + $0x340] sm:$0xff]
      %v2324 = vld [vmem:[%s8 + $0x348] sm:$0xff]
      %v2325 = vld [vmem:[%s8 + $0x350] sm:$0xff]
      %v2326 = vld [vmem:[%s8 + $0x358] sm:$0xff]
      %v2327 = vld [vmem:[%s8 + $0x360] sm:$0xff]
      %v2328 = vld [vmem:[%s8 + $0x368] sm:$0xff]
      %v2329 = vld [vmem:[%s8 + $0x370] sm:$0xff]
      %v2330 = vld [vmem:[%s8 + $0x378] sm:$0xff]
      %v2331 = vld [vmem:[%s8 + $0x380] sm:$0xff]
      %v2332 = vld [vmem:[%s8 + $0x388] sm:$0xff]
      %v2333 = vld [vmem:[%s8 + $0x390] sm:$0xff]
      %v2334 = vld [vmem:[%s8 + $0x398] sm:$0xff]
      %v2335 = vld [vmem:[%s8 + $0x3a0] sm:$0xff]
      %v2336 = vld [vmem:[%s8 + $0x3a8] sm:$0xff]
      %v2337 = vld [vmem:[%s8 + $0x3b0] sm:$0xff]
      %v2338 = vld [vmem:[%s8 + $0x3b8] sm:$0xff]
      %v2339 = vld [vmem:[%s8 + $0x3c0] sm:$0xff]
      %v2340 = vld [vmem:[%s8 + $0x3c8] sm:$0xff]
      %v2341 = vld [vmem:[%s8 + $0x3d0] sm:$0xff]
      %v2342 = vld [vmem:[%s8 + $0x3d8] sm:$0xff]
      %v2343 = vld [vmem:[%s8 + $0x3e0] sm:$0xff]
      %v2344 = vld [vmem:[%s8 + $0x3e8] sm:$0xff]
      %v2345 = vld [vmem:[%s8 + $0x3f0] sm:$0xff]
      %v2346 = vld [vmem:[%s8 + $0x3f8] sm:$0xff]
      %v2347 = vld [vmem:[%s8 + $0x400] sm:$0xff]
      %v2348 = vld [vmem:[%s8 + $0x408] sm:$0xff]
      %v2349 = vld [vmem:[%s8 + $0x410] sm:$0xff]
      %v2350 = vld [vmem:[%s8 + $0x418] sm:$0xff]
      %v2351 = vld [vmem:[%s8 + $0x420] sm:$0xff]
      %v2352 = vld [vmem:[%s8 + $0x428] sm:$0xff]
      %v2353 = vld [vmem:[%s8 + $0x430] sm:$0xff]
      %v2354 = vld [vmem:[%s8 + $0x438] sm:$0xff]
      %v2355 = vld [vmem:[%s8 + $0x440] sm:$0xff]
      %v2356 = vld [vmem:[%s8 + $0x448] sm:$0xff]
      %v2357 = vld [vmem:[%s8 + $0x450] sm:$0xff]
      %v2358 = vld [vmem:[%s8 + $0x458] sm:$0xff]
      %v2359 = vld [vmem:[%s8 + $0x460] sm:$0xff]
      %v2360 = vld [vmem:[%s8 + $0x468] sm:$0xff]
      %v2361 = vld [vmem:[%s8 + $0x470] sm:$0xff]
      %v2362 = vld [vmem:[%s8 + $0x478] sm:$0xff]
      %v2363 = vld [vmem:[%s8 + $0x480] sm:$0xff]
      %v2364 = vld [vmem:[%s8 + $0x488] sm:$0xff]
      %v2365 = vld [vmem:[%s8 + $0x490] sm:$0xff]
      %v2366 = vld [vmem:[%s8 + $0x498] sm:$0xff]
      %v2367 = vld [vmem:[%s8 + $0x4a0] sm:$0xff]
      %v2368 = vld [vmem:[%s8 + $0x4a8] sm:$0xff]
      %v2369 = vld [vmem:[%s8 + $0x4b0] sm:$0xff]
      %v2370 = vld [vmem:[%s8 + $0x4b8] sm:$0xff]
      %v2371 = vld [vmem:[%s8 + $0x4c0] sm:$0xff]
      %v2372 = vld [vmem:[%s8 + $0x4c8] sm:$0xff]
      %v2373 = vld [vmem:[%s8 + $0x4d0] sm:$0xff]
      %v2374 = vld [vmem:[%s8 + $0x4d8] sm:$0xff]
      %v2375 = vld [vmem:[%s8 + $0x4e0] sm:$0xff]
      %v2376 = vld [vmem:[%s8 + $0x4e8] sm:$0xff]
      %v2377 = vld [vmem:[%s8 + $0x4f0] sm:$0xff]
      %v2378 = vld [vmem:[%s8 + $0x4f8] sm:$0xff]
      %v2379 = vld [vmem:[%s8 + $0x500] sm:$0xff]
      %v2380 = vld [vmem:[%s8 + $0x508] sm:$0xff]
      %v2381 = vld [vmem:[%s8 + $0x510] sm:$0xff]
      %v2382 = vld [vmem:[%s8 + $0x518] sm:$0xff]
      %v2383 = vld [vmem:[%s8 + $0x520] sm:$0xff]
      %v2384 = vld [vmem:[%s8 + $0x528] sm:$0xff]
      %v2385 = vld [vmem:[%s8 + $0x530] sm:$0xff]
      %v2386 = vld [vmem:[%s8 + $0x538] sm:$0xff]
      %v2387 = vld [vmem:[%s8 + $0x540] sm:$0xff]
      %v2388 = vld [vmem:[%s8 + $0x548] sm:$0xff]
      %v2389 = vld [vmem:[%s8 + $0x550] sm:$0xff]
      %v2390 = vld [vmem:[%s8 + $0x558] sm:$0xff]
      %v2391 = vld [vmem:[%s8 + $0x560] sm:$0xff]
      %v2392 = vld [vmem:[%s8 + $0x568] sm:$0xff]
      %v2393 = vld [vmem:[%s8 + $0x570] sm:$0xff]
      %v2394 = vld [vmem:[%s8 + $0x578] sm:$0xff]
      %v2395 = vld [vmem:[%s8 + $0x580] sm:$0xff]
      %v2396 = vld [vmem:[%s8 + $0x588] sm:$0xff]
      %v2397 = vld [vmem:[%s8 + $0x590] sm:$0xff]
      %v2398 = vld [vmem:[%s8 + $0x598] sm:$0xff]
      %v2399 = vld [vmem:[%s8 + $0x5a0] sm:$0xff]
      %v2400 = vld [vmem:[%s8 + $0x5a8] sm:$0xff]
      %v2401 = vld [vmem:[%s8 + $0x5b0] sm:$0xff]
      %v2402 = vld [vmem:[%s8 + $0x5b8] sm:$0xff]
      %v2403 = vld [vmem:[%s8 + $0x5c0] sm:$0xff]
      %v2404 = vld [vmem:[%s8 + $0x5c8] sm:$0xff]
      %v2405 = vld [vmem:[%s8 + $0x5d0] sm:$0xff]
      %v2406 = vld [vmem:[%s8 + $0x5d8] sm:$0xff]
      %v2407 = vld [vmem:[%s8 + $0x5e0] sm:$0xff]
      %v2408 = vld [vmem:[%s8 + $0x5e8] sm:$0xff]
      %v2409 = vld [vmem:[%s8 + $0x5f0] sm:$0xff]
      %v2410 = vld [vmem:[%s8 + $0x5f8] sm:$0xff]
      %v2411 = vld [vmem:[%s8 + $0x600] sm:$0xff]
      %v2412 = vld [vmem:[%s8 + $0x608] sm:$0xff]
      %v2413 = vld [vmem:[%s8 + $0x610] sm:$0xff]
      %v2414 = vld [vmem:[%s8 + $0x618] sm:$0xff]
      %v2415 = vld [vmem:[%s8 + $0x620] sm:$0xff]
      %v2416 = vld [vmem:[%s8 + $0x628] sm:$0xff]
      %v2417 = vld [vmem:[%s8 + $0x630] sm:$0xff]
      %v2418 = vld [vmem:[%s8 + $0x638] sm:$0xff]
      %v2419 = vld [vmem:[%s8 + $0x640] sm:$0xff]
      %v2420 = vld [vmem:[%s8 + $0x648] sm:$0xff]
      %v2421 = vld [vmem:[%s8 + $0x650] sm:$0xff]
      %v2422 = vld [vmem:[%s8 + $0x658] sm:$0xff]
      %v2423 = vld [vmem:[%s8 + $0x660] sm:$0xff]
      %v2424 = vld [vmem:[%s8 + $0x668] sm:$0xff]
      %v2425 = vld [vmem:[%s8 + $0x670] sm:$0xff]
      %v2426 = vld [vmem:[%s8 + $0x678] sm:$0xff]
      %v2427 = vld [vmem:[%s8 + $0x680] sm:$0xff]
      %v2428 = vld [vmem:[%s8 + $0x688] sm:$0xff]
      %v2429 = vld [vmem:[%s8 + $0x690] sm:$0xff]
      %v2430 = vld [vmem:[%s8 + $0x698] sm:$0xff]
      %v2431 = vld [vmem:[%s8 + $0x6a0] sm:$0xff]
      %v2432 = vld [vmem:[%s8 + $0x6a8] sm:$0xff]
      %v2433 = vld [vmem:[%s8 + $0x6b0] sm:$0xff]
      %v2434 = vld [vmem:[%s8 + $0x6b8] sm:$0xff]
      %v2435 = vld [vmem:[%s8 + $0x6c0] sm:$0xff]
      %v2436 = vld [vmem:[%s8 + $0x6c8] sm:$0xff]
      %v2437 = vld [vmem:[%s8 + $0x6d0] sm:$0xff]
      %v2438 = vld [vmem:[%s8 + $0x6d8] sm:$0xff]
      %v2439 = vld [vmem:[%s8 + $0x6e0] sm:$0xff]
      %v2440 = vld [vmem:[%s8 + $0x6e8] sm:$0xff]
      %v2441 = vld [vmem:[%s8 + $0x6f0] sm:$0xff]
      %v2442 = vld [vmem:[%s8 + $0x6f8] sm:$0xff]
      %v2443 = vld [vmem:[%s8 + $0x700] sm:$0xff]
      %v2444 = vld [vmem:[%s8 + $0x708] sm:$0xff]
      %v2445 = vld [vmem:[%s8 + $0x710] sm:$0xff]
      %v2446 = vld [vmem:[%s8 + $0x718] sm:$0xff]
      %v2447 = vld [vmem:[%s8 + $0x720] sm:$0xff]
      %v2448 = vld [vmem:[%s8 + $0x728] sm:$0xff]
      %v2449 = vld [vmem:[%s8 + $0x730] sm:$0xff]
      %v2450 = vld [vmem:[%s8 + $0x738] sm:$0xff]
      %v2451 = vld [vmem:[%s8 + $0x740] sm:$0xff]
      %v2452 = vld [vmem:[%s8 + $0x748] sm:$0xff]
      %v2453 = vld [vmem:[%s8 + $0x750] sm:$0xff]
      %v2454 = vld [vmem:[%s8 + $0x758] sm:$0xff]
      %v2455 = vld [vmem:[%s8 + $0x760] sm:$0xff]
      %v2456 = vld [vmem:[%s8 + $0x768] sm:$0xff]
      %v2457 = vld [vmem:[%s8 + $0x770] sm:$0xff]
      %v2458 = vld [vmem:[%s8 + $0x778] sm:$0xff]
      %v2459 = vld [vmem:[%s8 + $0x780] sm:$0xff]
      %v2460 = vld [vmem:[%s8 + $0x788] sm:$0xff]
      %v2461 = vld [vmem:[%s8 + $0x790] sm:$0xff]
      %v2462 = vld [vmem:[%s8 + $0x798] sm:$0xff]
      %v2463 = vld [vmem:[%s8 + $0x7a0] sm:$0xff]
      %v2464 = vld [vmem:[%s8 + $0x7a8] sm:$0xff]
      %v2465 = vld [vmem:[%s8 + $0x7b0] sm:$0xff]
      %v2466 = vld [vmem:[%s8 + $0x7b8] sm:$0xff]
      %v2467 = vld [vmem:[%s8 + $0x7c0] sm:$0xff]
      %v2468 = vld [vmem:[%s8 + $0x7c8] sm:$0xff]
      %v2469 = vld [vmem:[%s8 + $0x7d0] sm:$0xff]
      %v2470 = vld [vmem:[%s8 + $0x7d8] sm:$0xff]
      %v2471 = vld [vmem:[%s8 + $0x7e0] sm:$0xff]
      %v2472 = vld [vmem:[%s8 + $0x7e8] sm:$0xff]
      %v2473 = vld [vmem:[%s8 + $0x7f0] sm:$0xff]
      %v2474 = vld [vmem:[%s8 + $0x7f8] sm:$0xff]
      %v2475 = vld [vmem:[%s8 + $0x800] sm:$0xff]
      %v2476 = vld [vmem:[%s8 + $0x808] sm:$0xff]
      %v2477 = vld [vmem:[%s8 + $0x810] sm:$0xff]
      %v2478 = vld [vmem:[%s8 + $0x818] sm:$0xff]
      %v2479 = vld [vmem:[%s8 + $0x820] sm:$0xff]
      %v2480 = vld [vmem:[%s8 + $0x828] sm:$0xff]
      %v2481 = vld [vmem:[%s8 + $0x830] sm:$0xff]
      %v2482 = vld [vmem:[%s8 + $0x838] sm:$0xff]
      %v2483 = vld [vmem:[%s8 + $0x840] sm:$0xff]
      %v2484 = vld [vmem:[%s8 + $0x848] sm:$0xff]
      %v2485 = vld [vmem:[%s8 + $0x850] sm:$0xff]
      %v2486 = vld [vmem:[%s8 + $0x858] sm:$0xff]
      %v2487 = vld [vmem:[%s8 + $0x860] sm:$0xff]
      %v2488 = vld [vmem:[%s8 + $0x868] sm:$0xff]
      %v2489 = vld [vmem:[%s8 + $0x870] sm:$0xff]
      %v2490 = vld [vmem:[%s8 + $0x878] sm:$0xff]
      %v2491 = vld [vmem:[%s8 + $0x880] sm:$0xff]
      %v2492 = vld [vmem:[%s8 + $0x888] sm:$0xff]
      %v2493 = vld [vmem:[%s8 + $0x890] sm:$0xff]
      %v2494 = vld [vmem:[%s8 + $0x898] sm:$0xff]
      %v2495 = vld [vmem:[%s8 + $0x8a0] sm:$0xff]
      %v2496 = vld [vmem:[%s8 + $0x8a8] sm:$0xff]
      %v2497 = vld [vmem:[%s8 + $0x8b0] sm:$0xff]
      %v2498 = vld [vmem:[%s8 + $0x8b8] sm:$0xff]
      %v2499 = vld [vmem:[%s8 + $0x8c0] sm:$0xff]
      %v2500 = vld [vmem:[%s8 + $0x8c8] sm:$0xff]
      %v2501 = vld [vmem:[%s8 + $0x8d0] sm:$0xff]
      %v2502 = vld [vmem:[%s8 + $0x8d8] sm:$0xff]
      %v2503 = vld [vmem:[%s8 + $0x8e0] sm:$0xff]
      %v2504 = vld [vmem:[%s8 + $0x8e8] sm:$0xff]
      %v2505 = vld [vmem:[%s8 + $0x8f0] sm:$0xff]
      %v2506 = vld [vmem:[%s8 + $0x8f8] sm:$0xff]
      %v2507 = vld [vmem:[%s8 + $0x900] sm:$0xff]
      %v2508 = vld [vmem:[%s8 + $0x908] sm:$0xff]
      %v2509 = vld [vmem:[%s8 + $0x910] sm:$0xff]
      %v2510 = vld [vmem:[%s8 + $0x918] sm:$0xff]
      %v2511 = vld [vmem:[%s8 + $0x920] sm:$0xff]
      %v2512 = vld [vmem:[%s8 + $0x928] sm:$0xff]
      %v2513 = vld [vmem:[%s8 + $0x930] sm:$0xff]
      %v2514 = vld [vmem:[%s8 + $0x938] sm:$0xff]
      %v2515 = vld [vmem:[%s8 + $0x940] sm:$0xff]
      %v2516 = vld [vmem:[%s8 + $0x948] sm:$0xff]
      %v2517 = vld [vmem:[%s8 + $0x950] sm:$0xff]
      %v2518 = vld [vmem:[%s8 + $0x958] sm:$0xff]
      %v2519 = vld [vmem:[%s8 + $0x960] sm:$0xff]
      %v2520 = vld [vmem:[%s8 + $0x968] sm:$0xff]
      %v2521 = vld [vmem:[%s8 + $0x970] sm:$0xff]
      %v2522 = vld [vmem:[%s8 + $0x978] sm:$0xff]
      %v2523 = vld [vmem:[%s8 + $0x980] sm:$0xff]
      %v2524 = vld [vmem:[%s8 + $0x988] sm:$0xff]
      %v2525 = vld [vmem:[%s8 + $0x990] sm:$0xff]
      %v2526 = vld [vmem:[%s8 + $0x998] sm:$0xff]
      %v2527 = vld [vmem:[%s8 + $0x9a0] sm:$0xff]
      %v2528 = vld [vmem:[%s8 + $0x9a8] sm:$0xff]
      %v2529 = vld [vmem:[%s8 + $0x9b0] sm:$0xff]
      %v2530 = vld [vmem:[%s8 + $0x9b8] sm:$0xff]
      %v2531 = vld [vmem:[%s8 + $0x9c0] sm:$0xff]
      %v2532 = vld [vmem:[%s8 + $0x9c8] sm:$0xff]
      %v2533 = vld [vmem:[%s8 + $0x9d0] sm:$0xff]
      %v2534 = vld [vmem:[%s8 + $0x9d8] sm:$0xff]
      %v2535 = vld [vmem:[%s8 + $0x9e0] sm:$0xff]
      %v2536 = vld [vmem:[%s8 + $0x9e8] sm:$0xff]
      %v2537 = vld [vmem:[%s8 + $0x9f0] sm:$0xff]
      %v2538 = vld [vmem:[%s8 + $0x9f8] sm:$0xff]
      %v2539 = vld [vmem:[%s8 + $0xa00] sm:$0xff]
      %v2540 = vld [vmem:[%s8 + $0xa08] sm:$0xff]
      %v2541 = vld [vmem:[%s8 + $0xa10] sm:$0xff]
      %v2542 = vld [vmem:[%s8 + $0xa18] sm:$0xff]
      %v2543 = vld [vmem:[%s8 + $0xa20] sm:$0xff]
      %v2544 = vld [vmem:[%s8 + $0xa28] sm:$0xff]
      %v2545 = vld [vmem:[%s8 + $0xa30] sm:$0xff]
      %v2546 = vld [vmem:[%s8 + $0xa38] sm:$0xff]
      %v2547 = vld [vmem:[%s8 + $0xa40] sm:$0xff]
      %v2548 = vld [vmem:[%s8 + $0xa48] sm:$0xff]
      %v2549 = vld [vmem:[%s8 + $0xa50] sm:$0xff]
      %v2550 = vld [vmem:[%s8 + $0xa58] sm:$0xff]
      %v2551 = vld [vmem:[%s8 + $0xa60] sm:$0xff]
      %v2552 = vld [vmem:[%s8 + $0xa68] sm:$0xff]
      %v2553 = vld [vmem:[%s8 + $0xa70] sm:$0xff]
      %v2554 = vld [vmem:[%s8 + $0xa78] sm:$0xff]
      %v2555 = vld [vmem:[%s8 + $0xa80] sm:$0xff]
      %v2556 = vld [vmem:[%s8 + $0xa88] sm:$0xff]
      %v2557 = vld [vmem:[%s8 + $0xa90] sm:$0xff]
      %v2558 = vld [vmem:[%s8 + $0xa98] sm:$0xff]
      %v2559 = vld [vmem:[%s8 + $0xaa0] sm:$0xff]
      %v2560 = vld [vmem:[%s8 + $0xaa8] sm:$0xff]
      %v2561 = vld [vmem:[%s8 + $0xab0] sm:$0xff]
      %v2562 = vld [vmem:[%s8 + $0xab8] sm:$0xff]
      %v2563 = vld [vmem:[%s8 + $0xac0] sm:$0xff]
      %v2564 = vld [vmem:[%s8 + $0xac8] sm:$0xff]
      %v2565 = vld [vmem:[%s8 + $0xad0] sm:$0xff]
      %v2566 = vld [vmem:[%s8 + $0xad8] sm:$0xff]
      %v2567 = vld [vmem:[%s8 + $0xae0] sm:$0xff]
      %v2568 = vld [vmem:[%s8 + $0xae8] sm:$0xff]
      %v2569 = vld [vmem:[%s8 + $0xaf0] sm:$0xff]
      %v2570 = vld [vmem:[%s8 + $0xaf8] sm:$0xff]
      %v2571 = vld [vmem:[%s8 + $0xb00] sm:$0xff]
      %v2572 = vld [vmem:[%s8 + $0xb08] sm:$0xff]
      %v2573 = vld [vmem:[%s8 + $0xb10] sm:$0xff]
      %v2574 = vld [vmem:[%s8 + $0xb18] sm:$0xff]
      %v2575 = vld [vmem:[%s8 + $0xb20] sm:$0xff]
      %v2576 = vld [vmem:[%s8 + $0xb28] sm:$0xff]
      %v2577 = vld [vmem:[%s8 + $0xb30] sm:$0xff]
      %v2578 = vld [vmem:[%s8 + $0xb38] sm:$0xff]
      %v2579 = vld [vmem:[%s8 + $0xb40] sm:$0xff]
      %v2580 = vld [vmem:[%s8 + $0xb48] sm:$0xff]
      %v2581 = vld [vmem:[%s8 + $0xb50] sm:$0xff]
      %v2582 = vld [vmem:[%s8 + $0xb58] sm:$0xff]
      %v2583 = vld [vmem:[%s8 + $0xb60] sm:$0xff]
      %v2584 = vld [vmem:[%s8 + $0xb68] sm:$0xff]
      %v2585 = vld [vmem:[%s8 + $0xb70] sm:$0xff]
      %v2586 = vld [vmem:[%s8 + $0xb78] sm:$0xff]
      %v2587 = vld [vmem:[%s8 + $0xb80] sm:$0xff]
      %v2588 = vld [vmem:[%s8 + $0xb88] sm:$0xff]
      %v2589 = vld [vmem:[%s8 + $0xb90] sm:$0xff]
      %v2590 = vld [vmem:[%s8 + $0xb98] sm:$0xff]
      %v2591 = vld [vmem:[%s8 + $0xba0] sm:$0xff]
      %v2592 = vld [vmem:[%s8 + $0xba8] sm:$0xff]
      %v2593 = vld [vmem:[%s8 + $0xbb0] sm:$0xff]
      %v2594 = vld [vmem:[%s8 + $0xbb8] sm:$0xff]
      %v2595 = vld [vmem:[%s8 + $0xbc0] sm:$0xff]
      %v2596 = vld [vmem:[%s8 + $0xbc8] sm:$0xff]
      %v2597 = vld [vmem:[%s8 + $0xbd0] sm:$0xff]
      %v2598 = vld [vmem:[%s8 + $0xbd8] sm:$0xff]
      %v2599 = vld [vmem:[%s8 + $0xbe0] sm:$0xff]
      %v2600 = vld [vmem:[%s8 + $0xbe8] sm:$0xff]
      %v2601 = vld [vmem:[%s8 + $0xbf0] sm:$0xff]
      %v2602 = vld [vmem:[%s8 + $0xbf8] sm:$0xff]
      %v2603 = vld [vmem:[%s8 + $0xc00] sm:$0xff]
      %v2604 = vld [vmem:[%s8 + $0xc08] sm:$0xff]
      %v2605 = vld [vmem:[%s8 + $0xc10] sm:$0xff]
      %v2606 = vld [vmem:[%s8 + $0xc18] sm:$0xff]
      %v2607 = vld [vmem:[%s8 + $0xc20] sm:$0xff]
      %v2608 = vld [vmem:[%s8 + $0xc28] sm:$0xff]
      %v2609 = vld [vmem:[%s8 + $0xc30] sm:$0xff]
      %v2610 = vld [vmem:[%s8 + $0xc38] sm:$0xff]
      %v2611 = vld [vmem:[%s8 + $0xc40] sm:$0xff]
      %v2612 = vld [vmem:[%s8 + $0xc48] sm:$0xff]
      %v2613 = vld [vmem:[%s8 + $0xc50] sm:$0xff]
      %v2614 = vld [vmem:[%s8 + $0xc58] sm:$0xff]
      %v2615 = vld [vmem:[%s8 + $0xc60] sm:$0xff]
      %v2616 = vld [vmem:[%s8 + $0xc68] sm:$0xff]
      %v2617 = vld [vmem:[%s8 + $0xc70] sm:$0xff]
      %v2618 = vld [vmem:[%s8 + $0xc78] sm:$0xff]
      %v2619 = vld [vmem:[%s8 + $0xc80] sm:$0xff]
      %v2620 = vld [vmem:[%s8 + $0xc88] sm:$0xff]
      %v2621 = vld [vmem:[%s8 + $0xc90] sm:$0xff]
      %v2622 = vld [vmem:[%s8 + $0xc98] sm:$0xff]
      %v2623 = vld [vmem:[%s8 + $0xca0] sm:$0xff]
      %v2624 = vld [vmem:[%s8 + $0xca8] sm:$0xff]
      %v2625 = vld [vmem:[%s8 + $0xcb0] sm:$0xff]
      %v2626 = vld [vmem:[%s8 + $0xcb8] sm:$0xff]
      %v2627 = vld [vmem:[%s8 + $0xcc0] sm:$0xff]
      %v2628 = vld [vmem:[%s8 + $0xcc8] sm:$0xff]
      %v2629 = vld [vmem:[%s8 + $0xcd0] sm:$0xff]
      %v2630 = vld [vmem:[%s8 + $0xcd8] sm:$0xff]
      %v2631 = vld [vmem:[%s8 + $0xce0] sm:$0xff]
      %v2632 = vld [vmem:[%s8 + $0xce8] sm:$0xff]
      %v2633 = vld [vmem:[%s8 + $0xcf0] sm:$0xff]
      %v2634 = vld [vmem:[%s8 + $0xcf8] sm:$0xff]
      %v2635 = vld [vmem:[%s8 + $0xd00] sm:$0xff]
      %v2636 = vld [vmem:[%s8 + $0xd08] sm:$0xff]
      %v2637 = vld [vmem:[%s8 + $0xd10] sm:$0xff]
      %v2638 = vld [vmem:[%s8 + $0xd18] sm:$0xff]
      %v2639 = vld [vmem:[%s8 + $0xd20] sm:$0xff]
      %v2640 = vld [vmem:[%s8 + $0xd28] sm:$0xff]
      %v2641 = vld [vmem:[%s8 + $0xd30] sm:$0xff]
      %v2642 = vld [vmem:[%s8 + $0xd38] sm:$0xff]
      %v2643 = vld [vmem:[%s8 + $0xd40] sm:$0xff]
      %v2644 = vld [vmem:[%s8 + $0xd48] sm:$0xff]
      %v2645 = vld [vmem:[%s8 + $0xd50] sm:$0xff]
      %v2646 = vld [vmem:[%s8 + $0xd58] sm:$0xff]
      %v2647 = vld [vmem:[%s8 + $0xd60] sm:$0xff]
      %v2648 = vld [vmem:[%s8 + $0xd68] sm:$0xff]
      %v2649 = vld [vmem:[%s8 + $0xd70] sm:$0xff]
      %v2650 = vld [vmem:[%s8 + $0xd78] sm:$0xff]
      %v2651 = vld [vmem:[%s8 + $0xd80] sm:$0xff]
      %v2652 = vld [vmem:[%s8 + $0xd88] sm:$0xff]
      %v2653 = vld [vmem:[%s8 + $0xd90] sm:$0xff]
      %v2654 = vld [vmem:[%s8 + $0xd98] sm:$0xff]
      %v2655 = vld [vmem:[%s8 + $0xda0] sm:$0xff]
      %v2656 = vld [vmem:[%s8 + $0xda8] sm:$0xff]
      %v2657 = vld [vmem:[%s8 + $0xdb0] sm:$0xff]
      %v2658 = vld [vmem:[%s8 + $0xdb8] sm:$0xff]
      %v2659 = vld [vmem:[%s8 + $0xdc0] sm:$0xff]
      %v2660 = vld [vmem:[%s8 + $0xdc8] sm:$0xff]
      %v2661 = vld [vmem:[%s8 + $0xdd0] sm:$0xff]
      %v2662 = vld [vmem:[%s8 + $0xdd8] sm:$0xff]
      %v2663 = vld [vmem:[%s8 + $0xde0] sm:$0xff]
      %v2664 = vld [vmem:[%s8 + $0xde8] sm:$0xff]
      %v2665 = vld [vmem:[%s8 + $0xdf0] sm:$0xff]
      %v2666 = vld [vmem:[%s8 + $0xdf8] sm:$0xff]
      %v2667 = vld [vmem:[%s8 + $0xe00] sm:$0xff]
      %v2668 = vld [vmem:[%s8 + $0xe08] sm:$0xff]
      %v2669 = vld [vmem:[%s8 + $0xe10] sm:$0xff]
      %v2670 = vld [vmem:[%s8 + $0xe18] sm:$0xff]
      %v2671 = vld [vmem:[%s8 + $0xe20] sm:$0xff]
      %v2672 = vld [vmem:[%s8 + $0xe28] sm:$0xff]
      %v2673 = vld [vmem:[%s8 + $0xe30] sm:$0xff]
      %v2674 = vld [vmem:[%s8 + $0xe38] sm:$0xff]
      %v2675 = vld [vmem:[%s8 + $0xe40] sm:$0xff]
      %v2676 = vld [vmem:[%s8 + $0xe48] sm:$0xff]
      %v2677 = vld [vmem:[%s8 + $0xe50] sm:$0xff]
      %v2678 = vld [vmem:[%s8 + $0xe58] sm:$0xff]
      %v2679 = vld [vmem:[%s8 + $0xe60] sm:$0xff]
      %v2680 = vld [vmem:[%s8 + $0xe68] sm:$0xff]
      %v2681 = vld [vmem:[%s8 + $0xe70] sm:$0xff]
      %v2682 = vld [vmem:[%s8 + $0xe78] sm:$0xff]
      %v2683 = vld [vmem:[%s8 + $0xe80] sm:$0xff]
      %v2684 = vld [vmem:[%s8 + $0xe88] sm:$0xff]
      %v2685 = vld [vmem:[%s8 + $0xe90] sm:$0xff]
      %v2686 = vld [vmem:[%s8 + $0xe98] sm:$0xff]
      %v2687 = vld [vmem:[%s8 + $0xea0] sm:$0xff]
      %v2688 = vld [vmem:[%s8 + $0xea8] sm:$0xff]
      %v2689 = vld [vmem:[%s8 + $0xeb0] sm:$0xff]
      %v2690 = vld [vmem:[%s8 + $0xeb8] sm:$0xff]
      %v2691 = vld [vmem:[%s8 + $0xec0] sm:$0xff]
      %v2692 = vld [vmem:[%s8 + $0xec8] sm:$0xff]
      %v2693 = vld [vmem:[%s8 + $0xed0] sm:$0xff]
      %v2694 = vld [vmem:[%s8 + $0xed8] sm:$0xff]
      %v2695 = vld [vmem:[%s8 + $0xee0] sm:$0xff]
      %v2696 = vld [vmem:[%s8 + $0xee8] sm:$0xff]
      %v2697 = vld [vmem:[%s8 + $0xef0] sm:$0xff]
      %v2698 = vld [vmem:[%s8 + $0xef8] sm:$0xff]
      %v2699 = vld [vmem:[%s8 + $0xf00] sm:$0xff]
      %v2700 = vld [vmem:[%s8 + $0xf08] sm:$0xff]
      %v2701 = vld [vmem:[%s8 + $0xf10] sm:$0xff]
      %v2702 = vld [vmem:[%s8 + $0xf18] sm:$0xff]
      %v2703 = vld [vmem:[%s8 + $0xf20] sm:$0xff]
      %v2704 = vld [vmem:[%s8 + $0xf28] sm:$0xff]
      %v2705 = vld [vmem:[%s8 + $0xf30] sm:$0xff]
      %v2706 = vld [vmem:[%s8 + $0xf38] sm:$0xff]
      %v2707 = vld [vmem:[%s8 + $0xf40] sm:$0xff]
      %v2708 = vld [vmem:[%s8 + $0xf48] sm:$0xff]
      %v2709 = vld [vmem:[%s8 + $0xf50] sm:$0xff]
      %v2710 = vld [vmem:[%s8 + $0xf58] sm:$0xff]
      %v2711 = vld [vmem:[%s8 + $0xf60] sm:$0xff]
      %v2712 = vld [vmem:[%s8 + $0xf68] sm:$0xff]
      %v2713 = vld [vmem:[%s8 + $0xf70] sm:$0xff]
      %v2714 = vld [vmem:[%s8 + $0xf78] sm:$0xff]
      %v2715 = vld [vmem:[%s8 + $0xf80] sm:$0xff]
      %v2716 = vld [vmem:[%s8 + $0xf88] sm:$0xff]
      %v2717 = vld [vmem:[%s8 + $0xf90] sm:$0xff]
      %v2718 = vld [vmem:[%s8 + $0xf98] sm:$0xff]
      %v2719 = vld [vmem:[%s8 + $0xfa0] sm:$0xff]
      %v2720 = vld [vmem:[%s8 + $0xfa8] sm:$0xff]
      %v2721 = vld [vmem:[%s8 + $0xfb0] sm:$0xff]
      %v2722 = vld [vmem:[%s8 + $0xfb8] sm:$0xff]
      %v2723 = vld [vmem:[%s8 + $0xfc0] sm:$0xff]
      %v2724 = vld [vmem:[%s8 + $0xfc8] sm:$0xff]
      %v2725 = vld [vmem:[%s8 + $0xfd0] sm:$0xff]
      %v2726 = vld [vmem:[%s8 + $0xfd8] sm:$0xff]
      %v2727 = vld [vmem:[%s8 + $0xfe0] sm:$0xff]
      %v2728 = vld [vmem:[%s8 + $0xfe8] sm:$0xff]
      %v2729 = vld [vmem:[%s8 + $0xff0] sm:$0xff]
      %v2730 = vld [vmem:[%s8 + $0xff8] sm:$0xff]
      %v2731 = vld [vmem:[%s8 + $0x1000] sm:$0xff]
      %v2732 = vld [vmem:[%s8 + $0x1008] sm:$0xff]
      %v2733 = vld [vmem:[%s8 + $0x1010] sm:$0xff]
      %v2734 = vld [vmem:[%s8 + $0x1018] sm:$0xff]
      %v2735 = vld [vmem:[%s8 + $0x1020] sm:$0xff]
      %v2736 = vld [vmem:[%s8 + $0x1028] sm:$0xff]
      %v2737 = vld [vmem:[%s8 + $0x1030] sm:$0xff]
      %v2738 = vld [vmem:[%s8 + $0x1038] sm:$0xff]
      %v2739 = vld [vmem:[%s8 + $0x1040] sm:$0xff]
      %v2740 = vld [vmem:[%s8 + $0x1048] sm:$0xff]
      %v2741 = vld [vmem:[%s8 + $0x1050] sm:$0xff]
      %v2742 = vld [vmem:[%s8 + $0x1058] sm:$0xff]
      %v2743 = vld [vmem:[%s8 + $0x1060] sm:$0xff]
      %v2744 = vld [vmem:[%s8 + $0x1068] sm:$0xff]
      %v2745 = vld [vmem:[%s8 + $0x1070] sm:$0xff]
      %v2746 = vld [vmem:[%s8 + $0x1078] sm:$0xff]
      %v2747 = vld [vmem:[#allocation3] sm:$0x1]
      %2749 = vset.pattern.permute.xlu0 0
      %2750 = vperm.xlu0 %2749, %v2747
      %v2751 = vpop.permute.xlu0 %2750
      %v2753 = vlaneseq
      %v2754 = vshrl.u32 %v2753, 7
      %v2755 = vsub.s32 0, %v2754
      %v2756 = vrot.slane %v2751, %v2755
      %2757 = vmatprep.subr.mxu0 %v2220
      %2758 = vmatpush1.msra.mxu0 %v2219
      %2759 = vmatprep.subr.mxu0 %v2223
      %2760 = vmatpush1.msra.mxu0 %v2222
      %2761 = vmatprep.subr.mxu0 %v2226
      %2762 = vmatpush1.msra.mxu0 %v2225
      %2763 = vmatprep.subr.mxu0 %v2229
      %2764 = vmatpush1.msra.mxu0 %v2228
      %2765 = vmatprep.subr.mxu0 %v2232
      %2766 = vmatpush1.msra.mxu0 %v2231
      %2767 = vmatprep.subr.mxu0 %v2235
      %2768 = vmatpush1.msra.mxu0 %v2234
      %2769 = vmatprep.subr.mxu0 %v2238
      %2770 = vmatpush1.msra.mxu0 %v2237
      %2771 = vmatprep.subr.mxu0 %v2241
      %2772 = vmatpush1.msra.mxu0 %v2240
      %2773 = vmatprep.subr.mxu0 %v2244
      %2774 = vmatpush1.msra.mxu0 %v2243
      %2775 = vmatprep.subr.mxu0 %v2247
      %2776 = vmatpush1.msra.mxu0 %v2246
      %2777 = vmatprep.subr.mxu0 %v2250
      %2778 = vmatpush1.msra.mxu0 %v2249
      %2779 = vmatprep.subr.mxu0 %v2253
      %2780 = vmatpush1.msra.mxu0 %v2252
      %2781 = vmatprep.subr.mxu0 %v2256
      %2782 = vmatpush1.msra.mxu0 %v2255
      %2783 = vmatprep.subr.mxu0 %v2259
      %2784 = vmatpush1.msra.mxu0 %v2258
      %2785 = vmatprep.subr.mxu0 %v2262
      %2786 = vmatpush1.msra.mxu0 %v2261
      %2787 = vmatprep.subr.mxu0 %v2265
      %2788 = vmatpush1.msra.mxu0 %v2264
      %2789 = vmatprep.subr.mxu0 %v2268
      %2790 = vmatpush1.msra.mxu0 %v2267
      %2791 = vmatprep.subr.mxu0 %v2271
      %2792 = vmatpush1.msra.mxu0 %v2270
      %2793 = vmatprep.subr.mxu0 %v2274
      %2794 = vmatpush1.msra.mxu0 %v2273
      %2795 = vmatprep.subr.mxu0 %v2277
      %2796 = vmatpush1.msra.mxu0 %v2276
      %2797 = vmatprep.subr.mxu0 %v2280
      %2798 = vmatpush1.msra.mxu0 %v2279
      %2799 = vmatprep.subr.mxu0 %v2283
      %2800 = vmatpush1.msra.mxu0 %v2282
      %2801 = vmatprep.subr.mxu0 %v2286
      %2802 = vmatpush1.msra.mxu0 %v2285
      %2803 = vmatprep.subr.mxu0 %v2289
      %2804 = vmatpush1.msra.mxu0 %v2288
      %2805 = vmatprep.subr.mxu0 %v2292
      %2806 = vmatpush1.msra.mxu0 %v2291
      %2807 = vmatprep.subr.mxu0 %v2295
      %2808 = vmatpush1.msra.mxu0 %v2294
      %2809 = vmatprep.subr.mxu0 %v2298
      %2810 = vmatpush1.msra.mxu0 %v2297
      %2811 = vmatprep.subr.mxu0 %v2301
      %2812 = vmatpush1.msra.mxu0 %v2300
      %2813 = vmatprep.subr.mxu0 %v2304
      %2814 = vmatpush1.msra.mxu0 %v2303
      %2815 = vmatprep.subr.mxu0 %v2307
      %2816 = vmatpush1.msra.mxu0 %v2306
      %2817 = vmatprep.subr.mxu0 %v2310
      %2818 = vmatpush1.msra.mxu0 %v2309
      %2819 = vmatprep.subr.mxu0 %v2313
      %2820 = vmatpush1.msra.mxu0 %v2312
      %2821 = vmatprep.mubr.f32.mxu0 %v2164
      %2822 = vmatmul.mubr.f32.gmra.mrb[0].mxu0 %v2158
      %v2823 = vpop.f32.mrb[0].mxu0
      %v2824 = vadd.f32 %v2756, %v2823
      %v2825 = vpop.f32.mrb[0].mxu0
      %v2826 = vadd.f32 %v2756, %v2825
      %2827 = vdwg.mxu0
      %2828 = vmatprep.subr.mxu0 %v2316
      %2829 = vmatpush1.msra.mxu0 %v2315
      %2830 = vmatprep.subr.mxu0 %v2319
      %2831 = vmatpush1.msra.mxu0 %v2318
      %2832 = vmatprep.subr.mxu0 %v2322
      %2833 = vmatpush1.msra.mxu0 %v2321
      %2834 = vmatprep.subr.mxu0 %v2325
      %2835 = vmatpush1.msra.mxu0 %v2324
      %2836 = vmatprep.subr.mxu0 %v2328
      %2837 = vmatpush1.msra.mxu0 %v2327
      %2838 = vmatprep.subr.mxu0 %v2331
      %2839 = vmatpush1.msra.mxu0 %v2330
      %2840 = vmatprep.subr.mxu0 %v2334
      %2841 = vmatpush1.msra.mxu0 %v2333
      %2842 = vmatprep.subr.mxu0 %v2337
      %2843 = vmatpush1.msra.mxu0 %v2336
      %2844 = vmatprep.subr.mxu0 %v2340
      %2845 = vmatpush1.msra.mxu0 %v2339
      %2846 = vmatprep.subr.mxu0 %v2343
      %2847 = vmatpush1.msra.mxu0 %v2342
      %2848 = vmatprep.subr.mxu0 %v2346
      %2849 = vmatpush1.msra.mxu0 %v2345
      %2850 = vmatprep.subr.mxu0 %v2349
      %2851 = vmatpush1.msra.mxu0 %v2348
      %2852 = vmatprep.subr.mxu0 %v2352
      %2853 = vmatpush1.msra.mxu0 %v2351
      %2854 = vmatprep.subr.mxu0 %v2355
      %2855 = vmatpush1.msra.mxu0 %v2354
      %2856 = vmatprep.subr.mxu0 %v2358
      %2857 = vmatpush1.msra.mxu0 %v2357
      %2858 = vmatprep.subr.mxu0 %v2361
      %2859 = vmatpush1.msra.mxu0 %v2360
      %2860 = vmatprep.subr.mxu0 %v2364
      %2861 = vmatpush1.msra.mxu0 %v2363
      %2862 = vmatprep.subr.mxu0 %v2367
      %2863 = vmatpush1.msra.mxu0 %v2366
      %2864 = vmatprep.subr.mxu0 %v2370
      %2865 = vmatpush1.msra.mxu0 %v2369
      %2866 = vmatprep.subr.mxu0 %v2373
      %2867 = vmatpush1.msra.mxu0 %v2372
      %2868 = vmatprep.subr.mxu0 %v2376
      %2869 = vmatpush1.msra.mxu0 %v2375
      %2870 = vmatprep.subr.mxu0 %v2379
      %2871 = vmatpush1.msra.mxu0 %v2378
      %2872 = vmatprep.subr.mxu0 %v2382
      %2873 = vmatpush1.msra.mxu0 %v2381
      %2874 = vmatprep.subr.mxu0 %v2385
      %2875 = vmatpush1.msra.mxu0 %v2384
      %2876 = vmatprep.subr.mxu0 %v2388
      %2877 = vmatpush1.msra.mxu0 %v2387
      %2878 = vmatprep.subr.mxu0 %v2391
      %2879 = vmatpush1.msra.mxu0 %v2390
      %2880 = vmatprep.subr.mxu0 %v2394
      %2881 = vmatpush1.msra.mxu0 %v2393
      %2882 = vmatprep.subr.mxu0 %v2397
      %2883 = vmatpush1.msra.mxu0 %v2396
      %2884 = vmatprep.subr.mxu0 %v2400
      %2885 = vmatpush1.msra.mxu0 %v2399
      %2886 = vmatprep.subr.mxu0 %v2403
      %2887 = vmatpush1.msra.mxu0 %v2402
      %2888 = vmatprep.subr.mxu0 %v2406
      %2889 = vmatpush1.msra.mxu0 %v2405
      %2890 = vmatprep.subr.mxu0 %v2409
      %2891 = vmatpush1.msra.mxu0 %v2408
      %2892 = vmatprep.mubr.f32.mxu0 %v2176
      %2893 = vmatmul.mubr.f32.gmra.mrb[0].mxu0 %v2170
      %v2894 = vpop.f32.mrb[0].mxu0
      %v2895 = vadd.f32 %v2824, %v2894
      %v2896 = vpop.f32.mrb[0].mxu0
      %v2897 = vadd.f32 %v2826, %v2896
      %2898 = vdwg.mxu0
      %2899 = vmatprep.subr.mxu0 %v2412
      %2900 = vmatpush1.msra.mxu0 %v2411
      %2901 = vmatprep.subr.mxu0 %v2415
      %2902 = vmatpush1.msra.mxu0 %v2414
      %2903 = vmatprep.subr.mxu0 %v2418
      %2904 = vmatpush1.msra.mxu0 %v2417
      %2905 = vmatprep.subr.mxu0 %v2421
      %2906 = vmatpush1.msra.mxu0 %v2420
      %2907 = vmatprep.subr.mxu0 %v2424
      %2908 = vmatpush1.msra.mxu0 %v2423
      %2909 = vmatprep.subr.mxu0 %v2427
      %2910 = vmatpush1.msra.mxu0 %v2426
      %2911 = vmatprep.subr.mxu0 %v2430
      %2912 = vmatpush1.msra.mxu0 %v2429
      %2913 = vmatprep.subr.mxu0 %v2433
      %2914 = vmatpush1.msra.mxu0 %v2432
      %2915 = vmatprep.subr.mxu0 %v2436
      %2916 = vmatpush1.msra.mxu0 %v2435
      %2917 = vmatprep.subr.mxu0 %v2439
      %2918 = vmatpush1.msra.mxu0 %v2438
      %2919 = vmatprep.subr.mxu0 %v2442
      %2920 = vmatpush1.msra.mxu0 %v2441
      %2921 = vmatprep.subr.mxu0 %v2445
      %2922 = vmatpush1.msra.mxu0 %v2444
      %2923 = vmatprep.subr.mxu0 %v2448
      %2924 = vmatpush1.msra.mxu0 %v2447
      %2925 = vmatprep.subr.mxu0 %v2451
      %2926 = vmatpush1.msra.mxu0 %v2450
      %2927 = vmatprep.subr.mxu0 %v2454
      %2928 = vmatpush1.msra.mxu0 %v2453
      %2929 = vmatprep.subr.mxu0 %v2457
      %2930 = vmatpush1.msra.mxu0 %v2456
      %2931 = vmatprep.subr.mxu0 %v2460
      %2932 = vmatpush1.msra.mxu0 %v2459
      %2933 = vmatprep.subr.mxu0 %v2463
      %2934 = vmatpush1.msra.mxu0 %v2462
      %2935 = vmatprep.subr.mxu0 %v2466
      %2936 = vmatpush1.msra.mxu0 %v2465
      %2937 = vmatprep.subr.mxu0 %v2469
      %2938 = vmatpush1.msra.mxu0 %v2468
      %2939 = vmatprep.subr.mxu0 %v2472
      %2940 = vmatpush1.msra.mxu0 %v2471
      %2941 = vmatprep.subr.mxu0 %v2475
      %2942 = vmatpush1.msra.mxu0 %v2474
      %2943 = vmatprep.subr.mxu0 %v2478
      %2944 = vmatpush1.msra.mxu0 %v2477
      %2945 = vmatprep.subr.mxu0 %v2481
      %2946 = vmatpush1.msra.mxu0 %v2480
      %2947 = vmatprep.subr.mxu0 %v2484
      %2948 = vmatpush1.msra.mxu0 %v2483
      %2949 = vmatprep.subr.mxu0 %v2487
      %2950 = vmatpush1.msra.mxu0 %v2486
      %2951 = vmatprep.subr.mxu0 %v2490
      %2952 = vmatpush1.msra.mxu0 %v2489
      %2953 = vmatprep.subr.mxu0 %v2493
      %2954 = vmatpush1.msra.mxu0 %v2492
      %2955 = vmatprep.subr.mxu0 %v2496
      %2956 = vmatpush1.msra.mxu0 %v2495
      %2957 = vmatprep.subr.mxu0 %v2499
      %2958 = vmatpush1.msra.mxu0 %v2498
      %2959 = vmatprep.subr.mxu0 %v2502
      %2960 = vmatpush1.msra.mxu0 %v2501
      %2961 = vmatprep.subr.mxu0 %v2505
      %2962 = vmatpush1.msra.mxu0 %v2504
      %2963 = vmatprep.mubr.f32.mxu0 %v2188
      %2964 = vmatmul.mubr.f32.gmra.mrb[0].mxu0 %v2182
      %v2965 = vpop.f32.mrb[0].mxu0
      %v2966 = vadd.f32 %v2895, %v2965
      %v2967 = vpop.f32.mrb[0].mxu0
      %v2968 = vadd.f32 %v2897, %v2967
      %2969 = vdwg.mxu0
      %2970 = vmatprep.subr.mxu0 %v2508
      %2971 = vmatpush1.msra.mxu0 %v2507
      %2972 = vmatprep.subr.mxu0 %v2511
      %2973 = vmatpush1.msra.mxu0 %v2510
      %2974 = vmatprep.subr.mxu0 %v2514
      %2975 = vmatpush1.msra.mxu0 %v2513
      %2976 = vmatprep.subr.mxu0 %v2517
      %2977 = vmatpush1.msra.mxu0 %v2516
      %2978 = vmatprep.subr.mxu0 %v2520
      %2979 = vmatpush1.msra.mxu0 %v2519
      %2980 = vmatprep.subr.mxu0 %v2523
      %2981 = vmatpush1.msra.mxu0 %v2522
      %2982 = vmatprep.subr.mxu0 %v2526
      %2983 = vmatpush1.msra.mxu0 %v2525
      %2984 = vmatprep.subr.mxu0 %v2529
      %2985 = vmatpush1.msra.mxu0 %v2528
      %2986 = vmatprep.subr.mxu0 %v2532
      %2987 = vmatpush1.msra.mxu0 %v2531
      %2988 = vmatprep.subr.mxu0 %v2535
      %2989 = vmatpush1.msra.mxu0 %v2534
      %2990 = vmatprep.subr.mxu0 %v2538
      %2991 = vmatpush1.msra.mxu0 %v2537
      %2992 = vmatprep.subr.mxu0 %v2541
      %2993 = vmatpush1.msra.mxu0 %v2540
      %2994 = vmatprep.subr.mxu0 %v2544
      %2995 = vmatpush1.msra.mxu0 %v2543
      %2996 = vmatprep.subr.mxu0 %v2547
      %2997 = vmatpush1.msra.mxu0 %v2546
      %2998 = vmatprep.subr.mxu0 %v2550
      %2999 = vmatpush1.msra.mxu0 %v2549
      %3000 = vmatprep.subr.mxu0 %v2553
      %3001 = vmatpush1.msra.mxu0 %v2552
      %3002 = vmatprep.subr.mxu0 %v2556
      %3003 = vmatpush1.msra.mxu0 %v2555
      %3004 = vmatprep.subr.mxu0 %v2559
      %3005 = vmatpush1.msra.mxu0 %v2558
      %3006 = vmatprep.subr.mxu0 %v2562
      %3007 = vmatpush1.msra.mxu0 %v2561
      %3008 = vmatprep.subr.mxu0 %v2565
      %3009 = vmatpush1.msra.mxu0 %v2564
      %3010 = vmatprep.subr.mxu0 %v2568
      %3011 = vmatpush1.msra.mxu0 %v2567
      %3012 = vmatprep.subr.mxu0 %v2571
      %3013 = vmatpush1.msra.mxu0 %v2570
      %3014 = vmatprep.subr.mxu0 %v2574
      %3015 = vmatpush1.msra.mxu0 %v2573
      %3016 = vmatprep.subr.mxu0 %v2577
      %3017 = vmatpush1.msra.mxu0 %v2576
      %3018 = vmatprep.subr.mxu0 %v2580
      %3019 = vmatpush1.msra.mxu0 %v2579
      %3020 = vmatprep.subr.mxu0 %v2583
      %3021 = vmatpush1.msra.mxu0 %v2582
      %3022 = vmatprep.subr.mxu0 %v2586
      %3023 = vmatpush1.msra.mxu0 %v2585
      %3024 = vmatprep.subr.mxu0 %v2589
      %3025 = vmatpush1.msra.mxu0 %v2588
      %3026 = vmatprep.subr.mxu0 %v2592
      %3027 = vmatpush1.msra.mxu0 %v2591
      %3028 = vmatprep.subr.mxu0 %v2595
      %3029 = vmatpush1.msra.mxu0 %v2594
      %3030 = vmatprep.subr.mxu0 %v2598
      %3031 = vmatpush1.msra.mxu0 %v2597
      %3032 = vmatprep.subr.mxu0 %v2601
      %3033 = vmatpush1.msra.mxu0 %v2600
      %3034 = vmatprep.mubr.f32.mxu0 %v2200
      %3035 = vmatmul.mubr.f32.gmra.mrb[0].mxu0 %v2194
      %v3036 = vpop.f32.mrb[0].mxu0
      %v3037 = vadd.f32 %v2966, %v3036
      %v3038 = vpop.f32.mrb[0].mxu0
      %v3039 = vadd.f32 %v2968, %v3038
      %3040 = vdwg.mxu0
      %3041 = vmatprep.subr.mxu0 %v2604
      %3042 = vmatpush1.msra.mxu0 %v2603
      %3043 = vmatprep.subr.mxu0 %v2607
      %3044 = vmatpush1.msra.mxu0 %v2606
      %3045 = vmatprep.subr.mxu0 %v2610
      %3046 = vmatpush1.msra.mxu0 %v2609
      %3047 = vmatprep.subr.mxu0 %v2613
      %3048 = vmatpush1.msra.mxu0 %v2612
      %3049 = vmatprep.subr.mxu0 %v2616
      %3050 = vmatpush1.msra.mxu0 %v2615
      %3051 = vmatprep.subr.mxu0 %v2619
      %3052 = vmatpush1.msra.mxu0 %v2618
      %3053 = vmatprep.subr.mxu0 %v2622
      %3054 = vmatpush1.msra.mxu0 %v2621
      %3055 = vmatprep.subr.mxu0 %v2625
      %3056 = vmatpush1.msra.mxu0 %v2624
      %3057 = vmatprep.subr.mxu0 %v2628
      %3058 = vmatpush1.msra.mxu0 %v2627
      %3059 = vmatprep.subr.mxu0 %v2631
      %3060 = vmatpush1.msra.mxu0 %v2630
      %3061 = vmatprep.subr.mxu0 %v2634
      %3062 = vmatpush1.msra.mxu0 %v2633
      %3063 = vmatprep.subr.mxu0 %v2637
      %3064 = vmatpush1.msra.mxu0 %v2636
      %3065 = vmatprep.subr.mxu0 %v2640
      %3066 = vmatpush1.msra.mxu0 %v2639
      %3067 = vmatprep.subr.mxu0 %v2643
      %3068 = vmatpush1.msra.mxu0 %v2642
      %3069 = vmatprep.subr.mxu0 %v2646
      %3070 = vmatpush1.msra.mxu0 %v2645
      %3071 = vmatprep.subr.mxu0 %v2649
      %3072 = vmatpush1.msra.mxu0 %v2648
      %3073 = vmatprep.subr.mxu0 %v2652
      %3074 = vmatpush1.msra.mxu0 %v2651
      %3075 = vmatprep.subr.mxu0 %v2655
      %3076 = vmatpush1.msra.mxu0 %v2654
      %3077 = vmatprep.subr.mxu0 %v2658
      %3078 = vmatpush1.msra.mxu0 %v2657
      %3079 = vmatprep.subr.mxu0 %v2661
      %3080 = vmatpush1.msra.mxu0 %v2660
      %3081 = vmatprep.subr.mxu0 %v2664
      %3082 = vmatpush1.msra.mxu0 %v2663
      %3083 = vmatprep.subr.mxu0 %v2667
      %3084 = vmatpush1.msra.mxu0 %v2666
      %3085 = vmatprep.subr.mxu0 %v2670
      %3086 = vmatpush1.msra.mxu0 %v2669
      %3087 = vmatprep.subr.mxu0 %v2673
      %3088 = vmatpush1.msra.mxu0 %v2672
      %3089 = vmatprep.subr.mxu0 %v2676
      %3090 = vmatpush1.msra.mxu0 %v2675
      %3091 = vmatprep.subr.mxu0 %v2679
      %3092 = vmatpush1.msra.mxu0 %v2678
      %3093 = vmatprep.subr.mxu0 %v2682
      %3094 = vmatpush1.msra.mxu0 %v2681
      %3095 = vmatprep.subr.mxu0 %v2685
      %3096 = vmatpush1.msra.mxu0 %v2684
      %3097 = vmatprep.subr.mxu0 %v2688
      %3098 = vmatpush1.msra.mxu0 %v2687
      %3099 = vmatprep.subr.mxu0 %v2691
      %3100 = vmatpush1.msra.mxu0 %v2690
      %3101 = vmatprep.subr.mxu0 %v2694
      %3102 = vmatpush1.msra.mxu0 %v2693
      %3103 = vmatprep.subr.mxu0 %v2697
      %3104 = vmatpush1.msra.mxu0 %v2696
      %3105 = vmatprep.mubr.f32.mxu0 %v2212
      %3106 = vmatmul.mubr.f32.gmra.mrb[0].mxu0 %v2206
      %v3107 = vpop.f32.mrb[0].mxu0
      %v3108 = vadd.f32 %v3037, %v3107
      %v3109 = vpop.f32.mrb[0].mxu0
      %v3110 = vadd.f32 %v3039, %v3109
      %3111 = vdwg.mxu0
      %3112 = vmatprep.subr.mxu0 %v2700
      %3113 = vmatpush1.msra.mxu0 %v2699
      %3114 = vmatprep.subr.mxu0 %v2703
      %3115 = vmatpush1.msra.mxu0 %v2702
      %3116 = vmatprep.subr.mxu0 %v2706
      %3117 = vmatpush1.msra.mxu0 %v2705
      %3118 = vmatprep.subr.mxu0 %v2709
      %3119 = vmatpush1.msra.mxu0 %v2708
      %3120 = vmatprep.subr.mxu0 %v2712
      %3121 = vmatpush1.msra.mxu0 %v2711
      %3122 = vmatprep.subr.mxu0 %v2715
      %3123 = vmatpush1.msra.mxu0 %v2714
      %3124 = vmatprep.subr.mxu0 %v2718
      %3125 = vmatpush1.msra.mxu0 %v2717
      %3126 = vmatprep.subr.mxu0 %v2721
      %3127 = vmatpush1.msra.mxu0 %v2720
      %3128 = vmatprep.subr.mxu0 %v2724
      %3129 = vmatpush1.msra.mxu0 %v2723
      %3130 = vmatprep.subr.mxu0 %v2727
      %3131 = vmatpush1.msra.mxu0 %v2726
      %3132 = vmatprep.subr.mxu0 %v2730
      %3133 = vmatpush1.msra.mxu0 %v2729
      %3134 = vmatprep.subr.mxu0 %v2733
      %3135 = vmatpush1.msra.mxu0 %v2732
      %3136 = vmatprep.subr.mxu0 %v2736
      %3137 = vmatpush1.msra.mxu0 %v2735
      %3138 = vmatprep.subr.mxu0 %v2739
      %3139 = vmatpush1.msra.mxu0 %v2738
      %3140 = vmatprep.subr.mxu0 %v2742
      %3141 = vmatpush1.msra.mxu0 %v2741
      %3142 = vmatprep.subr.mxu0 %v2745
      %3143 = vmatpush1.msra.mxu0 %v2744
      %3144 = vmatprep.subr.mxu0 0.0
      %3145 = vmatpush1.msra.mxu0 0.0
      %3146 = vmatprep.subr.mxu0 0.0
      %3147 = vmatpush1.msra.mxu0 0.0
      %3148 = vmatprep.subr.mxu0 0.0
      %3149 = vmatpush1.msra.mxu0 0.0
      %3150 = vmatprep.subr.mxu0 0.0
      %3151 = vmatpush1.msra.mxu0 0.0
      %3152 = vmatprep.subr.mxu0 0.0
      %3153 = vmatpush1.msra.mxu0 0.0
      %3154 = vmatprep.subr.mxu0 0.0
      %3155 = vmatpush1.msra.mxu0 0.0
      %3156 = vmatprep.subr.mxu0 0.0
      %3157 = vmatpush1.msra.mxu0 0.0
      %3158 = vmatprep.subr.mxu0 0.0
      %3159 = vmatpush1.msra.mxu0 0.0
      %3160 = vmatprep.subr.mxu0 0.0
      %3161 = vmatpush1.msra.mxu0 0.0
      %3162 = vmatprep.subr.mxu0 0.0
      %3163 = vmatpush1.msra.mxu0 0.0
      %3164 = vmatprep.subr.mxu0 0.0
      %3165 = vmatpush1.msra.mxu0 0.0
      %3166 = vmatprep.subr.mxu0 0.0
      %3167 = vmatpush1.msra.mxu0 0.0
      %3168 = vmatprep.subr.mxu0 0.0
      %3169 = vmatpush1.msra.mxu0 0.0
      %3170 = vmatprep.subr.mxu0 0.0
      %3171 = vmatpush1.msra.mxu0 0.0
      %3172 = vmatprep.subr.mxu0 0.0
      %3173 = vmatpush1.msra.mxu0 0.0
      %3174 = vmatprep.subr.mxu0 0.0
      %3175 = vmatpush1.msra.mxu0 0.0
      %3176 = vmatprep.mubr.f32.mxu0 0.0
      %3177 = vmatmul.mubr.f32.gmra.mrb[0].mxu0 %v2218
      %v3178 = vpop.f32.mrb[0].mxu0
      %v3179 = vadd.f32 %v3108, %v3178
      %v3180 = vpop.f32.mrb[0].mxu0
      %v3181 = vadd.f32 %v3110, %v3180
      %3182 = vdwg.mxu0
      %3183 = vmatprep.subr.mxu0 0.0
      %3184 = vmatpush1.msra.mxu0 %v2221
      %3185 = vmatprep.subr.mxu0 0.0
      %3186 = vmatpush1.msra.mxu0 %v2224
      %3187 = vmatprep.subr.mxu0 0.0
      %3188 = vmatpush1.msra.mxu0 %v2227
      %3189 = vmatprep.subr.mxu0 0.0
      %3190 = vmatpush1.msra.mxu0 %v2230
      %3191 = vmatprep.subr.mxu0 0.0
      %3192 = vmatpush1.msra.mxu0 %v2233
      %3193 = vmatprep.subr.mxu0 0.0
      %3194 = vmatpush1.msra.mxu0 %v2236
      %3195 = vmatprep.subr.mxu0 0.0
      %3196 = vmatpush1.msra.mxu0 %v2239
      %3197 = vmatprep.subr.mxu0 0.0
      %3198 = vmatpush1.msra.mxu0 %v2242
      %3199 = vmatprep.subr.mxu0 0.0
      %3200 = vmatpush1.msra.mxu0 %v2245
      %3201 = vmatprep.subr.mxu0 0.0
      %3202 = vmatpush1.msra.mxu0 %v2248
      %3203 = vmatprep.subr.mxu0 0.0
      %3204 = vmatpush1.msra.mxu0 %v2251
      %3205 = vmatprep.subr.mxu0 0.0
      %3206 = vmatpush1.msra.mxu0 %v2254
      %3207 = vmatprep.subr.mxu0 0.0
      %3208 = vmatpush1.msra.mxu0 %v2257
      %3209 = vmatprep.subr.mxu0 0.0
      %3210 = vmatpush1.msra.mxu0 %v2260
      %3211 = vmatprep.subr.mxu0 0.0
      %3212 = vmatpush1.msra.mxu0 %v2263
      %3213 = vmatprep.subr.mxu0 0.0
      %3214 = vmatpush1.msra.mxu0 %v2266
      %3215 = vmatprep.subr.mxu0 0.0
      %3216 = vmatpush1.msra.mxu0 %v2269
      %3217 = vmatprep.subr.mxu0 0.0
      %3218 = vmatpush1.msra.mxu0 %v2272
      %3219 = vmatprep.subr.mxu0 0.0
      %3220 = vmatpush1.msra.mxu0 %v2275
      %3221 = vmatprep.subr.mxu0 0.0
      %3222 = vmatpush1.msra.mxu0 %v2278
      %3223 = vmatprep.subr.mxu0 0.0
      %3224 = vmatpush1.msra.mxu0 %v2281
      %3225 = vmatprep.subr.mxu0 0.0
      %3226 = vmatpush1.msra.mxu0 %v2284
      %3227 = vmatprep.subr.mxu0 0.0
      %3228 = vmatpush1.msra.mxu0 %v2287
      %3229 = vmatprep.subr.mxu0 0.0
      %3230 = vmatpush1.msra.mxu0 %v2290
      %3231 = vmatprep.subr.mxu0 0.0
      %3232 = vmatpush1.msra.mxu0 %v2293
      %3233 = vmatprep.subr.mxu0 0.0
      %3234 = vmatpush1.msra.mxu0 %v2296
      %3235 = vmatprep.subr.mxu0 0.0
      %3236 = vmatpush1.msra.mxu0 %v2299
      %3237 = vmatprep.subr.mxu0 0.0
      %3238 = vmatpush1.msra.mxu0 %v2302
      %3239 = vmatprep.subr.mxu0 0.0
      %3240 = vmatpush1.msra.mxu0 %v2305
      %3241 = vmatprep.subr.mxu0 0.0
      %3242 = vmatpush1.msra.mxu0 %v2308
      %3243 = vmatprep.subr.mxu0 0.0
      %3244 = vmatpush1.msra.mxu0 %v2311
      %3245 = vmatprep.subr.mxu0 0.0
      %3246 = vmatpush1.msra.mxu0 %v2314
      %3247 = vmatprep.mubr.f32.mxu0 %v2164
      %3248 = vmatmul.mubr.f32.gmra.mrb[0].mxu0 %v2158
      %v3249 = vpop.f32.mrb[0].mxu0
      %v3250 = vadd.f32 %v2756, %v3249
      %v3251 = vpop.f32.mrb[0].mxu0
      %3252 = vdwg.mxu0
      %3253 = vmatprep.subr.mxu0 0.0
      %3254 = vmatpush1.msra.mxu0 %v2317
      %3255 = vmatprep.subr.mxu0 0.0
      %3256 = vmatpush1.msra.mxu0 %v2320
      %3257 = vmatprep.subr.mxu0 0.0
      %3258 = vmatpush1.msra.mxu0 %v2323
      %3259 = vmatprep.subr.mxu0 0.0
      %3260 = vmatpush1.msra.mxu0 %v2326
      %3261 = vmatprep.subr.mxu0 0.0
      %3262 = vmatpush1.msra.mxu0 %v2329
      %3263 = vmatprep.subr.mxu0 0.0
      %3264 = vmatpush1.msra.mxu0 %v2332
      %3265 = vmatprep.subr.mxu0 0.0
      %3266 = vmatpush1.msra.mxu0 %v2335
      %3267 = vmatprep.subr.mxu0 0.0
      %3268 = vmatpush1.msra.mxu0 %v2338
      %3269 = vmatprep.subr.mxu0 0.0
      %3270 = vmatpush1.msra.mxu0 %v2341
      %3271 = vmatprep.subr.mxu0 0.0
      %3272 = vmatpush1.msra.mxu0 %v2344
      %3273 = vmatprep.subr.mxu0 0.0
      %3274 = vmatpush1.msra.mxu0 %v2347
      %3275 = vmatprep.subr.mxu0 0.0
      %3276 = vmatpush1.msra.mxu0 %v2350
      %3277 = vmatprep.subr.mxu0 0.0
      %3278 = vmatpush1.msra.mxu0 %v2353
      %3279 = vmatprep.subr.mxu0 0.0
      %3280 = vmatpush1.msra.mxu0 %v2356
      %3281 = vmatprep.subr.mxu0 0.0
      %3282 = vmatpush1.msra.mxu0 %v2359
      %3283 = vmatprep.subr.mxu0 0.0
      %3284 = vmatpush1.msra.mxu0 %v2362
      %3285 = vmatprep.subr.mxu0 0.0
      %3286 = vmatpush1.msra.mxu0 %v2365
      %3287 = vmatprep.subr.mxu0 0.0
      %3288 = vmatpush1.msra.mxu0 %v2368
      %3289 = vmatprep.subr.mxu0 0.0
      %3290 = vmatpush1.msra.mxu0 %v2371
      %3291 = vmatprep.subr.mxu0 0.0
      %3292 = vmatpush1.msra.mxu0 %v2374
      %3293 = vmatprep.subr.mxu0 0.0
      %3294 = vmatpush1.msra.mxu0 %v2377
      %3295 = vmatprep.subr.mxu0 0.0
      %3296 = vmatpush1.msra.mxu0 %v2380
      %3297 = vmatprep.subr.mxu0 0.0
      %3298 = vmatpush1.msra.mxu0 %v2383
      %3299 = vmatprep.subr.mxu0 0.0
      %3300 = vmatpush1.msra.mxu0 %v2386
      %3301 = vmatprep.subr.mxu0 0.0
      %3302 = vmatpush1.msra.mxu0 %v2389
      %3303 = vmatprep.subr.mxu0 0.0
      %3304 = vmatpush1.msra.mxu0 %v2392
      %3305 = vmatprep.subr.mxu0 0.0
      %3306 = vmatpush1.msra.mxu0 %v2395
      %3307 = vmatprep.subr.mxu0 0.0
      %3308 = vmatpush1.msra.mxu0 %v2398
      %3309 = vmatprep.subr.mxu0 0.0
      %3310 = vmatpush1.msra.mxu0 %v2401
      %3311 = vmatprep.subr.mxu0 0.0
      %3312 = vmatpush1.msra.mxu0 %v2404
      %3313 = vmatprep.subr.mxu0 0.0
      %3314 = vmatpush1.msra.mxu0 %v2407
      %3315 = vmatprep.subr.mxu0 0.0
      %3316 = vmatpush1.msra.mxu0 %v2410
      %3317 = vmatprep.mubr.f32.mxu0 %v2176
      %3318 = vmatmul.mubr.f32.gmra.mrb[0].mxu0 %v2170
      %v3319 = vpop.f32.mrb[0].mxu0
      %v3320 = vadd.f32 %v3250, %v3319
      %v3321 = vpop.f32.mrb[0].mxu0
      %3322 = vdwg.mxu0
      %3323 = vmatprep.subr.mxu0 0.0
      %3324 = vmatpush1.msra.mxu0 %v2413
      %3325 = vmatprep.subr.mxu0 0.0
      %3326 = vmatpush1.msra.mxu0 %v2416
      %3327 = vmatprep.subr.mxu0 0.0
      %3328 = vmatpush1.msra.mxu0 %v2419
      %3329 = vmatprep.subr.mxu0 0.0
      %3330 = vmatpush1.msra.mxu0 %v2422
      %3331 = vmatprep.subr.mxu0 0.0
      %3332 = vmatpush1.msra.mxu0 %v2425
      %3333 = vmatprep.subr.mxu0 0.0
      %3334 = vmatpush1.msra.mxu0 %v2428
      %3335 = vmatprep.subr.mxu0 0.0
      %3336 = vmatpush1.msra.mxu0 %v2431
      %3337 = vmatprep.subr.mxu0 0.0
      %3338 = vmatpush1.msra.mxu0 %v2434
      %3339 = vmatprep.subr.mxu0 0.0
      %3340 = vmatpush1.msra.mxu0 %v2437
      %3341 = vmatprep.subr.mxu0 0.0
      %3342 = vmatpush1.msra.mxu0 %v2440
      %3343 = vmatprep.subr.mxu0 0.0
      %3344 = vmatpush1.msra.mxu0 %v2443
      %3345 = vmatprep.subr.mxu0 0.0
      %3346 = vmatpush1.msra.mxu0 %v2446
      %3347 = vmatprep.subr.mxu0 0.0
      %3348 = vmatpush1.msra.mxu0 %v2449
      %3349 = vmatprep.subr.mxu0 0.0
      %3350 = vmatpush1.msra.mxu0 %v2452
      %3351 = vmatprep.subr.mxu0 0.0
      %3352 = vmatpush1.msra.mxu0 %v2455
      %3353 = vmatprep.subr.mxu0 0.0
      %3354 = vmatpush1.msra.mxu0 %v2458
      %3355 = vmatprep.subr.mxu0 0.0
      %3356 = vmatpush1.msra.mxu0 %v2461
      %3357 = vmatprep.subr.mxu0 0.0
      %3358 = vmatpush1.msra.mxu0 %v2464
      %3359 = vmatprep.subr.mxu0 0.0
      %3360 = vmatpush1.msra.mxu0 %v2467
      %3361 = vmatprep.subr.mxu0 0.0
      %3362 = vmatpush1.msra.mxu0 %v2470
      %3363 = vmatprep.subr.mxu0 0.0
      %3364 = vmatpush1.msra.mxu0 %v2473
      %3365 = vmatprep.subr.mxu0 0.0
      %3366 = vmatpush1.msra.mxu0 %v2476
      %3367 = vmatprep.subr.mxu0 0.0
      %3368 = vmatpush1.msra.mxu0 %v2479
      %3369 = vmatprep.subr.mxu0 0.0
      %3370 = vmatpush1.msra.mxu0 %v2482
      %3371 = vmatprep.subr.mxu0 0.0
      %3372 = vmatpush1.msra.mxu0 %v2485
      %3373 = vmatprep.subr.mxu0 0.0
      %3374 = vmatpush1.msra.mxu0 %v2488
      %3375 = vmatprep.subr.mxu0 0.0
      %3376 = vmatpush1.msra.mxu0 %v2491
      %3377 = vmatprep.subr.mxu0 0.0
      %3378 = vmatpush1.msra.mxu0 %v2494
      %3379 = vmatprep.subr.mxu0 0.0
      %3380 = vmatpush1.msra.mxu0 %v2497
      %3381 = vmatprep.subr.mxu0 0.0
      %3382 = vmatpush1.msra.mxu0 %v2500
      %3383 = vmatprep.subr.mxu0 0.0
      %3384 = vmatpush1.msra.mxu0 %v2503
      %3385 = vmatprep.subr.mxu0 0.0
      %3386 = vmatpush1.msra.mxu0 %v2506
      %3387 = vmatprep.mubr.f32.mxu0 %v2188
      %3388 = vmatmul.mubr.f32.gmra.mrb[0].mxu0 %v2182
      %v3389 = vpop.f32.mrb[0].mxu0
      %v3390 = vadd.f32 %v3320, %v3389
      %v3391 = vpop.f32.mrb[0].mxu0
      %3392 = vdwg.mxu0
      %3393 = vmatprep.subr.mxu0 0.0
      %3394 = vmatpush1.msra.mxu0 %v2509
      %3395 = vmatprep.subr.mxu0 0.0
      %3396 = vmatpush1.msra.mxu0 %v2512
      %3397 = vmatprep.subr.mxu0 0.0
      %3398 = vmatpush1.msra.mxu0 %v2515
      %3399 = vmatprep.subr.mxu0 0.0
      %3400 = vmatpush1.msra.mxu0 %v2518
      %3401 = vmatprep.subr.mxu0 0.0
      %3402 = vmatpush1.msra.mxu0 %v2521
      %3403 = vmatprep.subr.mxu0 0.0
      %3404 = vmatpush1.msra.mxu0 %v2524
      %3405 = vmatprep.subr.mxu0 0.0
      %3406 = vmatpush1.msra.mxu0 %v2527
      %3407 = vmatprep.subr.mxu0 0.0
      %3408 = vmatpush1.msra.mxu0 %v2530
      %3409 = vmatprep.subr.mxu0 0.0
      %3410 = vmatpush1.msra.mxu0 %v2533
      %3411 = vmatprep.subr.mxu0 0.0
      %3412 = vmatpush1.msra.mxu0 %v2536
      %3413 = vmatprep.subr.mxu0 0.0
      %3414 = vmatpush1.msra.mxu0 %v2539
      %3415 = vmatprep.subr.mxu0 0.0
      %3416 = vmatpush1.msra.mxu0 %v2542
      %3417 = vmatprep.subr.mxu0 0.0
      %3418 = vmatpush1.msra.mxu0 %v2545
      %3419 = vmatprep.subr.mxu0 0.0
      %3420 = vmatpush1.msra.mxu0 %v2548
      %3421 = vmatprep.subr.mxu0 0.0
      %3422 = vmatpush1.msra.mxu0 %v2551
      %3423 = vmatprep.subr.mxu0 0.0
      %3424 = vmatpush1.msra.mxu0 %v2554
      %3425 = vmatprep.subr.mxu0 0.0
      %3426 = vmatpush1.msra.mxu0 %v2557
      %3427 = vmatprep.subr.mxu0 0.0
      %3428 = vmatpush1.msra.mxu0 %v2560
      %3429 = vmatprep.subr.mxu0 0.0
      %3430 = vmatpush1.msra.mxu0 %v2563
      %3431 = vmatprep.subr.mxu0 0.0
      %3432 = vmatpush1.msra.mxu0 %v2566
      %3433 = vmatprep.subr.mxu0 0.0
      %3434 = vmatpush1.msra.mxu0 %v2569
      %3435 = vmatprep.subr.mxu0 0.0
      %3436 = vmatpush1.msra.mxu0 %v2572
      %3437 = vmatprep.subr.mxu0 0.0
      %3438 = vmatpush1.msra.mxu0 %v2575
      %3439 = vmatprep.subr.mxu0 0.0
      %3440 = vmatpush1.msra.mxu0 %v2578
      %3441 = vmatprep.subr.mxu0 0.0
      %3442 = vmatpush1.msra.mxu0 %v2581
      %3443 = vmatprep.subr.mxu0 0.0
      %3444 = vmatpush1.msra.mxu0 %v2584
      %3445 = vmatprep.subr.mxu0 0.0
      %3446 = vmatpush1.msra.mxu0 %v2587
      %3447 = vmatprep.subr.mxu0 0.0
      %3448 = vmatpush1.msra.mxu0 %v2590
      %3449 = vmatprep.subr.mxu0 0.0
      %3450 = vmatpush1.msra.mxu0 %v2593
      %3451 = vmatprep.subr.mxu0 0.0
      %3452 = vmatpush1.msra.mxu0 %v2596
      %3453 = vmatprep.subr.mxu0 0.0
      %3454 = vmatpush1.msra.mxu0 %v2599
      %3455 = vmatprep.subr.mxu0 0.0
      %3456 = vmatpush1.msra.mxu0 %v2602
      %3457 = vmatprep.mubr.f32.mxu0 %v2200
      %3458 = vmatmul.mubr.f32.gmra.mrb[0].mxu0 %v2194
      %v3459 = vpop.f32.mrb[0].mxu0
      %v3460 = vadd.f32 %v3390, %v3459
      %v3461 = vpop.f32.mrb[0].mxu0
      %3462 = vdwg.mxu0
      %3463 = vmatprep.subr.mxu0 0.0
      %3464 = vmatpush1.msra.mxu0 %v2605
      %3465 = vmatprep.subr.mxu0 0.0
      %3466 = vmatpush1.msra.mxu0 %v2608
      %3467 = vmatprep.subr.mxu0 0.0
      %3468 = vmatpush1.msra.mxu0 %v2611
      %3469 = vmatprep.subr.mxu0 0.0
      %3470 = vmatpush1.msra.mxu0 %v2614
      %3471 = vmatprep.subr.mxu0 0.0
      %3472 = vmatpush1.msra.mxu0 %v2617
      %3473 = vmatprep.subr.mxu0 0.0
      %3474 = vmatpush1.msra.mxu0 %v2620
      %3475 = vmatprep.subr.mxu0 0.0
      %3476 = vmatpush1.msra.mxu0 %v2623
      %3477 = vmatprep.subr.mxu0 0.0
      %3478 = vmatpush1.msra.mxu0 %v2626
      %3479 = vmatprep.subr.mxu0 0.0
      %3480 = vmatpush1.msra.mxu0 %v2629
      %3481 = vmatprep.subr.mxu0 0.0
      %3482 = vmatpush1.msra.mxu0 %v2632
      %3483 = vmatprep.subr.mxu0 0.0
      %3484 = vmatpush1.msra.mxu0 %v2635
      %3485 = vmatprep.subr.mxu0 0.0
      %3486 = vmatpush1.msra.mxu0 %v2638
      %3487 = vmatprep.subr.mxu0 0.0
      %3488 = vmatpush1.msra.mxu0 %v2641
      %3489 = vmatprep.subr.mxu0 0.0
      %3490 = vmatpush1.msra.mxu0 %v2644
      %3491 = vmatprep.subr.mxu0 0.0
      %3492 = vmatpush1.msra.mxu0 %v2647
      %3493 = vmatprep.subr.mxu0 0.0
      %3494 = vmatpush1.msra.mxu0 %v2650
      %3495 = vmatprep.subr.mxu0 0.0
      %3496 = vmatpush1.msra.mxu0 %v2653
      %3497 = vmatprep.subr.mxu0 0.0
      %3498 = vmatpush1.msra.mxu0 %v2656
      %3499 = vmatprep.subr.mxu0 0.0
      %3500 = vmatpush1.msra.mxu0 %v2659
      %3501 = vmatprep.subr.mxu0 0.0
      %3502 = vmatpush1.msra.mxu0 %v2662
      %3503 = vmatprep.subr.mxu0 0.0
      %3504 = vmatpush1.msra.mxu0 %v2665
      %3505 = vmatprep.subr.mxu0 0.0
      %3506 = vmatpush1.msra.mxu0 %v2668
      %3507 = vmatprep.subr.mxu0 0.0
      %3508 = vmatpush1.msra.mxu0 %v2671
      %3509 = vmatprep.subr.mxu0 0.0
      %3510 = vmatpush1.msra.mxu0 %v2674
      %3511 = vmatprep.subr.mxu0 0.0
      %3512 = vmatpush1.msra.mxu0 %v2677
      %3513 = vmatprep.subr.mxu0 0.0
      %3514 = vmatpush1.msra.mxu0 %v2680
      %3515 = vmatprep.subr.mxu0 0.0
      %3516 = vmatpush1.msra.mxu0 %v2683
      %3517 = vmatprep.subr.mxu0 0.0
      %3518 = vmatpush1.msra.mxu0 %v2686
      %3519 = vmatprep.subr.mxu0 0.0
      %3520 = vmatpush1.msra.mxu0 %v2689
      %3521 = vmatprep.subr.mxu0 0.0
      %3522 = vmatpush1.msra.mxu0 %v2692
      %3523 = vmatprep.subr.mxu0 0.0
      %3524 = vmatpush1.msra.mxu0 %v2695
      %3525 = vmatprep.subr.mxu0 0.0
      %3526 = vmatpush1.msra.mxu0 %v2698
      %3527 = vmatprep.mubr.f32.mxu0 %v2212
      %3528 = vmatmul.mubr.f32.gmra.mrb[0].mxu0 %v2206
      %v3529 = vpop.f32.mrb[0].mxu0
      %v3530 = vadd.f32 %v3460, %v3529
      %v3531 = vpop.f32.mrb[0].mxu0
      %3532 = vdwg.mxu0
      %3533 = vmatprep.subr.mxu0 0.0
      %3534 = vmatpush1.msra.mxu0 %v2701
      %3535 = vmatprep.subr.mxu0 0.0
      %3536 = vmatpush1.msra.mxu0 %v2704
      %3537 = vmatprep.subr.mxu0 0.0
      %3538 = vmatpush1.msra.mxu0 %v2707
      %3539 = vmatprep.subr.mxu0 0.0
      %3540 = vmatpush1.msra.mxu0 %v2710
      %3541 = vmatprep.subr.mxu0 0.0
      %3542 = vmatpush1.msra.mxu0 %v2713
      %3543 = vmatprep.subr.mxu0 0.0
      %3544 = vmatpush1.msra.mxu0 %v2716
      %3545 = vmatprep.subr.mxu0 0.0
      %3546 = vmatpush1.msra.mxu0 %v2719
      %3547 = vmatprep.subr.mxu0 0.0
      %3548 = vmatpush1.msra.mxu0 %v2722
      %3549 = vmatprep.subr.mxu0 0.0
      %3550 = vmatpush1.msra.mxu0 %v2725
      %3551 = vmatprep.subr.mxu0 0.0
      %3552 = vmatpush1.msra.mxu0 %v2728
      %3553 = vmatprep.subr.mxu0 0.0
      %3554 = vmatpush1.msra.mxu0 %v2731
      %3555 = vmatprep.subr.mxu0 0.0
      %3556 = vmatpush1.msra.mxu0 %v2734
      %3557 = vmatprep.subr.mxu0 0.0
      %3558 = vmatpush1.msra.mxu0 %v2737
      %3559 = vmatprep.subr.mxu0 0.0
      %3560 = vmatpush1.msra.mxu0 %v2740
      %3561 = vmatprep.subr.mxu0 0.0
      %3562 = vmatpush1.msra.mxu0 %v2743
      %3563 = vmatprep.subr.mxu0 0.0
      %3564 = vmatpush1.msra.mxu0 %v2746
      %3565 = vmatprep.subr.mxu0 0.0
      %3566 = vmatpush1.msra.mxu0 0.0
      %3567 = vmatprep.subr.mxu0 0.0
      %3568 = vmatpush1.msra.mxu0 0.0
      %3569 = vmatprep.subr.mxu0 0.0
      %3570 = vmatpush1.msra.mxu0 0.0
      %3571 = vmatprep.subr.mxu0 0.0
      %3572 = vmatpush1.msra.mxu0 0.0
      %3573 = vmatprep.subr.mxu0 0.0
      %3574 = vmatpush1.msra.mxu0 0.0
      %3575 = vmatprep.subr.mxu0 0.0
      %3576 = vmatpush1.msra.mxu0 0.0
      %3577 = vmatprep.subr.mxu0 0.0
      %3578 = vmatpush1.msra.mxu0 0.0
      %3579 = vmatprep.subr.mxu0 0.0
      %3580 = vmatpush1.msra.mxu0 0.0
      %3581 = vmatprep.subr.mxu0 0.0
      %3582 = vmatpush1.msra.mxu0 0.0
      %3583 = vmatprep.subr.mxu0 0.0
      %3584 = vmatpush1.msra.mxu0 0.0
      %3585 = vmatprep.subr.mxu0 0.0
      %3586 = vmatpush1.msra.mxu0 0.0
      %3587 = vmatprep.subr.mxu0 0.0
      %3588 = vmatpush1.msra.mxu0 0.0
      %3589 = vmatprep.subr.mxu0 0.0
      %3590 = vmatpush1.msra.mxu0 0.0
      %3591 = vmatprep.subr.mxu0 0.0
      %3592 = vmatpush1.msra.mxu0 0.0
      %3593 = vmatprep.subr.mxu0 0.0
      %3594 = vmatpush1.msra.mxu0 0.0
      %3595 = vmatprep.subr.mxu0 0.0
      %3596 = vmatpush1.msra.mxu0 0.0
      %3597 = vmatprep.mubr.f32.mxu0 0.0
      %3598 = vmatmul.mubr.f32.gmra.mrb[0].mxu0 %v2218
      %v3599 = vpop.f32.mrb[0].mxu0
      %v3600 = vadd.f32 %v3530, %v3599
      %v3601 = vpop.f32.mrb[0].mxu0
      %3602 = vdwg.mxu0
      %v3606 = vcombine.low %v3179, %v3181
      %v3608 = vunpack.c.l.s4 1966171168
      %v3609 = vunpack.c.0.s8 %v3608
      %v3610 = vlaneseq
      %v3611 = vshrl.u32 %v3610, 7
      %v3612 = vsub.s32 %v3609, %v3611
      %v3613 = vrot.slane %v3606, %v3612
      %v3615 = vunpack.c.l.s4 1966171168
      %v3616 = vunpack.c.0.s8 %v3615
      %v3617 = vlaneseq
      %v3618 = vshrl.u32 %v3617, 7
      %v3619 = vsub.s32 %v3616, %v3618
      %v3620 = vrot.slane %v3600, %v3619
      %v3621 = vcombine.low %v3613, %v3620
      %v3623 = vunpack.c.l.s4 1966171168
      %v3624 = vunpack.c.0.s8 %v3623
      %v3625 = vlaneseq
      %v3626 = vshrl.u32 %v3625, 7
      %v3627 = vsub.s32 %v3624, %v3626
      %v3628 = vrot.slane %v3621, %v3627
      %v3630 = vlaneseq
      %vm3631 = vcmp.ge.s32.totalorder %v3630, 0
      %vm3632 = vcmp.lt.s32.totalorder %v3630, 384
      %vm3633 = vmand %vm3631, %vm3632
      %3634 = vst.msk [vmem:[%s332] sm:$0x7] %vm3633, %v3628
      %p3635 = scmp.lt.s32.totalorder %s22, 1
      %s3636 = scalar_select %p3635, %s22, 1
      %s3637 = smul.addr %s3636, 3
      %s3638 = scalar_lea.vmem %s9, %s3637
      // Predicated region
      $region57: #{temporal_conv_net_forward.1} parent=55 // pred_check
        %p3639 = pneg %p234
      $region58: #{temporal_conv_net_forward.1} parent=55 // pred_check_branch
        %3641 = sbr.rel (%p3639) target = $region60
      $region59: #{temporal_conv_net_forward.1} parent=55 // pred_region
        _
      $region60: #{temporal_conv_net_forward.1} parent=55 // pred_fallthru
        _
    $region56: #{temporal_conv_net_forward.1} parent=5 // pred_fallthru
      _
    %p3642 = scmp.le.s32.totalorder 2, %s17
    // Predicated region
    $region61: #{temporal_conv_net_forward.1} parent=5 // pred_check
      %p3643 = pneg %p3642
    $region62: #{temporal_conv_net_forward.1} parent=5 // pred_check_branch
      %3645 = sbr.rel (%p3643) target = $region64
    $region63: #{temporal_conv_net_forward.1} parent=5 // pred_region
      %s3646 = ssub.s32 %s17, 2
      // Predicated region
      $region65: #{temporal_conv_net_forward.1} parent=63 // pred_check
        %p3647 = pneg %p240
      $region66: #{temporal_conv_net_forward.1} parent=63 // pred_check_branch
        %3649 = sbr.rel (%p3647) target = $region68
      $region67: #{temporal_conv_net_forward.1} parent=63 // pred_region
        %p3650 = scmp.lt.s32.totalorder %s23, 1
        %s3651 = scalar_select %p3650, %s23, 1
        %s3652 = smul.addr %s3651, 3
        %s3653 = scalar_lea.vmem %s9, %s3652
      $region68: #{temporal_conv_net_forward.1} parent=63 // pred_fallthru
        _
    $region64: #{temporal_conv_net_forward.1} parent=5 // pred_fallthru
      _
  $region6: #{temporal_conv_net_forward.1} parent=0 // loop_footer
    %s21 = sadd.s32 1, %s17
  $region7: #{temporal_conv_net_forward.1} parent=0 // loop_footer_branch
    %16 = sbr.rel target = $region3
  $region8: #{temporal_conv_net_forward.1} parent=0 // loop_exit
    _

</llo_original>
